<compile_context>
chip_gen: v7x
topology: tpu7x:2x2x1
jax: 0.10.0
libtpu: 0.0.40
codegen_flags: <defaults>
</compile_context>

<pallas_src>
import functools

import jax
import jax.numpy as jnp
from jax import lax
from jax.experimental import pallas as pl
from jax.experimental.pallas import tpu as pltpu


def _conv_out(h, k, s):
    return (h - k) // s + 1


# ------------------------------ Pallas kernel -------------------------------

def _disc_fused_kernel(p1_ref, w1_ref, b1_ref, w2c_ref, b2_ref, w3_ref, b3_ref,
                       o_ref, b_scr, y2_scr, a2_scr, p3_scr,
                       *, dims, eps, slope):
    (N, H1, W1, H2, W2, H3, W3, c2, k) = dims

    def bn_lrelu(y, inv_n):
        # One-pass BatchNorm2d (batch stats, biased var, gamma=1/beta=0)
        # + LeakyReLU(slope) via maximum.
        s1 = jnp.sum(y, axis=0, keepdims=True)
        s2 = jnp.sum(y * y, axis=0, keepdims=True)
        mean = s1 * inv_n
        var = s2 * inv_n - mean * mean
        yn = (y - mean) * lax.rsqrt(var + eps)          # rsqrt -> EUP slot
        return jnp.maximum(yn, slope * yn)

    # ---------------- Layer 1: one bf16 MXU matmul, f32 accumulation --------
    y1 = jnp.dot(p1_ref[...], w1_ref[...], preferred_element_type=jnp.float32)
    a1 = bn_lrelu(y1 + b1_ref[...], 1.0 / (N * H1 * W1))

    # ---------------- Layer 2, step 1: lane-dense weight contraction --------
    # B[:, t*c2:(t+1)*c2] = a1 @ W2_tap  for every tap t (one 512-wide matmul).
    b_scr[...] = jnp.dot(a1.astype(w2c_ref.dtype), w2c_ref[...],
                         preferred_element_type=jnp.float32)

    # ---------------- Layer 2, step 2: tap selection = static slice sums ----
    # Layer-1 rows are grouped by output parity phase (oh%2, ow%2), so for a
    # tap (kh, kw) every (image, output-row) needs a *contiguous* 5-row slice.
    Hp = {0: (H1 + 1) // 2, 1: H1 // 2}
    Wp = {0: (W1 + 1) // 2, 1: W1 // 2}
    off = {}
    acc = 0
    for p in (0, 1):
        for q in (0, 1):
            off[(p, q)] = acc
            acc += N * Hp[p] * Wp[q]

    for n in range(N):
        for oh in range(H2):
            blk = None
            for kh in range(k):
                for kw in range(k):
                    t = kh * k + kw
                    p, q = kh % 2, kw % 2
                    r0 = (off[(p, q)] + n * Hp[p] * Wp[q]
                          + (oh + kh // 2) * Wp[q] + kw // 2)
                    piece = b_scr[r0:r0 + W2, t * c2:(t + 1) * c2]
                    blk = piece if blk is None else blk + piece
            y2_scr[(n * H2 + oh) * W2:(n * H2 + oh + 1) * W2, :] = blk

    a2_scr[...] = bn_lrelu(y2_scr[...] + b2_ref[...], 1.0 / (N * H2 * W2))

    # ---------------- Layer 3: assemble (N, k*k*c2) patch, one f32 matmul ---
    for n in range(N):
        for oh in range(H3):
            for ow in range(W3):
                ro = (n * H3 + oh) * W3 + ow
                for kh in range(k):
                    for kw in range(k):
                        t = kh * k + kw
                        ri = n * H2 * W2 + (2 * oh + kh) * W2 + (2 * ow + kw)
                        p3_scr[ro:ro + 1, t * c2:(t + 1) * c2] = \
                            a2_scr[ri:ri + 1, :]

    # Final (un-normalized) layer stays f32 for accuracy.
    # Output is (N*H3*W3, 1) = (2, 1): a single (masked) store -- negligible;
    # would be emitted lane-major if the head were ever widened.
    o_ref[...] = jnp.dot(p3_scr[...], w3_ref[...],
                         preferred_element_type=jnp.float32) + b3_ref[...]


def _fused_disc_call(p1, prep, dims, eps=1e-5, slope=0.2):
    (N, H1, W1, H2, W2, H3, W3, c2, k) = dims
    m3 = N * H3 * W3
    operands = (p1, prep["w1"], prep["b1"], prep["w2cat"], prep["b2"],
                prep["w3"], prep["b3"])

    def full_spec(a):
        return pl.BlockSpec(a.shape, lambda i, _nd=a.ndim: (0,) * _nd)

    kernel = functools.partial(_disc_fused_kernel, dims=dims, eps=eps,
                               slope=slope)
    return pl.pallas_call(
        kernel,
        out_shape=jax.ShapeDtypeStruct((m3, 1), jnp.float32),
        grid=(1,),
        in_specs=[full_spec(a) for a in operands],
        out_specs=pl.BlockSpec((m3, 1), lambda i: (0, 0)),
        scratch_shapes=[
            pltpu.VMEM((N * H1 * W1, k * k * c2), jnp.float32),   # B
            pltpu.VMEM((N * H2 * W2, c2), jnp.float32),           # y2 (pre-BN)
            pltpu.VMEM((N * H2 * W2, c2), jnp.float32),           # a2
            pltpu.VMEM((m3, k * k * c2), jnp.float32),            # p3 patches
        ],
        compiler_params=pltpu.CompilerParams(
            dimension_semantics=("arbitrary",)),
    )(*operands)


# --------------------- hoisted, one-time preparation -------------------------

def prepare_discriminator(params, k=4, matmul_dtype=jnp.bfloat16):
    """Parameter-only re-layout, done once outside the forward pass."""
    hd = params["w1"].shape[0]
    ci = params["w1"].shape[1]
    c2 = params["w2"].shape[0]

    # Layer 1: (k*k*ci, hd), rows ordered (kh, kw, ci).
    w1 = jnp.transpose(params["w1"], (2, 3, 1, 0)).reshape(k * k * ci, hd)
    # Layer 2: concatenate the k*k per-tap (hd, c2) matrices along the output
    # axis -> (hd, k*k*c2), columns ordered (kh, kw, co).
    w2t = jnp.transpose(params["w2"], (2, 3, 1, 0)).reshape(k * k, hd, c2)
    w2cat = jnp.transpose(w2t, (1, 0, 2)).reshape(hd, k * k * c2)
    # Layer 3: (k*k*c2, 1), rows ordered (kh, kw, ci); final layer stays f32.
    w3 = jnp.transpose(params["w3"], (2, 3, 1, 0)).reshape(k * k * c2, 1)

    return {
        "w1": w1.astype(matmul_dtype),
        "b1": params["b1"].reshape(1, hd).astype(jnp.float32),
        "w2cat": w2cat.astype(matmul_dtype),
        "b2": params["b2"].reshape(1, c2).astype(jnp.float32),
        "w3": w3.astype(jnp.float32),
        "b3": params["b3"].reshape(1, 1).astype(jnp.float32),
    }


# ------------------------------ forward (JAX) --------------------------------

def _phase_grouped_patches(image, k=4, s=2):
    """NCHW image -> layer-1 im2col (N*OH*OW, k*k*C) with rows grouped by
    output parity phase (oh%2, ow%2), then (n, oh//2, ow//2)."""
    N, C, H, W = image.shape
    OH, OW = _conv_out(H, k, s), _conv_out(W, k, s)
    cols = [image[:, :, kh:kh + s * OH:s, kw:kw + s * OW:s]
            for kh in range(k) for kw in range(k)]
    pat = jnp.stack(cols, axis=-1)                    # (N, C, OH, OW, k*k)
    pat = jnp.transpose(pat, (0, 2, 3, 4, 1))         # (N, OH, OW, k*k, C)
    pat = pat.reshape(N, OH, OW, k * k * C)
    blocks = [pat[:, p::2, q::2, :].reshape(-1, k * k * C)
              for p in (0, 1) for q in (0, 1)]
    return jnp.concatenate(blocks, axis=0)            # (N*OH*OW, k*k*C)


def discriminator_forward(image, prep, k=4, s=2):
    """image: (N, im_chan, H, W) f32 -> (N, .) f32 (DCGAN discriminator)."""
    assert s == 2 and k == 4
    N, C, H, W = image.shape
    H1, W1 = _conv_out(H, k, s), _conv_out(W, k, s)
    H2, W2 = _conv_out(H1, k, s), _conv_out(W1, k, s)
    H3, W3 = _conv_out(H2, k, s), _conv_out(W2, k, s)
    c2 = prep["b2"].shape[1]

    p1 = _phase_grouped_patches(image, k=k, s=s).astype(prep["w1"].dtype)
    dims = (N, H1, W1, H2, W2, H3, W3, c2, k)
    out = _fused_disc_call(p1, prep, dims)
    return out.reshape(N, -1)


def init_params(key, im_chan=1, hidden_dim=16):
    k1, k2, k3, k4, k5, k6 = jax.random.split(key, 6)
    scale = 0.05
    return {
        "w1": scale * jax.random.normal(k1, (hidden_dim, im_chan, 4, 4), jnp.float32),
        "b1": scale * jax.random.normal(k2, (hidden_dim,), jnp.float32),
        "w2": scale * jax.random.normal(k3, (hidden_dim * 2, hidden_dim, 4, 4), jnp.float32),
        "b2": scale * jax.random.normal(k4, (hidden_dim * 2,), jnp.float32),
        "w3": scale * jax.random.normal(k5, (1, hidden_dim * 2, 4, 4), jnp.float32),
        "b3": scale * jax.random.normal(k6, (1,), jnp.float32),
    }


# --------------------------- pure-JAX reference ------------------------------

def _ref_forward(image, params):
    def conv(x, w, b, s=2):
        y = lax.conv_general_dilated(x, w, (s, s), "VALID",
                                     dimension_numbers=("NCHW", "OIHW", "NCHW"))
        return y + b[None, :, None, None]

    def bn_lrelu(y, eps=1e-5, slope=0.2):
        mean = jnp.mean(y, axis=(0, 2, 3), keepdims=True)
        var = jnp.mean((y - mean) ** 2, axis=(0, 2, 3), keepdims=True)
        yn = (y - mean) * lax.rsqrt(var + eps)
        return jnp.where(yn >= 0, yn, slope * yn)

    h = bn_lrelu(conv(image, params["w1"], params["b1"]))
    h = bn_lrelu(conv(h, params["w2"], params["b2"]))
    h = conv(h, params["w3"], params["b3"])
    return h.reshape(h.shape[0], -1)


if __name__ == "__main__":
    key = jax.random.PRNGKey(0)
    pkey, xkey = jax.random.split(key)
    params = init_params(pkey, im_chan=1, hidden_dim=16)

    # MNIST-like input: 28 -> 13 -> 5 -> 1 through three stride-2 k=4 convs.
    image = jax.random.normal(xkey, (2, 1, 28, 28), jnp.float32)

    prep = prepare_discriminator(params)                 # hoisted, one-time
    fwd = jax.jit(discriminator_forward)

    out = jax.block_until_ready(fwd(image, prep))
    assert out.shape == (2, 1), out.shape

    # Layers 1-2 run with bf16 MXU operands (BatchNorm renormalizes them, the
    # final layer is f32), so compare against the pure-f32 reference at a
    # bf16-appropriate tolerance.
    ref = jax.block_until_ready(_ref_forward(image, params))
    assert jnp.allclose(out, ref, rtol=3e-2, atol=3e-2), (out, ref)

    print("KERNEL_OK")
</pallas_src>

<mosaic_0001>
module attributes {stable_mosaic.version = 11 : i64} {
  func.func @_disc_fused_kernel(%arg0: i32, %arg1: memref<338x16xbf16, #tpu.memory_space<vmem>>, %arg2: memref<16x16xbf16, #tpu.memory_space<vmem>>, %arg3: memref<1x16xf32, #tpu.memory_space<vmem>>, %arg4: memref<16x512xbf16, #tpu.memory_space<vmem>>, %arg5: memref<1x32xf32, #tpu.memory_space<vmem>>, %arg6: memref<512x1xf32, #tpu.memory_space<vmem>>, %arg7: memref<1x1xf32, #tpu.memory_space<vmem>>, %arg8: memref<2x1xf32, #tpu.memory_space<vmem>>, %arg9: memref<338x512xf32, #tpu.memory_space<vmem>>, %arg10: memref<50x32xf32, #tpu.memory_space<vmem>>, %arg11: memref<50x32xf32, #tpu.memory_space<vmem>>, %arg12: memref<2x512xf32, #tpu.memory_space<vmem>>) attributes {dimension_semantics = [#tpu.dimension_semantics<arbitrary>], iteration_bounds = array<i64: 1>, scalar_prefetch = 0 : i64, scratch_operands = 4 : i64, tpu.core_type = #tpu.core_type<tc>, window_params = [{pipeline_mode = #tpu.pipeline_mode<synchronous>, transform_indices = @transform_0, window_bounds = array<i64: 338, 16>}, {pipeline_mode = #tpu.pipeline_mode<synchronous>, transform_indices = @transform_1, window_bounds = array<i64: 16, 16>}, {pipeline_mode = #tpu.pipeline_mode<synchronous>, transform_indices = @transform_2, window_bounds = array<i64: 1, 16>}, {pipeline_mode = #tpu.pipeline_mode<synchronous>, transform_indices = @transform_3, window_bounds = array<i64: 16, 512>}, {pipeline_mode = #tpu.pipeline_mode<synchronous>, transform_indices = @transform_4, window_bounds = array<i64: 1, 32>}, {pipeline_mode = #tpu.pipeline_mode<synchronous>, transform_indices = @transform_5, window_bounds = array<i64: 512, 1>}, {pipeline_mode = #tpu.pipeline_mode<synchronous>, transform_indices = @transform_6, window_bounds = array<i64: 1, 1>}, {pipeline_mode = #tpu.pipeline_mode<synchronous>, transform_indices = @transform_7, window_bounds = array<i64: 2, 1>}]} {
    %c0 = arith.constant 0 : index
    %c0_0 = arith.constant 0 : index
    %0 = vector.load %arg1[%c0, %c0_0] : memref<338x16xbf16, #tpu.memory_space<vmem>>, vector<338x16xbf16>
    %c0_1 = arith.constant 0 : index
    %c0_2 = arith.constant 0 : index
    %1 = vector.load %arg2[%c0_1, %c0_2] : memref<16x16xbf16, #tpu.memory_space<vmem>>, vector<16x16xbf16>
    %cst = arith.constant dense<0.000000e+00> : vector<338x16xf32>
    %2 = tpu.matmul %0, %1, %cst {dimension_numbers = #tpu.dot_dimension_numbers<[1], [0], [0], [1], [0, 0, 1, 1], [], []>} : vector<338x16xbf16>, vector<16x16xbf16>, vector<338x16xf32> -> vector<338x16xf32>
    %c0_3 = arith.constant 0 : index
    %c0_4 = arith.constant 0 : index
    %3 = vector.load %arg3[%c0_3, %c0_4] : memref<1x16xf32, #tpu.memory_space<vmem>>, vector<1x16xf32>
    %4 = vector.broadcast %3 : vector<1x16xf32> to vector<338x16xf32>
    %5 = arith.addf %2, %4 : vector<338x16xf32>
    %cst_5 = arith.constant dense<0.000000e+00> : vector<16xf32>
    %6 = vector.multi_reduction <add>, %5, %cst_5 [0] : vector<338x16xf32> to vector<16xf32>
    %7 = vector.shape_cast %6 : vector<16xf32> to vector<1x16xf32>
    %8 = arith.mulf %5, %5 : vector<338x16xf32>
    %cst_6 = arith.constant dense<0.000000e+00> : vector<16xf32>
    %9 = vector.multi_reduction <add>, %8, %cst_6 [0] : vector<338x16xf32> to vector<16xf32>
    %10 = vector.shape_cast %9 : vector<16xf32> to vector<1x16xf32>
    %cst_7 = arith.constant 2.958580e-03 : f32
    %11 = vector.broadcast %cst_7 : f32 to vector<1x16xf32>
    %12 = arith.mulf %7, %11 : vector<1x16xf32>
    %cst_8 = arith.constant 2.958580e-03 : f32
    %13 = vector.broadcast %cst_8 : f32 to vector<1x16xf32>
    %14 = arith.mulf %10, %13 : vector<1x16xf32>
    %15 = arith.mulf %12, %12 : vector<1x16xf32>
    %16 = arith.subf %14, %15 : vector<1x16xf32>
    %17 = vector.broadcast %12 : vector<1x16xf32> to vector<338x16xf32>
    %18 = arith.subf %5, %17 : vector<338x16xf32>
    %cst_9 = arith.constant 9.99999974E-6 : f32
    %19 = vector.broadcast %cst_9 : f32 to vector<1x16xf32>
    %20 = arith.addf %16, %19 : vector<1x16xf32>
    %21 = math.rsqrt %20 : vector<1x16xf32>
    %22 = vector.broadcast %21 : vector<1x16xf32> to vector<338x16xf32>
    %23 = arith.mulf %18, %22 : vector<338x16xf32>
    %cst_10 = arith.constant 2.000000e-01 : f32
    %24 = vector.broadcast %cst_10 : f32 to vector<338x16xf32>
    %25 = arith.mulf %24, %23 : vector<338x16xf32>
    %26 = arith.maximumf %23, %25 : vector<338x16xf32>
    %27 = arith.truncf %26 : vector<338x16xf32> to vector<338x16xbf16>
    %c0_11 = arith.constant 0 : index
    %c0_12 = arith.constant 0 : index
    %28 = vector.load %arg4[%c0_11, %c0_12] : memref<16x512xbf16, #tpu.memory_space<vmem>>, vector<16x512xbf16>
    %cst_13 = arith.constant dense<0.000000e+00> : vector<338x512xf32>
    %29 = tpu.matmul %27, %28, %cst_13 {dimension_numbers = #tpu.dot_dimension_numbers<[1], [0], [0], [1], [0, 0, 1, 1], [], []>} : vector<338x16xbf16>, vector<16x512xbf16>, vector<338x512xf32> -> vector<338x512xf32>
    %c0_14 = arith.constant 0 : index
    %c0_15 = arith.constant 0 : index
    %30 = vector.load %arg9[%c0_14, %c0_15] : memref<338x512xf32, #tpu.memory_space<vmem>>, vector<338x512xf32>
    tpu.vector_store %arg9[%c0_14, %c0_15], %29 {strides = array<i32>} : memref<338x512xf32, #tpu.memory_space<vmem>>, vector<338x512xf32>,
    %c0_16 = arith.constant 0 : index
    %c0_17 = arith.constant 0 : index
    %31 = vector.load %arg9[%c0_16, %c0_17] : memref<338x512xf32, #tpu.memory_space<vmem>>, vector<5x32xf32>
    %c98 = arith.constant 98 : index
    %c32 = arith.constant 32 : index
    %32 = vector.load %arg9[%c98, %c32] : memref<338x512xf32, #tpu.memory_space<vmem>>, vector<5x32xf32>
    %33 = arith.addf %31, %32 : vector<5x32xf32>
    %c1 = arith.constant 1 : index
    %c64 = arith.constant 64 : index
    %34 = vector.load %arg9[%c1, %c64] : memref<338x512xf32, #tpu.memory_space<vmem>>, vector<5x32xf32>
    %35 = arith.addf %33, %34 : vector<5x32xf32>
    %c99 = arith.constant 99 : index
    %c96 = arith.constant 96 : index
    %36 = vector.load %arg9[%c99, %c96] : memref<338x512xf32, #tpu.memory_space<vmem>>, vector<5x32xf32>
    %37 = arith.addf %35, %36 : vector<5x32xf32>
    %c182 = arith.constant 182 : index
    %c128 = arith.constant 128 : index
    %38 = vector.load %arg9[%c182, %c128] : memref<338x512xf32, #tpu.memory_space<vmem>>, vector<5x32xf32>
    %39 = arith.addf %37, %38 : vector<5x32xf32>
    %c266 = arith.constant 266 : index
    %c160 = arith.constant 160 : index
    %40 = vector.load %arg9[%c266, %c160] : memref<338x512xf32, #tpu.memory_space<vmem>>, vector<5x32xf32>
    %41 = arith.addf %39, %40 : vector<5x32xf32>
    %c183 = arith.constant 183 : index
    %c192 = arith.constant 192 : index
    %42 = vector.load %arg9[%c183, %c192] : memref<338x512xf32, #tpu.memory_space<vmem>>, vector<5x32xf32>
    %43 = arith.addf %41, %42 : vector<5x32xf32>
    %c267 = arith.constant 267 : index
    %c224 = arith.constant 224 : index
    %44 = vector.load %arg9[%c267, %c224] : memref<338x512xf32, #tpu.memory_space<vmem>>, vector<5x32xf32>
    %45 = arith.addf %43, %44 : vector<5x32xf32>
    %c7 = arith.constant 7 : index
    %c256 = arith.constant 256 : index
    %46 = vector.load %arg9[%c7, %c256] : memref<338x512xf32, #tpu.memory_space<vmem>>, vector<5x32xf32>
    %47 = arith.addf %45, %46 : vector<5x32xf32>
    %c104 = arith.constant 104 : index
    %c288 = arith.constant 288 : index
    %48 = vector.load %arg9[%c104, %c288] : memref<338x512xf32, #tpu.memory_space<vmem>>, vector<5x32xf32>
    %49 = arith.addf %47, %48 : vector<5x32xf32>
    %c8 = arith.constant 8 : index
    %c320 = arith.constant 320 : index
    %50 = vector.load %arg9[%c8, %c320] : memref<338x512xf32, #tpu.memory_space<vmem>>, vector<5x32xf32>
    %51 = arith.addf %49, %50 : vector<5x32xf32>
    %c105 = arith.constant 105 : index
    %c352 = arith.constant 352 : index
    %52 = vector.load %arg9[%c105, %c352] : memref<338x512xf32, #tpu.memory_space<vmem>>, vector<5x32xf32>
    %53 = arith.addf %51, %52 : vector<5x32xf32>
    %c189 = arith.constant 189 : index
    %c384 = arith.constant 384 : index
    %54 = vector.load %arg9[%c189, %c384] : memref<338x512xf32, #tpu.memory_space<vmem>>, vector<5x32xf32>
    %55 = arith.addf %53, %54 : vector<5x32xf32>
    %c272 = arith.constant 272 : index
    %c416 = arith.constant 416 : index
    %56 = vector.load %arg9[%c272, %c416] : memref<338x512xf32, #tpu.memory_space<vmem>>, vector<5x32xf32>
    %57 = arith.addf %55, %56 : vector<5x32xf32>
    %c190 = arith.constant 190 : index
    %c448 = arith.constant 448 : index
    %58 = vector.load %arg9[%c190, %c448] : memref<338x512xf32, #tpu.memory_space<vmem>>, vector<5x32xf32>
    %59 = arith.addf %57, %58 : vector<5x32xf32>
    %c273 = arith.constant 273 : index
    %c480 = arith.constant 480 : index
    %60 = vector.load %arg9[%c273, %c480] : memref<338x512xf32, #tpu.memory_space<vmem>>, vector<5x32xf32>
    %61 = arith.addf %59, %60 : vector<5x32xf32>
    %c0_18 = arith.constant 0 : index
    %c0_19 = arith.constant 0 : index
    %62 = vector.load %arg10[%c0_18, %c0_19] : memref<50x32xf32, #tpu.memory_space<vmem>>, vector<5x32xf32>
    tpu.vector_store %arg10[%c0_18, %c0_19], %61 {strides = array<i32>} : memref<50x32xf32, #tpu.memory_space<vmem>>, vector<5x32xf32>,
    %c7_20 = arith.constant 7 : index
    %c0_21 = arith.constant 0 : index
    %63 = vector.load %arg9[%c7_20, %c0_21] : memref<338x512xf32, #tpu.memory_space<vmem>>, vector<5x32xf32>
    %c104_22 = arith.constant 104 : index
    %c32_23 = arith.constant 32 : index
    %64 = vector.load %arg9[%c104_22, %c32_23] : memref<338x512xf32, #tpu.memory_space<vmem>>, vector<5x32xf32>
    %65 = arith.addf %63, %64 : vector<5x32xf32>
    %c8_24 = arith.constant 8 : index
    %c64_25 = arith.constant 64 : index
    %66 = vector.load %arg9[%c8_24, %c64_25] : memref<338x512xf32, #tpu.memory_space<vmem>>, vector<5x32xf32>
    %67 = arith.addf %65, %66 : vector<5x32xf32>
    %c105_26 = arith.constant 105 : index
    %c96_27 = arith.constant 96 : index
    %68 = vector.load %arg9[%c105_26, %c96_27] : memref<338x512xf32, #tpu.memory_space<vmem>>, vector<5x32xf32>
    %69 = arith.addf %67, %68 : vector<5x32xf32>
    %c189_28 = arith.constant 189 : index
    %c128_29 = arith.constant 128 : index
    %70 = vector.load %arg9[%c189_28, %c128_29] : memref<338x512xf32, #tpu.memory_space<vmem>>, vector<5x32xf32>
    %71 = arith.addf %69, %70 : vector<5x32xf32>
    %c272_30 = arith.constant 272 : index
    %c160_31 = arith.constant 160 : index
    %72 = vector.load %arg9[%c272_30, %c160_31] : memref<338x512xf32, #tpu.memory_space<vmem>>, vector<5x32xf32>
    %73 = arith.addf %71, %72 : vector<5x32xf32>
    %c190_32 = arith.constant 190 : index
    %c192_33 = arith.constant 192 : index
    %74 = vector.load %arg9[%c190_32, %c192_33] : memref<338x512xf32, #tpu.memory_space<vmem>>, vector<5x32xf32>
    %75 = arith.addf %73, %74 : vector<5x32xf32>
    %c273_34 = arith.constant 273 : index
    %c224_35 = arith.constant 224 : index
    %76 = vector.load %arg9[%c273_34, %c224_35] : memref<338x512xf32, #tpu.memory_space<vmem>>, vector<5x32xf32>
    %77 = arith.addf %75, %76 : vector<5x32xf32>
    %c14 = arith.constant 14 : index
    %c256_36 = arith.constant 256 : index
    %78 = vector.load %arg9[%c14, %c256_36] : memref<338x512xf32, #tpu.memory_space<vmem>>, vector<5x32xf32>
    %79 = arith.addf %77, %78 : vector<5x32xf32>
    %c110 = arith.constant 110 : index
    %c288_37 = arith.constant 288 : index
    %80 = vector.load %arg9[%c110, %c288_37] : memref<338x512xf32, #tpu.memory_space<vmem>>, vector<5x32xf32>
    %81 = arith.addf %79, %80 : vector<5x32xf32>
    %c15 = arith.constant 15 : index
    %c320_38 = arith.constant 320 : index
    %82 = vector.load %arg9[%c15, %c320_38] : memref<338x512xf32, #tpu.memory_space<vmem>>, vector<5x32xf32>
    %83 = arith.addf %81, %82 : vector<5x32xf32>
    %c111 = arith.constant 111 : index
    %c352_39 = arith.constant 352 : index
    %84 = vector.load %arg9[%c111, %c352_39] : memref<338x512xf32, #tpu.memory_space<vmem>>, vector<5x32xf32>
    %85 = arith.addf %83, %84 : vector<5x32xf32>
    %c196 = arith.constant 196 : index
    %c384_40 = arith.constant 384 : index
    %86 = vector.load %arg9[%c196, %c384_40] : memref<338x512xf32, #tpu.memory_space<vmem>>, vector<5x32xf32>
    %87 = arith.addf %85, %86 : vector<5x32xf32>
    %c278 = arith.constant 278 : index
    %c416_41 = arith.constant 416 : index
    %88 = vector.load %arg9[%c278, %c416_41] : memref<338x512xf32, #tpu.memory_space<vmem>>, vector<5x32xf32>
    %89 = arith.addf %87, %88 : vector<5x32xf32>
    %c197 = arith.constant 197 : index
    %c448_42 = arith.constant 448 : index
    %90 = vector.load %arg9[%c197, %c448_42] : memref<338x512xf32, #tpu.memory_space<vmem>>, vector<5x32xf32>
    %91 = arith.addf %89, %90 : vector<5x32xf32>
    %c279 = arith.constant 279 : index
    %c480_43 = arith.constant 480 : index
    %92 = vector.load %arg9[%c279, %c480_43] : memref<338x512xf32, #tpu.memory_space<vmem>>, vector<5x32xf32>
    %93 = arith.addf %91, %92 : vector<5x32xf32>
    %c5 = arith.constant 5 : index
    %c0_44 = arith.constant 0 : index
    %94 = vector.load %arg10[%c5, %c0_44] : memref<50x32xf32, #tpu.memory_space<vmem>>, vector<5x32xf32>
    tpu.vector_store %arg10[%c5, %c0_44], %93 {strides = array<i32>} : memref<50x32xf32, #tpu.memory_space<vmem>>, vector<5x32xf32>,
    %c14_45 = arith.constant 14 : index
    %c0_46 = arith.constant 0 : index
    %95 = vector.load %arg9[%c14_45, %c0_46] : memref<338x512xf32, #tpu.memory_space<vmem>>, vector<5x32xf32>
    %c110_47 = arith.constant 110 : index
    %c32_48 = arith.constant 32 : index
    %96 = vector.load %arg9[%c110_47, %c32_48] : memref<338x512xf32, #tpu.memory_space<vmem>>, vector<5x32xf32>
    %97 = arith.addf %95, %96 : vector<5x32xf32>
    %c15_49 = arith.constant 15 : index
    %c64_50 = arith.constant 64 : index
    %98 = vector.load %arg9[%c15_49, %c64_50] : memref<338x512xf32, #tpu.memory_space<vmem>>, vector<5x32xf32>
    %99 = arith.addf %97, %98 : vector<5x32xf32>
    %c111_51 = arith.constant 111 : index
    %c96_52 = arith.constant 96 : index
    %100 = vector.load %arg9[%c111_51, %c96_52] : memref<338x512xf32, #tpu.memory_space<vmem>>, vector<5x32xf32>
    %101 = arith.addf %99, %100 : vector<5x32xf32>
    %c196_53 = arith.constant 196 : index
    %c128_54 = arith.constant 128 : index
    %102 = vector.load %arg9[%c196_53, %c128_54] : memref<338x512xf32, #tpu.memory_space<vmem>>, vector<5x32xf32>
    %103 = arith.addf %101, %102 : vector<5x32xf32>
    %c278_55 = arith.constant 278 : index
    %c160_56 = arith.constant 160 : index
    %104 = vector.load %arg9[%c278_55, %c160_56] : memref<338x512xf32, #tpu.memory_space<vmem>>, vector<5x32xf32>
    %105 = arith.addf %103, %104 : vector<5x32xf32>
    %c197_57 = arith.constant 197 : index
    %c192_58 = arith.constant 192 : index
    %106 = vector.load %arg9[%c197_57, %c192_58] : memref<338x512xf32, #tpu.memory_space<vmem>>, vector<5x32xf32>
    %107 = arith.addf %105, %106 : vector<5x32xf32>
    %c279_59 = arith.constant 279 : index
    %c224_60 = arith.constant 224 : index
    %108 = vector.load %arg9[%c279_59, %c224_60] : memref<338x512xf32, #tpu.memory_space<vmem>>, vector<5x32xf32>
    %109 = arith.addf %107, %108 : vector<5x32xf32>
    %c21 = arith.constant 21 : index
    %c256_61 = arith.constant 256 : index
    %110 = vector.load %arg9[%c21, %c256_61] : memref<338x512xf32, #tpu.memory_space<vmem>>, vector<5x32xf32>
    %111 = arith.addf %109, %110 : vector<5x32xf32>
    %c116 = arith.constant 116 : index
    %c288_62 = arith.constant 288 : index
    %112 = vector.load %arg9[%c116, %c288_62] : memref<338x512xf32, #tpu.memory_space<vmem>>, vector<5x32xf32>
    %113 = arith.addf %111, %112 : vector<5x32xf32>
    %c22 = arith.constant 22 : index
    %c320_63 = arith.constant 320 : index
    %114 = vector.load %arg9[%c22, %c320_63] : memref<338x512xf32, #tpu.memory_space<vmem>>, vector<5x32xf32>
    %115 = arith.addf %113, %114 : vector<5x32xf32>
    %c117 = arith.constant 117 : index
    %c352_64 = arith.constant 352 : index
    %116 = vector.load %arg9[%c117, %c352_64] : memref<338x512xf32, #tpu.memory_space<vmem>>, vector<5x32xf32>
    %117 = arith.addf %115, %116 : vector<5x32xf32>
    %c203 = arith.constant 203 : index
    %c384_65 = arith.constant 384 : index
    %118 = vector.load %arg9[%c203, %c384_65] : memref<338x512xf32, #tpu.memory_space<vmem>>, vector<5x32xf32>
    %119 = arith.addf %117, %118 : vector<5x32xf32>
    %c284 = arith.constant 284 : index
    %c416_66 = arith.constant 416 : index
    %120 = vector.load %arg9[%c284, %c416_66] : memref<338x512xf32, #tpu.memory_space<vmem>>, vector<5x32xf32>
    %121 = arith.addf %119, %120 : vector<5x32xf32>
    %c204 = arith.constant 204 : index
    %c448_67 = arith.constant 448 : index
    %122 = vector.load %arg9[%c204, %c448_67] : memref<338x512xf32, #tpu.memory_space<vmem>>, vector<5x32xf32>
    %123 = arith.addf %121, %122 : vector<5x32xf32>
    %c285 = arith.constant 285 : index
    %c480_68 = arith.constant 480 : index
    %124 = vector.load %arg9[%c285, %c480_68] : memref<338x512xf32, #tpu.memory_space<vmem>>, vector<5x32xf32>
    %125 = arith.addf %123, %124 : vector<5x32xf32>
    %c10 = arith.constant 10 : index
    %c0_69 = arith.constant 0 : index
    %126 = vector.load %arg10[%c10, %c0_69] : memref<50x32xf32, #tpu.memory_space<vmem>>, vector<5x32xf32>
    tpu.vector_store %arg10[%c10, %c0_69], %125 {strides = array<i32>} : memref<50x32xf32, #tpu.memory_space<vmem>>, vector<5x32xf32>,
    %c21_70 = arith.constant 21 : index
    %c0_71 = arith.constant 0 : index
    %127 = vector.load %arg9[%c21_70, %c0_71] : memref<338x512xf32, #tpu.memory_space<vmem>>, vector<5x32xf32>
    %c116_72 = arith.constant 116 : index
    %c32_73 = arith.constant 32 : index
    %128 = vector.load %arg9[%c116_72, %c32_73] : memref<338x512xf32, #tpu.memory_space<vmem>>, vector<5x32xf32>
    %129 = arith.addf %127, %128 : vector<5x32xf32>
    %c22_74 = arith.constant 22 : index
    %c64_75 = arith.constant 64 : index
    %130 = vector.load %arg9[%c22_74, %c64_75] : memref<338x512xf32, #tpu.memory_space<vmem>>, vector<5x32xf32>
    %131 = arith.addf %129, %130 : vector<5x32xf32>
    %c117_76 = arith.constant 117 : index
    %c96_77 = arith.constant 96 : index
    %132 = vector.load %arg9[%c117_76, %c96_77] : memref<338x512xf32, #tpu.memory_space<vmem>>, vector<5x32xf32>
    %133 = arith.addf %131, %132 : vector<5x32xf32>
    %c203_78 = arith.constant 203 : index
    %c128_79 = arith.constant 128 : index
    %134 = vector.load %arg9[%c203_78, %c128_79] : memref<338x512xf32, #tpu.memory_space<vmem>>, vector<5x32xf32>
    %135 = arith.addf %133, %134 : vector<5x32xf32>
    %c284_80 = arith.constant 284 : index
    %c160_81 = arith.constant 160 : index
    %136 = vector.load %arg9[%c284_80, %c160_81] : memref<338x512xf32, #tpu.memory_space<vmem>>, vector<5x32xf32>
    %137 = arith.addf %135, %136 : vector<5x32xf32>
    %c204_82 = arith.constant 204 : index
    %c192_83 = arith.constant 192 : index
    %138 = vector.load %arg9[%c204_82, %c192_83] : memref<338x512xf32, #tpu.memory_space<vmem>>, vector<5x32xf32>
    %139 = arith.addf %137, %138 : vector<5x32xf32>
    %c285_84 = arith.constant 285 : index
    %c224_85 = arith.constant 224 : index
    %140 = vector.load %arg9[%c285_84, %c224_85] : memref<338x512xf32, #tpu.memory_space<vmem>>, vector<5x32xf32>
    %141 = arith.addf %139, %140 : vector<5x32xf32>
    %c28 = arith.constant 28 : index
    %c256_86 = arith.constant 256 : index
    %142 = vector.load %arg9[%c28, %c256_86] : memref<338x512xf32, #tpu.memory_space<vmem>>, vector<5x32xf32>
    %143 = arith.addf %141, %142 : vector<5x32xf32>
    %c122 = arith.constant 122 : index
    %c288_87 = arith.constant 288 : index
    %144 = vector.load %arg9[%c122, %c288_87] : memref<338x512xf32, #tpu.memory_space<vmem>>, vector<5x32xf32>
    %145 = arith.addf %143, %144 : vector<5x32xf32>
    %c29 = arith.constant 29 : index
    %c320_88 = arith.constant 320 : index
    %146 = vector.load %arg9[%c29, %c320_88] : memref<338x512xf32, #tpu.memory_space<vmem>>, vector<5x32xf32>
    %147 = arith.addf %145, %146 : vector<5x32xf32>
    %c123 = arith.constant 123 : index
    %c352_89 = arith.constant 352 : index
    %148 = vector.load %arg9[%c123, %c352_89] : memref<338x512xf32, #tpu.memory_space<vmem>>, vector<5x32xf32>
    %149 = arith.addf %147, %148 : vector<5x32xf32>
    %c210 = arith.constant 210 : index
    %c384_90 = arith.constant 384 : index
    %150 = vector.load %arg9[%c210, %c384_90] : memref<338x512xf32, #tpu.memory_space<vmem>>, vector<5x32xf32>
    %151 = arith.addf %149, %150 : vector<5x32xf32>
    %c290 = arith.constant 290 : index
    %c416_91 = arith.constant 416 : index
    %152 = vector.load %arg9[%c290, %c416_91] : memref<338x512xf32, #tpu.memory_space<vmem>>, vector<5x32xf32>
    %153 = arith.addf %151, %152 : vector<5x32xf32>
    %c211 = arith.constant 211 : index
    %c448_92 = arith.constant 448 : index
    %154 = vector.load %arg9[%c211, %c448_92] : memref<338x512xf32, #tpu.memory_space<vmem>>, vector<5x32xf32>
    %155 = arith.addf %153, %154 : vector<5x32xf32>
    %c291 = arith.constant 291 : index
    %c480_93 = arith.constant 480 : index
    %156 = vector.load %arg9[%c291, %c480_93] : memref<338x512xf32, #tpu.memory_space<vmem>>, vector<5x32xf32>
    %157 = arith.addf %155, %156 : vector<5x32xf32>
    %c15_94 = arith.constant 15 : index
    %c0_95 = arith.constant 0 : index
    %158 = vector.load %arg10[%c15_94, %c0_95] : memref<50x32xf32, #tpu.memory_space<vmem>>, vector<5x32xf32>
    tpu.vector_store %arg10[%c15_94, %c0_95], %157 {strides = array<i32>} : memref<50x32xf32, #tpu.memory_space<vmem>>, vector<5x32xf32>,
    %c28_96 = arith.constant 28 : index
    %c0_97 = arith.constant 0 : index
    %159 = vector.load %arg9[%c28_96, %c0_97] : memref<338x512xf32, #tpu.memory_space<vmem>>, vector<5x32xf32>
    %c122_98 = arith.constant 122 : index
    %c32_99 = arith.constant 32 : index
    %160 = vector.load %arg9[%c122_98, %c32_99] : memref<338x512xf32, #tpu.memory_space<vmem>>, vector<5x32xf32>
    %161 = arith.addf %159, %160 : vector<5x32xf32>
    %c29_100 = arith.constant 29 : index
    %c64_101 = arith.constant 64 : index
    %162 = vector.load %arg9[%c29_100, %c64_101] : memref<338x512xf32, #tpu.memory_space<vmem>>, vector<5x32xf32>
    %163 = arith.addf %161, %162 : vector<5x32xf32>
    %c123_102 = arith.constant 123 : index
    %c96_103 = arith.constant 96 : index
    %164 = vector.load %arg9[%c123_102, %c96_103] : memref<338x512xf32, #tpu.memory_space<vmem>>, vector<5x32xf32>
    %165 = arith.addf %163, %164 : vector<5x32xf32>
    %c210_104 = arith.constant 210 : index
    %c128_105 = arith.constant 128 : index
    %166 = vector.load %arg9[%c210_104, %c128_105] : memref<338x512xf32, #tpu.memory_space<vmem>>, vector<5x32xf32>
    %167 = arith.addf %165, %166 : vector<5x32xf32>
    %c290_106 = arith.constant 290 : index
    %c160_107 = arith.constant 160 : index
    %168 = vector.load %arg9[%c290_106, %c160_107] : memref<338x512xf32, #tpu.memory_space<vmem>>, vector<5x32xf32>
    %169 = arith.addf %167, %168 : vector<5x32xf32>
    %c211_108 = arith.constant 211 : index
    %c192_109 = arith.constant 192 : index
    %170 = vector.load %arg9[%c211_108, %c192_109] : memref<338x512xf32, #tpu.memory_space<vmem>>, vector<5x32xf32>
    %171 = arith.addf %169, %170 : vector<5x32xf32>
    %c291_110 = arith.constant 291 : index
    %c224_111 = arith.constant 224 : index
    %172 = vector.load %arg9[%c291_110, %c224_111] : memref<338x512xf32, #tpu.memory_space<vmem>>, vector<5x32xf32>
    %173 = arith.addf %171, %172 : vector<5x32xf32>
    %c35 = arith.constant 35 : index
    %c256_112 = arith.constant 256 : index
    %174 = vector.load %arg9[%c35, %c256_112] : memref<338x512xf32, #tpu.memory_space<vmem>>, vector<5x32xf32>
    %175 = arith.addf %173, %174 : vector<5x32xf32>
    %c128_113 = arith.constant 128 : index
    %c288_114 = arith.constant 288 : index
    %176 = vector.load %arg9[%c128_113, %c288_114] : memref<338x512xf32, #tpu.memory_space<vmem>>, vector<5x32xf32>
    %177 = arith.addf %175, %176 : vector<5x32xf32>
    %c36 = arith.constant 36 : index
    %c320_115 = arith.constant 320 : index
    %178 = vector.load %arg9[%c36, %c320_115] : memref<338x512xf32, #tpu.memory_space<vmem>>, vector<5x32xf32>
    %179 = arith.addf %177, %178 : vector<5x32xf32>
    %c129 = arith.constant 129 : index
    %c352_116 = arith.constant 352 : index
    %180 = vector.load %arg9[%c129, %c352_116] : memref<338x512xf32, #tpu.memory_space<vmem>>, vector<5x32xf32>
    %181 = arith.addf %179, %180 : vector<5x32xf32>
    %c217 = arith.constant 217 : index
    %c384_117 = arith.constant 384 : index
    %182 = vector.load %arg9[%c217, %c384_117] : memref<338x512xf32, #tpu.memory_space<vmem>>, vector<5x32xf32>
    %183 = arith.addf %181, %182 : vector<5x32xf32>
    %c296 = arith.constant 296 : index
    %c416_118 = arith.constant 416 : index
    %184 = vector.load %arg9[%c296, %c416_118] : memref<338x512xf32, #tpu.memory_space<vmem>>, vector<5x32xf32>
    %185 = arith.addf %183, %184 : vector<5x32xf32>
    %c218 = arith.constant 218 : index
    %c448_119 = arith.constant 448 : index
    %186 = vector.load %arg9[%c218, %c448_119] : memref<338x512xf32, #tpu.memory_space<vmem>>, vector<5x32xf32>
    %187 = arith.addf %185, %186 : vector<5x32xf32>
    %c297 = arith.constant 297 : index
    %c480_120 = arith.constant 480 : index
    %188 = vector.load %arg9[%c297, %c480_120] : memref<338x512xf32, #tpu.memory_space<vmem>>, vector<5x32xf32>
    %189 = arith.addf %187, %188 : vector<5x32xf32>
    %c20 = arith.constant 20 : index
    %c0_121 = arith.constant 0 : index
    %190 = vector.load %arg10[%c20, %c0_121] : memref<50x32xf32, #tpu.memory_space<vmem>>, vector<5x32xf32>
    tpu.vector_store %arg10[%c20, %c0_121], %189 {strides = array<i32>} : memref<50x32xf32, #tpu.memory_space<vmem>>, vector<5x32xf32>,
    %c49 = arith.constant 49 : index
    %c0_122 = arith.constant 0 : index
    %191 = vector.load %arg9[%c49, %c0_122] : memref<338x512xf32, #tpu.memory_space<vmem>>, vector<5x32xf32>
    %c140 = arith.constant 140 : index
    %c32_123 = arith.constant 32 : index
    %192 = vector.load %arg9[%c140, %c32_123] : memref<338x512xf32, #tpu.memory_space<vmem>>, vector<5x32xf32>
    %193 = arith.addf %191, %192 : vector<5x32xf32>
    %c50 = arith.constant 50 : index
    %c64_124 = arith.constant 64 : index
    %194 = vector.load %arg9[%c50, %c64_124] : memref<338x512xf32, #tpu.memory_space<vmem>>, vector<5x32xf32>
    %195 = arith.addf %193, %194 : vector<5x32xf32>
    %c141 = arith.constant 141 : index
    %c96_125 = arith.constant 96 : index
    %196 = vector.load %arg9[%c141, %c96_125] : memref<338x512xf32, #tpu.memory_space<vmem>>, vector<5x32xf32>
    %197 = arith.addf %195, %196 : vector<5x32xf32>
    %c224_126 = arith.constant 224 : index
    %c128_127 = arith.constant 128 : index
    %198 = vector.load %arg9[%c224_126, %c128_127] : memref<338x512xf32, #tpu.memory_space<vmem>>, vector<5x32xf32>
    %199 = arith.addf %197, %198 : vector<5x32xf32>
    %c302 = arith.constant 302 : index
    %c160_128 = arith.constant 160 : index
    %200 = vector.load %arg9[%c302, %c160_128] : memref<338x512xf32, #tpu.memory_space<vmem>>, vector<5x32xf32>
    %201 = arith.addf %199, %200 : vector<5x32xf32>
    %c225 = arith.constant 225 : index
    %c192_129 = arith.constant 192 : index
    %202 = vector.load %arg9[%c225, %c192_129] : memref<338x512xf32, #tpu.memory_space<vmem>>, vector<5x32xf32>
    %203 = arith.addf %201, %202 : vector<5x32xf32>
    %c303 = arith.constant 303 : index
    %c224_130 = arith.constant 224 : index
    %204 = vector.load %arg9[%c303, %c224_130] : memref<338x512xf32, #tpu.memory_space<vmem>>, vector<5x32xf32>
    %205 = arith.addf %203, %204 : vector<5x32xf32>
    %c56 = arith.constant 56 : index
    %c256_131 = arith.constant 256 : index
    %206 = vector.load %arg9[%c56, %c256_131] : memref<338x512xf32, #tpu.memory_space<vmem>>, vector<5x32xf32>
    %207 = arith.addf %205, %206 : vector<5x32xf32>
    %c146 = arith.constant 146 : index
    %c288_132 = arith.constant 288 : index
    %208 = vector.load %arg9[%c146, %c288_132] : memref<338x512xf32, #tpu.memory_space<vmem>>, vector<5x32xf32>
    %209 = arith.addf %207, %208 : vector<5x32xf32>
    %c57 = arith.constant 57 : index
    %c320_133 = arith.constant 320 : index
    %210 = vector.load %arg9[%c57, %c320_133] : memref<338x512xf32, #tpu.memory_space<vmem>>, vector<5x32xf32>
    %211 = arith.addf %209, %210 : vector<5x32xf32>
    %c147 = arith.constant 147 : index
    %c352_134 = arith.constant 352 : index
    %212 = vector.load %arg9[%c147, %c352_134] : memref<338x512xf32, #tpu.memory_space<vmem>>, vector<5x32xf32>
    %213 = arith.addf %211, %212 : vector<5x32xf32>
    %c231 = arith.constant 231 : index
    %c384_135 = arith.constant 384 : index
    %214 = vector.load %arg9[%c231, %c384_135] : memref<338x512xf32, #tpu.memory_space<vmem>>, vector<5x32xf32>
    %215 = arith.addf %213, %214 : vector<5x32xf32>
    %c308 = arith.constant 308 : index
    %c416_136 = arith.constant 416 : index
    %216 = vector.load %arg9[%c308, %c416_136] : memref<338x512xf32, #tpu.memory_space<vmem>>, vector<5x32xf32>
    %217 = arith.addf %215, %216 : vector<5x32xf32>
    %c232 = arith.constant 232 : index
    %c448_137 = arith.constant 448 : index
    %218 = vector.load %arg9[%c232, %c448_137] : memref<338x512xf32, #tpu.memory_space<vmem>>, vector<5x32xf32>
    %219 = arith.addf %217, %218 : vector<5x32xf32>
    %c309 = arith.constant 309 : index
    %c480_138 = arith.constant 480 : index
    %220 = vector.load %arg9[%c309, %c480_138] : memref<338x512xf32, #tpu.memory_space<vmem>>, vector<5x32xf32>
    %221 = arith.addf %219, %220 : vector<5x32xf32>
    %c25 = arith.constant 25 : index
    %c0_139 = arith.constant 0 : index
    %222 = vector.load %arg10[%c25, %c0_139] : memref<50x32xf32, #tpu.memory_space<vmem>>, vector<5x32xf32>
    tpu.vector_store %arg10[%c25, %c0_139], %221 {strides = array<i32>} : memref<50x32xf32, #tpu.memory_space<vmem>>, vector<5x32xf32>,
    %c56_140 = arith.constant 56 : index
    %c0_141 = arith.constant 0 : index
    %223 = vector.load %arg9[%c56_140, %c0_141] : memref<338x512xf32, #tpu.memory_space<vmem>>, vector<5x32xf32>
    %c146_142 = arith.constant 146 : index
    %c32_143 = arith.constant 32 : index
    %224 = vector.load %arg9[%c146_142, %c32_143] : memref<338x512xf32, #tpu.memory_space<vmem>>, vector<5x32xf32>
    %225 = arith.addf %223, %224 : vector<5x32xf32>
    %c57_144 = arith.constant 57 : index
    %c64_145 = arith.constant 64 : index
    %226 = vector.load %arg9[%c57_144, %c64_145] : memref<338x512xf32, #tpu.memory_space<vmem>>, vector<5x32xf32>
    %227 = arith.addf %225, %226 : vector<5x32xf32>
    %c147_146 = arith.constant 147 : index
    %c96_147 = arith.constant 96 : index
    %228 = vector.load %arg9[%c147_146, %c96_147] : memref<338x512xf32, #tpu.memory_space<vmem>>, vector<5x32xf32>
    %229 = arith.addf %227, %228 : vector<5x32xf32>
    %c231_148 = arith.constant 231 : index
    %c128_149 = arith.constant 128 : index
    %230 = vector.load %arg9[%c231_148, %c128_149] : memref<338x512xf32, #tpu.memory_space<vmem>>, vector<5x32xf32>
    %231 = arith.addf %229, %230 : vector<5x32xf32>
    %c308_150 = arith.constant 308 : index
    %c160_151 = arith.constant 160 : index
    %232 = vector.load %arg9[%c308_150, %c160_151] : memref<338x512xf32, #tpu.memory_space<vmem>>, vector<5x32xf32>
    %233 = arith.addf %231, %232 : vector<5x32xf32>
    %c232_152 = arith.constant 232 : index
    %c192_153 = arith.constant 192 : index
    %234 = vector.load %arg9[%c232_152, %c192_153] : memref<338x512xf32, #tpu.memory_space<vmem>>, vector<5x32xf32>
    %235 = arith.addf %233, %234 : vector<5x32xf32>
    %c309_154 = arith.constant 309 : index
    %c224_155 = arith.constant 224 : index
    %236 = vector.load %arg9[%c309_154, %c224_155] : memref<338x512xf32, #tpu.memory_space<vmem>>, vector<5x32xf32>
    %237 = arith.addf %235, %236 : vector<5x32xf32>
    %c63 = arith.constant 63 : index
    %c256_156 = arith.constant 256 : index
    %238 = vector.load %arg9[%c63, %c256_156] : memref<338x512xf32, #tpu.memory_space<vmem>>, vector<5x32xf32>
    %239 = arith.addf %237, %238 : vector<5x32xf32>
    %c152 = arith.constant 152 : index
    %c288_157 = arith.constant 288 : index
    %240 = vector.load %arg9[%c152, %c288_157] : memref<338x512xf32, #tpu.memory_space<vmem>>, vector<5x32xf32>
    %241 = arith.addf %239, %240 : vector<5x32xf32>
    %c64_158 = arith.constant 64 : index
    %c320_159 = arith.constant 320 : index
    %242 = vector.load %arg9[%c64_158, %c320_159] : memref<338x512xf32, #tpu.memory_space<vmem>>, vector<5x32xf32>
    %243 = arith.addf %241, %242 : vector<5x32xf32>
    %c153 = arith.constant 153 : index
    %c352_160 = arith.constant 352 : index
    %244 = vector.load %arg9[%c153, %c352_160] : memref<338x512xf32, #tpu.memory_space<vmem>>, vector<5x32xf32>
    %245 = arith.addf %243, %244 : vector<5x32xf32>
    %c238 = arith.constant 238 : index
    %c384_161 = arith.constant 384 : index
    %246 = vector.load %arg9[%c238, %c384_161] : memref<338x512xf32, #tpu.memory_space<vmem>>, vector<5x32xf32>
    %247 = arith.addf %245, %246 : vector<5x32xf32>
    %c314 = arith.constant 314 : index
    %c416_162 = arith.constant 416 : index
    %248 = vector.load %arg9[%c314, %c416_162] : memref<338x512xf32, #tpu.memory_space<vmem>>, vector<5x32xf32>
    %249 = arith.addf %247, %248 : vector<5x32xf32>
    %c239 = arith.constant 239 : index
    %c448_163 = arith.constant 448 : index
    %250 = vector.load %arg9[%c239, %c448_163] : memref<338x512xf32, #tpu.memory_space<vmem>>, vector<5x32xf32>
    %251 = arith.addf %249, %250 : vector<5x32xf32>
    %c315 = arith.constant 315 : index
    %c480_164 = arith.constant 480 : index
    %252 = vector.load %arg9[%c315, %c480_164] : memref<338x512xf32, #tpu.memory_space<vmem>>, vector<5x32xf32>
    %253 = arith.addf %251, %252 : vector<5x32xf32>
    %c30 = arith.constant 30 : index
    %c0_165 = arith.constant 0 : index
    %254 = vector.load %arg10[%c30, %c0_165] : memref<50x32xf32, #tpu.memory_space<vmem>>, vector<5x32xf32>
    tpu.vector_store %arg10[%c30, %c0_165], %253 {strides = array<i32>} : memref<50x32xf32, #tpu.memory_space<vmem>>, vector<5x32xf32>,
    %c63_166 = arith.constant 63 : index
    %c0_167 = arith.constant 0 : index
    %255 = vector.load %arg9[%c63_166, %c0_167] : memref<338x512xf32, #tpu.memory_space<vmem>>, vector<5x32xf32>
    %c152_168 = arith.constant 152 : index
    %c32_169 = arith.constant 32 : index
    %256 = vector.load %arg9[%c152_168, %c32_169] : memref<338x512xf32, #tpu.memory_space<vmem>>, vector<5x32xf32>
    %257 = arith.addf %255, %256 : vector<5x32xf32>
    %c64_170 = arith.constant 64 : index
    %c64_171 = arith.constant 64 : index
    %258 = vector.load %arg9[%c64_170, %c64_171] : memref<338x512xf32, #tpu.memory_space<vmem>>, vector<5x32xf32>
    %259 = arith.addf %257, %258 : vector<5x32xf32>
    %c153_172 = arith.constant 153 : index
    %c96_173 = arith.constant 96 : index
    %260 = vector.load %arg9[%c153_172, %c96_173] : memref<338x512xf32, #tpu.memory_space<vmem>>, vector<5x32xf32>
    %261 = arith.addf %259, %260 : vector<5x32xf32>
    %c238_174 = arith.constant 238 : index
    %c128_175 = arith.constant 128 : index
    %262 = vector.load %arg9[%c238_174, %c128_175] : memref<338x512xf32, #tpu.memory_space<vmem>>, vector<5x32xf32>
    %263 = arith.addf %261, %262 : vector<5x32xf32>
    %c314_176 = arith.constant 314 : index
    %c160_177 = arith.constant 160 : index
    %264 = vector.load %arg9[%c314_176, %c160_177] : memref<338x512xf32, #tpu.memory_space<vmem>>, vector<5x32xf32>
    %265 = arith.addf %263, %264 : vector<5x32xf32>
    %c239_178 = arith.constant 239 : index
    %c192_179 = arith.constant 192 : index
    %266 = vector.load %arg9[%c239_178, %c192_179] : memref<338x512xf32, #tpu.memory_space<vmem>>, vector<5x32xf32>
    %267 = arith.addf %265, %266 : vector<5x32xf32>
    %c315_180 = arith.constant 315 : index
    %c224_181 = arith.constant 224 : index
    %268 = vector.load %arg9[%c315_180, %c224_181] : memref<338x512xf32, #tpu.memory_space<vmem>>, vector<5x32xf32>
    %269 = arith.addf %267, %268 : vector<5x32xf32>
    %c70 = arith.constant 70 : index
    %c256_182 = arith.constant 256 : index
    %270 = vector.load %arg9[%c70, %c256_182] : memref<338x512xf32, #tpu.memory_space<vmem>>, vector<5x32xf32>
    %271 = arith.addf %269, %270 : vector<5x32xf32>
    %c158 = arith.constant 158 : index
    %c288_183 = arith.constant 288 : index
    %272 = vector.load %arg9[%c158, %c288_183] : memref<338x512xf32, #tpu.memory_space<vmem>>, vector<5x32xf32>
    %273 = arith.addf %271, %272 : vector<5x32xf32>
    %c71 = arith.constant 71 : index
    %c320_184 = arith.constant 320 : index
    %274 = vector.load %arg9[%c71, %c320_184] : memref<338x512xf32, #tpu.memory_space<vmem>>, vector<5x32xf32>
    %275 = arith.addf %273, %274 : vector<5x32xf32>
    %c159 = arith.constant 159 : index
    %c352_185 = arith.constant 352 : index
    %276 = vector.load %arg9[%c159, %c352_185] : memref<338x512xf32, #tpu.memory_space<vmem>>, vector<5x32xf32>
    %277 = arith.addf %275, %276 : vector<5x32xf32>
    %c245 = arith.constant 245 : index
    %c384_186 = arith.constant 384 : index
    %278 = vector.load %arg9[%c245, %c384_186] : memref<338x512xf32, #tpu.memory_space<vmem>>, vector<5x32xf32>
    %279 = arith.addf %277, %278 : vector<5x32xf32>
    %c320_187 = arith.constant 320 : index
    %c416_188 = arith.constant 416 : index
    %280 = vector.load %arg9[%c320_187, %c416_188] : memref<338x512xf32, #tpu.memory_space<vmem>>, vector<5x32xf32>
    %281 = arith.addf %279, %280 : vector<5x32xf32>
    %c246 = arith.constant 246 : index
    %c448_189 = arith.constant 448 : index
    %282 = vector.load %arg9[%c246, %c448_189] : memref<338x512xf32, #tpu.memory_space<vmem>>, vector<5x32xf32>
    %283 = arith.addf %281, %282 : vector<5x32xf32>
    %c321 = arith.constant 321 : index
    %c480_190 = arith.constant 480 : index
    %284 = vector.load %arg9[%c321, %c480_190] : memref<338x512xf32, #tpu.memory_space<vmem>>, vector<5x32xf32>
    %285 = arith.addf %283, %284 : vector<5x32xf32>
    %c35_191 = arith.constant 35 : index
    %c0_192 = arith.constant 0 : index
    %286 = vector.load %arg10[%c35_191, %c0_192] : memref<50x32xf32, #tpu.memory_space<vmem>>, vector<5x32xf32>
    tpu.vector_store %arg10[%c35_191, %c0_192], %285 {strides = array<i32>} : memref<50x32xf32, #tpu.memory_space<vmem>>, vector<5x32xf32>,
    %c70_193 = arith.constant 70 : index
    %c0_194 = arith.constant 0 : index
    %287 = vector.load %arg9[%c70_193, %c0_194] : memref<338x512xf32, #tpu.memory_space<vmem>>, vector<5x32xf32>
    %c158_195 = arith.constant 158 : index
    %c32_196 = arith.constant 32 : index
    %288 = vector.load %arg9[%c158_195, %c32_196] : memref<338x512xf32, #tpu.memory_space<vmem>>, vector<5x32xf32>
    %289 = arith.addf %287, %288 : vector<5x32xf32>
    %c71_197 = arith.constant 71 : index
    %c64_198 = arith.constant 64 : index
    %290 = vector.load %arg9[%c71_197, %c64_198] : memref<338x512xf32, #tpu.memory_space<vmem>>, vector<5x32xf32>
    %291 = arith.addf %289, %290 : vector<5x32xf32>
    %c159_199 = arith.constant 159 : index
    %c96_200 = arith.constant 96 : index
    %292 = vector.load %arg9[%c159_199, %c96_200] : memref<338x512xf32, #tpu.memory_space<vmem>>, vector<5x32xf32>
    %293 = arith.addf %291, %292 : vector<5x32xf32>
    %c245_201 = arith.constant 245 : index
    %c128_202 = arith.constant 128 : index
    %294 = vector.load %arg9[%c245_201, %c128_202] : memref<338x512xf32, #tpu.memory_space<vmem>>, vector<5x32xf32>
    %295 = arith.addf %293, %294 : vector<5x32xf32>
    %c320_203 = arith.constant 320 : index
    %c160_204 = arith.constant 160 : index
    %296 = vector.load %arg9[%c320_203, %c160_204] : memref<338x512xf32, #tpu.memory_space<vmem>>, vector<5x32xf32>
    %297 = arith.addf %295, %296 : vector<5x32xf32>
    %c246_205 = arith.constant 246 : index
    %c192_206 = arith.constant 192 : index
    %298 = vector.load %arg9[%c246_205, %c192_206] : memref<338x512xf32, #tpu.memory_space<vmem>>, vector<5x32xf32>
    %299 = arith.addf %297, %298 : vector<5x32xf32>
    %c321_207 = arith.constant 321 : index
    %c224_208 = arith.constant 224 : index
    %300 = vector.load %arg9[%c321_207, %c224_208] : memref<338x512xf32, #tpu.memory_space<vmem>>, vector<5x32xf32>
    %301 = arith.addf %299, %300 : vector<5x32xf32>
    %c77 = arith.constant 77 : index
    %c256_209 = arith.constant 256 : index
    %302 = vector.load %arg9[%c77, %c256_209] : memref<338x512xf32, #tpu.memory_space<vmem>>, vector<5x32xf32>
    %303 = arith.addf %301, %302 : vector<5x32xf32>
    %c164 = arith.constant 164 : index
    %c288_210 = arith.constant 288 : index
    %304 = vector.load %arg9[%c164, %c288_210] : memref<338x512xf32, #tpu.memory_space<vmem>>, vector<5x32xf32>
    %305 = arith.addf %303, %304 : vector<5x32xf32>
    %c78 = arith.constant 78 : index
    %c320_211 = arith.constant 320 : index
    %306 = vector.load %arg9[%c78, %c320_211] : memref<338x512xf32, #tpu.memory_space<vmem>>, vector<5x32xf32>
    %307 = arith.addf %305, %306 : vector<5x32xf32>
    %c165 = arith.constant 165 : index
    %c352_212 = arith.constant 352 : index
    %308 = vector.load %arg9[%c165, %c352_212] : memref<338x512xf32, #tpu.memory_space<vmem>>, vector<5x32xf32>
    %309 = arith.addf %307, %308 : vector<5x32xf32>
    %c252 = arith.constant 252 : index
    %c384_213 = arith.constant 384 : index
    %310 = vector.load %arg9[%c252, %c384_213] : memref<338x512xf32, #tpu.memory_space<vmem>>, vector<5x32xf32>
    %311 = arith.addf %309, %310 : vector<5x32xf32>
    %c326 = arith.constant 326 : index
    %c416_214 = arith.constant 416 : index
    %312 = vector.load %arg9[%c326, %c416_214] : memref<338x512xf32, #tpu.memory_space<vmem>>, vector<5x32xf32>
    %313 = arith.addf %311, %312 : vector<5x32xf32>
    %c253 = arith.constant 253 : index
    %c448_215 = arith.constant 448 : index
    %314 = vector.load %arg9[%c253, %c448_215] : memref<338x512xf32, #tpu.memory_space<vmem>>, vector<5x32xf32>
    %315 = arith.addf %313, %314 : vector<5x32xf32>
    %c327 = arith.constant 327 : index
    %c480_216 = arith.constant 480 : index
    %316 = vector.load %arg9[%c327, %c480_216] : memref<338x512xf32, #tpu.memory_space<vmem>>, vector<5x32xf32>
    %317 = arith.addf %315, %316 : vector<5x32xf32>
    %c40 = arith.constant 40 : index
    %c0_217 = arith.constant 0 : index
    %318 = vector.load %arg10[%c40, %c0_217] : memref<50x32xf32, #tpu.memory_space<vmem>>, vector<5x32xf32>
    tpu.vector_store %arg10[%c40, %c0_217], %317 {strides = array<i32>} : memref<50x32xf32, #tpu.memory_space<vmem>>, vector<5x32xf32>,
    %c77_218 = arith.constant 77 : index
    %c0_219 = arith.constant 0 : index
    %319 = vector.load %arg9[%c77_218, %c0_219] : memref<338x512xf32, #tpu.memory_space<vmem>>, vector<5x32xf32>
    %c164_220 = arith.constant 164 : index
    %c32_221 = arith.constant 32 : index
    %320 = vector.load %arg9[%c164_220, %c32_221] : memref<338x512xf32, #tpu.memory_space<vmem>>, vector<5x32xf32>
    %321 = arith.addf %319, %320 : vector<5x32xf32>
    %c78_222 = arith.constant 78 : index
    %c64_223 = arith.constant 64 : index
    %322 = vector.load %arg9[%c78_222, %c64_223] : memref<338x512xf32, #tpu.memory_space<vmem>>, vector<5x32xf32>
    %323 = arith.addf %321, %322 : vector<5x32xf32>
    %c165_224 = arith.constant 165 : index
    %c96_225 = arith.constant 96 : index
    %324 = vector.load %arg9[%c165_224, %c96_225] : memref<338x512xf32, #tpu.memory_space<vmem>>, vector<5x32xf32>
    %325 = arith.addf %323, %324 : vector<5x32xf32>
    %c252_226 = arith.constant 252 : index
    %c128_227 = arith.constant 128 : index
    %326 = vector.load %arg9[%c252_226, %c128_227] : memref<338x512xf32, #tpu.memory_space<vmem>>, vector<5x32xf32>
    %327 = arith.addf %325, %326 : vector<5x32xf32>
    %c326_228 = arith.constant 326 : index
    %c160_229 = arith.constant 160 : index
    %328 = vector.load %arg9[%c326_228, %c160_229] : memref<338x512xf32, #tpu.memory_space<vmem>>, vector<5x32xf32>
    %329 = arith.addf %327, %328 : vector<5x32xf32>
    %c253_230 = arith.constant 253 : index
    %c192_231 = arith.constant 192 : index
    %330 = vector.load %arg9[%c253_230, %c192_231] : memref<338x512xf32, #tpu.memory_space<vmem>>, vector<5x32xf32>
    %331 = arith.addf %329, %330 : vector<5x32xf32>
    %c327_232 = arith.constant 327 : index
    %c224_233 = arith.constant 224 : index
    %332 = vector.load %arg9[%c327_232, %c224_233] : memref<338x512xf32, #tpu.memory_space<vmem>>, vector<5x32xf32>
    %333 = arith.addf %331, %332 : vector<5x32xf32>
    %c84 = arith.constant 84 : index
    %c256_234 = arith.constant 256 : index
    %334 = vector.load %arg9[%c84, %c256_234] : memref<338x512xf32, #tpu.memory_space<vmem>>, vector<5x32xf32>
    %335 = arith.addf %333, %334 : vector<5x32xf32>
    %c170 = arith.constant 170 : index
    %c288_235 = arith.constant 288 : index
    %336 = vector.load %arg9[%c170, %c288_235] : memref<338x512xf32, #tpu.memory_space<vmem>>, vector<5x32xf32>
    %337 = arith.addf %335, %336 : vector<5x32xf32>
    %c85 = arith.constant 85 : index
    %c320_236 = arith.constant 320 : index
    %338 = vector.load %arg9[%c85, %c320_236] : memref<338x512xf32, #tpu.memory_space<vmem>>, vector<5x32xf32>
    %339 = arith.addf %337, %338 : vector<5x32xf32>
    %c171 = arith.constant 171 : index
    %c352_237 = arith.constant 352 : index
    %340 = vector.load %arg9[%c171, %c352_237] : memref<338x512xf32, #tpu.memory_space<vmem>>, vector<5x32xf32>
    %341 = arith.addf %339, %340 : vector<5x32xf32>
    %c259 = arith.constant 259 : index
    %c384_238 = arith.constant 384 : index
    %342 = vector.load %arg9[%c259, %c384_238] : memref<338x512xf32, #tpu.memory_space<vmem>>, vector<5x32xf32>
    %343 = arith.addf %341, %342 : vector<5x32xf32>
    %c332 = arith.constant 332 : index
    %c416_239 = arith.constant 416 : index
    %344 = vector.load %arg9[%c332, %c416_239] : memref<338x512xf32, #tpu.memory_space<vmem>>, vector<5x32xf32>
    %345 = arith.addf %343, %344 : vector<5x32xf32>
    %c260 = arith.constant 260 : index
    %c448_240 = arith.constant 448 : index
    %346 = vector.load %arg9[%c260, %c448_240] : memref<338x512xf32, #tpu.memory_space<vmem>>, vector<5x32xf32>
    %347 = arith.addf %345, %346 : vector<5x32xf32>
    %c333 = arith.constant 333 : index
    %c480_241 = arith.constant 480 : index
    %348 = vector.load %arg9[%c333, %c480_241] : memref<338x512xf32, #tpu.memory_space<vmem>>, vector<5x32xf32>
    %349 = arith.addf %347, %348 : vector<5x32xf32>
    %c45 = arith.constant 45 : index
    %c0_242 = arith.constant 0 : index
    %350 = vector.load %arg10[%c45, %c0_242] : memref<50x32xf32, #tpu.memory_space<vmem>>, vector<5x32xf32>
    tpu.vector_store %arg10[%c45, %c0_242], %349 {strides = array<i32>} : memref<50x32xf32, #tpu.memory_space<vmem>>, vector<5x32xf32>,
    %c0_243 = arith.constant 0 : index
    %c0_244 = arith.constant 0 : index
    %351 = vector.load %arg10[%c0_243, %c0_244] : memref<50x32xf32, #tpu.memory_space<vmem>>, vector<50x32xf32>
    %c0_245 = arith.constant 0 : index
    %c0_246 = arith.constant 0 : index
    %352 = vector.load %arg5[%c0_245, %c0_246] : memref<1x32xf32, #tpu.memory_space<vmem>>, vector<1x32xf32>
    %353 = vector.broadcast %352 : vector<1x32xf32> to vector<50x32xf32>
    %354 = arith.addf %351, %353 : vector<50x32xf32>
    %cst_247 = arith.constant dense<0.000000e+00> : vector<32xf32>
    %355 = vector.multi_reduction <add>, %354, %cst_247 [0] : vector<50x32xf32> to vector<32xf32>
    %356 = vector.shape_cast %355 : vector<32xf32> to vector<1x32xf32>
    %357 = arith.mulf %354, %354 : vector<50x32xf32>
    %cst_248 = arith.constant dense<0.000000e+00> : vector<32xf32>
    %358 = vector.multi_reduction <add>, %357, %cst_248 [0] : vector<50x32xf32> to vector<32xf32>
    %359 = vector.shape_cast %358 : vector<32xf32> to vector<1x32xf32>
    %cst_249 = arith.constant 2.000000e-02 : f32
    %360 = vector.broadcast %cst_249 : f32 to vector<1x32xf32>
    %361 = arith.mulf %356, %360 : vector<1x32xf32>
    %cst_250 = arith.constant 2.000000e-02 : f32
    %362 = vector.broadcast %cst_250 : f32 to vector<1x32xf32>
    %363 = arith.mulf %359, %362 : vector<1x32xf32>
    %364 = arith.mulf %361, %361 : vector<1x32xf32>
    %365 = arith.subf %363, %364 : vector<1x32xf32>
    %366 = vector.broadcast %361 : vector<1x32xf32> to vector<50x32xf32>
    %367 = arith.subf %354, %366 : vector<50x32xf32>
    %cst_251 = arith.constant 9.99999974E-6 : f32
    %368 = vector.broadcast %cst_251 : f32 to vector<1x32xf32>
    %369 = arith.addf %365, %368 : vector<1x32xf32>
    %370 = math.rsqrt %369 : vector<1x32xf32>
    %371 = vector.broadcast %370 : vector<1x32xf32> to vector<50x32xf32>
    %372 = arith.mulf %367, %371 : vector<50x32xf32>
    %cst_252 = arith.constant 2.000000e-01 : f32
    %373 = vector.broadcast %cst_252 : f32 to vector<50x32xf32>
    %374 = arith.mulf %373, %372 : vector<50x32xf32>
    %375 = arith.maximumf %372, %374 : vector<50x32xf32>
    %c0_253 = arith.constant 0 : index
    %c0_254 = arith.constant 0 : index
    %376 = vector.load %arg11[%c0_253, %c0_254] : memref<50x32xf32, #tpu.memory_space<vmem>>, vector<50x32xf32>
    tpu.vector_store %arg11[%c0_253, %c0_254], %375 {strides = array<i32>} : memref<50x32xf32, #tpu.memory_space<vmem>>, vector<50x32xf32>,
    %c0_255 = arith.constant 0 : index
    %c0_256 = arith.constant 0 : index
    %377 = vector.load %arg11[%c0_255, %c0_256] : memref<50x32xf32, #tpu.memory_space<vmem>>, vector<1x32xf32>
    %c0_257 = arith.constant 0 : index
    %c0_258 = arith.constant 0 : index
    %378 = vector.load %arg12[%c0_257, %c0_258] : memref<2x512xf32, #tpu.memory_space<vmem>>, vector<1x32xf32>
    tpu.vector_store %arg12[%c0_257, %c0_258], %377 {strides = array<i32>} : memref<2x512xf32, #tpu.memory_space<vmem>>, vector<1x32xf32>,
    %c1_259 = arith.constant 1 : index
    %c0_260 = arith.constant 0 : index
    %379 = vector.load %arg11[%c1_259, %c0_260] : memref<50x32xf32, #tpu.memory_space<vmem>>, vector<1x32xf32>
    %c0_261 = arith.constant 0 : index
    %c32_262 = arith.constant 32 : index
    %380 = vector.load %arg12[%c0_261, %c32_262] : memref<2x512xf32, #tpu.memory_space<vmem>>, vector<1x32xf32>
    tpu.vector_store %arg12[%c0_261, %c32_262], %379 {strides = array<i32>} : memref<2x512xf32, #tpu.memory_space<vmem>>, vector<1x32xf32>,
    %c2 = arith.constant 2 : index
    %c0_263 = arith.constant 0 : index
    %381 = vector.load %arg11[%c2, %c0_263] : memref<50x32xf32, #tpu.memory_space<vmem>>, vector<1x32xf32>
    %c0_264 = arith.constant 0 : index
    %c64_265 = arith.constant 64 : index
    %382 = vector.load %arg12[%c0_264, %c64_265] : memref<2x512xf32, #tpu.memory_space<vmem>>, vector<1x32xf32>
    tpu.vector_store %arg12[%c0_264, %c64_265], %381 {strides = array<i32>} : memref<2x512xf32, #tpu.memory_space<vmem>>, vector<1x32xf32>,
    %c3 = arith.constant 3 : index
    %c0_266 = arith.constant 0 : index
    %383 = vector.load %arg11[%c3, %c0_266] : memref<50x32xf32, #tpu.memory_space<vmem>>, vector<1x32xf32>
    %c0_267 = arith.constant 0 : index
    %c96_268 = arith.constant 96 : index
    %384 = vector.load %arg12[%c0_267, %c96_268] : memref<2x512xf32, #tpu.memory_space<vmem>>, vector<1x32xf32>
    tpu.vector_store %arg12[%c0_267, %c96_268], %383 {strides = array<i32>} : memref<2x512xf32, #tpu.memory_space<vmem>>, vector<1x32xf32>,
    %c5_269 = arith.constant 5 : index
    %c0_270 = arith.constant 0 : index
    %385 = vector.load %arg11[%c5_269, %c0_270] : memref<50x32xf32, #tpu.memory_space<vmem>>, vector<1x32xf32>
    %c0_271 = arith.constant 0 : index
    %c128_272 = arith.constant 128 : index
    %386 = vector.load %arg12[%c0_271, %c128_272] : memref<2x512xf32, #tpu.memory_space<vmem>>, vector<1x32xf32>
    tpu.vector_store %arg12[%c0_271, %c128_272], %385 {strides = array<i32>} : memref<2x512xf32, #tpu.memory_space<vmem>>, vector<1x32xf32>,
    %c6 = arith.constant 6 : index
    %c0_273 = arith.constant 0 : index
    %387 = vector.load %arg11[%c6, %c0_273] : memref<50x32xf32, #tpu.memory_space<vmem>>, vector<1x32xf32>
    %c0_274 = arith.constant 0 : index
    %c160_275 = arith.constant 160 : index
    %388 = vector.load %arg12[%c0_274, %c160_275] : memref<2x512xf32, #tpu.memory_space<vmem>>, vector<1x32xf32>
    tpu.vector_store %arg12[%c0_274, %c160_275], %387 {strides = array<i32>} : memref<2x512xf32, #tpu.memory_space<vmem>>, vector<1x32xf32>,
    %c7_276 = arith.constant 7 : index
    %c0_277 = arith.constant 0 : index
    %389 = vector.load %arg11[%c7_276, %c0_277] : memref<50x32xf32, #tpu.memory_space<vmem>>, vector<1x32xf32>
    %c0_278 = arith.constant 0 : index
    %c192_279 = arith.constant 192 : index
    %390 = vector.load %arg12[%c0_278, %c192_279] : memref<2x512xf32, #tpu.memory_space<vmem>>, vector<1x32xf32>
    tpu.vector_store %arg12[%c0_278, %c192_279], %389 {strides = array<i32>} : memref<2x512xf32, #tpu.memory_space<vmem>>, vector<1x32xf32>,
    %c8_280 = arith.constant 8 : index
    %c0_281 = arith.constant 0 : index
    %391 = vector.load %arg11[%c8_280, %c0_281] : memref<50x32xf32, #tpu.memory_space<vmem>>, vector<1x32xf32>
    %c0_282 = arith.constant 0 : index
    %c224_283 = arith.constant 224 : index
    %392 = vector.load %arg12[%c0_282, %c224_283] : memref<2x512xf32, #tpu.memory_space<vmem>>, vector<1x32xf32>
    tpu.vector_store %arg12[%c0_282, %c224_283], %391 {strides = array<i32>} : memref<2x512xf32, #tpu.memory_space<vmem>>, vector<1x32xf32>,
    %c10_284 = arith.constant 10 : index
    %c0_285 = arith.constant 0 : index
    %393 = vector.load %arg11[%c10_284, %c0_285] : memref<50x32xf32, #tpu.memory_space<vmem>>, vector<1x32xf32>
    %c0_286 = arith.constant 0 : index
    %c256_287 = arith.constant 256 : index
    %394 = vector.load %arg12[%c0_286, %c256_287] : memref<2x512xf32, #tpu.memory_space<vmem>>, vector<1x32xf32>
    tpu.vector_store %arg12[%c0_286, %c256_287], %393 {strides = array<i32>} : memref<2x512xf32, #tpu.memory_space<vmem>>, vector<1x32xf32>,
    %c11 = arith.constant 11 : index
    %c0_288 = arith.constant 0 : index
    %395 = vector.load %arg11[%c11, %c0_288] : memref<50x32xf32, #tpu.memory_space<vmem>>, vector<1x32xf32>
    %c0_289 = arith.constant 0 : index
    %c288_290 = arith.constant 288 : index
    %396 = vector.load %arg12[%c0_289, %c288_290] : memref<2x512xf32, #tpu.memory_space<vmem>>, vector<1x32xf32>
    tpu.vector_store %arg12[%c0_289, %c288_290], %395 {strides = array<i32>} : memref<2x512xf32, #tpu.memory_space<vmem>>, vector<1x32xf32>,
    %c12 = arith.constant 12 : index
    %c0_291 = arith.constant 0 : index
    %397 = vector.load %arg11[%c12, %c0_291] : memref<50x32xf32, #tpu.memory_space<vmem>>, vector<1x32xf32>
    %c0_292 = arith.constant 0 : index
    %c320_293 = arith.constant 320 : index
    %398 = vector.load %arg12[%c0_292, %c320_293] : memref<2x512xf32, #tpu.memory_space<vmem>>, vector<1x32xf32>
    tpu.vector_store %arg12[%c0_292, %c320_293], %397 {strides = array<i32>} : memref<2x512xf32, #tpu.memory_space<vmem>>, vector<1x32xf32>,
    %c13 = arith.constant 13 : index
    %c0_294 = arith.constant 0 : index
    %399 = vector.load %arg11[%c13, %c0_294] : memref<50x32xf32, #tpu.memory_space<vmem>>, vector<1x32xf32>
    %c0_295 = arith.constant 0 : index
    %c352_296 = arith.constant 352 : index
    %400 = vector.load %arg12[%c0_295, %c352_296] : memref<2x512xf32, #tpu.memory_space<vmem>>, vector<1x32xf32>
    tpu.vector_store %arg12[%c0_295, %c352_296], %399 {strides = array<i32>} : memref<2x512xf32, #tpu.memory_space<vmem>>, vector<1x32xf32>,
    %c15_297 = arith.constant 15 : index
    %c0_298 = arith.constant 0 : index
    %401 = vector.load %arg11[%c15_297, %c0_298] : memref<50x32xf32, #tpu.memory_space<vmem>>, vector<1x32xf32>
    %c0_299 = arith.constant 0 : index
    %c384_300 = arith.constant 384 : index
    %402 = vector.load %arg12[%c0_299, %c384_300] : memref<2x512xf32, #tpu.memory_space<vmem>>, vector<1x32xf32>
    tpu.vector_store %arg12[%c0_299, %c384_300], %401 {strides = array<i32>} : memref<2x512xf32, #tpu.memory_space<vmem>>, vector<1x32xf32>,
    %c16 = arith.constant 16 : index
    %c0_301 = arith.constant 0 : index
    %403 = vector.load %arg11[%c16, %c0_301] : memref<50x32xf32, #tpu.memory_space<vmem>>, vector<1x32xf32>
    %c0_302 = arith.constant 0 : index
    %c416_303 = arith.constant 416 : index
    %404 = vector.load %arg12[%c0_302, %c416_303] : memref<2x512xf32, #tpu.memory_space<vmem>>, vector<1x32xf32>
    tpu.vector_store %arg12[%c0_302, %c416_303], %403 {strides = array<i32>} : memref<2x512xf32, #tpu.memory_space<vmem>>, vector<1x32xf32>,
    %c17 = arith.constant 17 : index
    %c0_304 = arith.constant 0 : index
    %405 = vector.load %arg11[%c17, %c0_304] : memref<50x32xf32, #tpu.memory_space<vmem>>, vector<1x32xf32>
    %c0_305 = arith.constant 0 : index
    %c448_306 = arith.constant 448 : index
    %406 = vector.load %arg12[%c0_305, %c448_306] : memref<2x512xf32, #tpu.memory_space<vmem>>, vector<1x32xf32>
    tpu.vector_store %arg12[%c0_305, %c448_306], %405 {strides = array<i32>} : memref<2x512xf32, #tpu.memory_space<vmem>>, vector<1x32xf32>,
    %c18 = arith.constant 18 : index
    %c0_307 = arith.constant 0 : index
    %407 = vector.load %arg11[%c18, %c0_307] : memref<50x32xf32, #tpu.memory_space<vmem>>, vector<1x32xf32>
    %c0_308 = arith.constant 0 : index
    %c480_309 = arith.constant 480 : index
    %408 = vector.load %arg12[%c0_308, %c480_309] : memref<2x512xf32, #tpu.memory_space<vmem>>, vector<1x32xf32>
    tpu.vector_store %arg12[%c0_308, %c480_309], %407 {strides = array<i32>} : memref<2x512xf32, #tpu.memory_space<vmem>>, vector<1x32xf32>,
    %c25_310 = arith.constant 25 : index
    %c0_311 = arith.constant 0 : index
    %409 = vector.load %arg11[%c25_310, %c0_311] : memref<50x32xf32, #tpu.memory_space<vmem>>, vector<1x32xf32>
    %c1_312 = arith.constant 1 : index
    %c0_313 = arith.constant 0 : index
    %410 = vector.load %arg12[%c1_312, %c0_313] : memref<2x512xf32, #tpu.memory_space<vmem>>, vector<1x32xf32>
    tpu.vector_store %arg12[%c1_312, %c0_313], %409 {strides = array<i32>} : memref<2x512xf32, #tpu.memory_space<vmem>>, vector<1x32xf32>,
    %c26 = arith.constant 26 : index
    %c0_314 = arith.constant 0 : index
    %411 = vector.load %arg11[%c26, %c0_314] : memref<50x32xf32, #tpu.memory_space<vmem>>, vector<1x32xf32>
    %c1_315 = arith.constant 1 : index
    %c32_316 = arith.constant 32 : index
    %412 = vector.load %arg12[%c1_315, %c32_316] : memref<2x512xf32, #tpu.memory_space<vmem>>, vector<1x32xf32>
    tpu.vector_store %arg12[%c1_315, %c32_316], %411 {strides = array<i32>} : memref<2x512xf32, #tpu.memory_space<vmem>>, vector<1x32xf32>,
    %c27 = arith.constant 27 : index
    %c0_317 = arith.constant 0 : index
    %413 = vector.load %arg11[%c27, %c0_317] : memref<50x32xf32, #tpu.memory_space<vmem>>, vector<1x32xf32>
    %c1_318 = arith.constant 1 : index
    %c64_319 = arith.constant 64 : index
    %414 = vector.load %arg12[%c1_318, %c64_319] : memref<2x512xf32, #tpu.memory_space<vmem>>, vector<1x32xf32>
    tpu.vector_store %arg12[%c1_318, %c64_319], %413 {strides = array<i32>} : memref<2x512xf32, #tpu.memory_space<vmem>>, vector<1x32xf32>,
    %c28_320 = arith.constant 28 : index
    %c0_321 = arith.constant 0 : index
    %415 = vector.load %arg11[%c28_320, %c0_321] : memref<50x32xf32, #tpu.memory_space<vmem>>, vector<1x32xf32>
    %c1_322 = arith.constant 1 : index
    %c96_323 = arith.constant 96 : index
    %416 = vector.load %arg12[%c1_322, %c96_323] : memref<2x512xf32, #tpu.memory_space<vmem>>, vector<1x32xf32>
    tpu.vector_store %arg12[%c1_322, %c96_323], %415 {strides = array<i32>} : memref<2x512xf32, #tpu.memory_space<vmem>>, vector<1x32xf32>,
    %c30_324 = arith.constant 30 : index
    %c0_325 = arith.constant 0 : index
    %417 = vector.load %arg11[%c30_324, %c0_325] : memref<50x32xf32, #tpu.memory_space<vmem>>, vector<1x32xf32>
    %c1_326 = arith.constant 1 : index
    %c128_327 = arith.constant 128 : index
    %418 = vector.load %arg12[%c1_326, %c128_327] : memref<2x512xf32, #tpu.memory_space<vmem>>, vector<1x32xf32>
    tpu.vector_store %arg12[%c1_326, %c128_327], %417 {strides = array<i32>} : memref<2x512xf32, #tpu.memory_space<vmem>>, vector<1x32xf32>,
    %c31 = arith.constant 31 : index
    %c0_328 = arith.constant 0 : index
    %419 = vector.load %arg11[%c31, %c0_328] : memref<50x32xf32, #tpu.memory_space<vmem>>, vector<1x32xf32>
    %c1_329 = arith.constant 1 : index
    %c160_330 = arith.constant 160 : index
    %420 = vector.load %arg12[%c1_329, %c160_330] : memref<2x512xf32, #tpu.memory_space<vmem>>, vector<1x32xf32>
    tpu.vector_store %arg12[%c1_329, %c160_330], %419 {strides = array<i32>} : memref<2x512xf32, #tpu.memory_space<vmem>>, vector<1x32xf32>,
    %c32_331 = arith.constant 32 : index
    %c0_332 = arith.constant 0 : index
    %421 = vector.load %arg11[%c32_331, %c0_332] : memref<50x32xf32, #tpu.memory_space<vmem>>, vector<1x32xf32>
    %c1_333 = arith.constant 1 : index
    %c192_334 = arith.constant 192 : index
    %422 = vector.load %arg12[%c1_333, %c192_334] : memref<2x512xf32, #tpu.memory_space<vmem>>, vector<1x32xf32>
    tpu.vector_store %arg12[%c1_333, %c192_334], %421 {strides = array<i32>} : memref<2x512xf32, #tpu.memory_space<vmem>>, vector<1x32xf32>,
    %c33 = arith.constant 33 : index
    %c0_335 = arith.constant 0 : index
    %423 = vector.load %arg11[%c33, %c0_335] : memref<50x32xf32, #tpu.memory_space<vmem>>, vector<1x32xf32>
    %c1_336 = arith.constant 1 : index
    %c224_337 = arith.constant 224 : index
    %424 = vector.load %arg12[%c1_336, %c224_337] : memref<2x512xf32, #tpu.memory_space<vmem>>, vector<1x32xf32>
    tpu.vector_store %arg12[%c1_336, %c224_337], %423 {strides = array<i32>} : memref<2x512xf32, #tpu.memory_space<vmem>>, vector<1x32xf32>,
    %c35_338 = arith.constant 35 : index
    %c0_339 = arith.constant 0 : index
    %425 = vector.load %arg11[%c35_338, %c0_339] : memref<50x32xf32, #tpu.memory_space<vmem>>, vector<1x32xf32>
    %c1_340 = arith.constant 1 : index
    %c256_341 = arith.constant 256 : index
    %426 = vector.load %arg12[%c1_340, %c256_341] : memref<2x512xf32, #tpu.memory_space<vmem>>, vector<1x32xf32>
    tpu.vector_store %arg12[%c1_340, %c256_341], %425 {strides = array<i32>} : memref<2x512xf32, #tpu.memory_space<vmem>>, vector<1x32xf32>,
    %c36_342 = arith.constant 36 : index
    %c0_343 = arith.constant 0 : index
    %427 = vector.load %arg11[%c36_342, %c0_343] : memref<50x32xf32, #tpu.memory_space<vmem>>, vector<1x32xf32>
    %c1_344 = arith.constant 1 : index
    %c288_345 = arith.constant 288 : index
    %428 = vector.load %arg12[%c1_344, %c288_345] : memref<2x512xf32, #tpu.memory_space<vmem>>, vector<1x32xf32>
    tpu.vector_store %arg12[%c1_344, %c288_345], %427 {strides = array<i32>} : memref<2x512xf32, #tpu.memory_space<vmem>>, vector<1x32xf32>,
    %c37 = arith.constant 37 : index
    %c0_346 = arith.constant 0 : index
    %429 = vector.load %arg11[%c37, %c0_346] : memref<50x32xf32, #tpu.memory_space<vmem>>, vector<1x32xf32>
    %c1_347 = arith.constant 1 : index
    %c320_348 = arith.constant 320 : index
    %430 = vector.load %arg12[%c1_347, %c320_348] : memref<2x512xf32, #tpu.memory_space<vmem>>, vector<1x32xf32>
    tpu.vector_store %arg12[%c1_347, %c320_348], %429 {strides = array<i32>} : memref<2x512xf32, #tpu.memory_space<vmem>>, vector<1x32xf32>,
    %c38 = arith.constant 38 : index
    %c0_349 = arith.constant 0 : index
    %431 = vector.load %arg11[%c38, %c0_349] : memref<50x32xf32, #tpu.memory_space<vmem>>, vector<1x32xf32>
    %c1_350 = arith.constant 1 : index
    %c352_351 = arith.constant 352 : index
    %432 = vector.load %arg12[%c1_350, %c352_351] : memref<2x512xf32, #tpu.memory_space<vmem>>, vector<1x32xf32>
    tpu.vector_store %arg12[%c1_350, %c352_351], %431 {strides = array<i32>} : memref<2x512xf32, #tpu.memory_space<vmem>>, vector<1x32xf32>,
    %c40_352 = arith.constant 40 : index
    %c0_353 = arith.constant 0 : index
    %433 = vector.load %arg11[%c40_352, %c0_353] : memref<50x32xf32, #tpu.memory_space<vmem>>, vector<1x32xf32>
    %c1_354 = arith.constant 1 : index
    %c384_355 = arith.constant 384 : index
    %434 = vector.load %arg12[%c1_354, %c384_355] : memref<2x512xf32, #tpu.memory_space<vmem>>, vector<1x32xf32>
    tpu.vector_store %arg12[%c1_354, %c384_355], %433 {strides = array<i32>} : memref<2x512xf32, #tpu.memory_space<vmem>>, vector<1x32xf32>,
    %c41 = arith.constant 41 : index
    %c0_356 = arith.constant 0 : index
    %435 = vector.load %arg11[%c41, %c0_356] : memref<50x32xf32, #tpu.memory_space<vmem>>, vector<1x32xf32>
    %c1_357 = arith.constant 1 : index
    %c416_358 = arith.constant 416 : index
    %436 = vector.load %arg12[%c1_357, %c416_358] : memref<2x512xf32, #tpu.memory_space<vmem>>, vector<1x32xf32>
    tpu.vector_store %arg12[%c1_357, %c416_358], %435 {strides = array<i32>} : memref<2x512xf32, #tpu.memory_space<vmem>>, vector<1x32xf32>,
    %c42 = arith.constant 42 : index
    %c0_359 = arith.constant 0 : index
    %437 = vector.load %arg11[%c42, %c0_359] : memref<50x32xf32, #tpu.memory_space<vmem>>, vector<1x32xf32>
    %c1_360 = arith.constant 1 : index
    %c448_361 = arith.constant 448 : index
    %438 = vector.load %arg12[%c1_360, %c448_361] : memref<2x512xf32, #tpu.memory_space<vmem>>, vector<1x32xf32>
    tpu.vector_store %arg12[%c1_360, %c448_361], %437 {strides = array<i32>} : memref<2x512xf32, #tpu.memory_space<vmem>>, vector<1x32xf32>,
    %c43 = arith.constant 43 : index
    %c0_362 = arith.constant 0 : index
    %439 = vector.load %arg11[%c43, %c0_362] : memref<50x32xf32, #tpu.memory_space<vmem>>, vector<1x32xf32>
    %c1_363 = arith.constant 1 : index
    %c480_364 = arith.constant 480 : index
    %440 = vector.load %arg12[%c1_363, %c480_364] : memref<2x512xf32, #tpu.memory_space<vmem>>, vector<1x32xf32>
    tpu.vector_store %arg12[%c1_363, %c480_364], %439 {strides = array<i32>} : memref<2x512xf32, #tpu.memory_space<vmem>>, vector<1x32xf32>,
    %c0_365 = arith.constant 0 : index
    %c0_366 = arith.constant 0 : index
    %441 = vector.load %arg12[%c0_365, %c0_366] : memref<2x512xf32, #tpu.memory_space<vmem>>, vector<2x512xf32>
    %c0_367 = arith.constant 0 : index
    %c0_368 = arith.constant 0 : index
    %442 = vector.load %arg6[%c0_367, %c0_368] : memref<512x1xf32, #tpu.memory_space<vmem>>, vector<512x1xf32>
    %cst_369 = arith.constant dense<0.000000e+00> : vector<2x1xf32>
    %443 = tpu.matmul %441, %442, %cst_369 {dimension_numbers = #tpu.dot_dimension_numbers<[1], [0], [0], [1], [0, 0, 1, 1], [], []>} : vector<2x512xf32>, vector<512x1xf32>, vector<2x1xf32> -> vector<2x1xf32>
    %c0_370 = arith.constant 0 : index
    %c0_371 = arith.constant 0 : index
    %444 = vector.load %arg7[%c0_370, %c0_371] : memref<1x1xf32, #tpu.memory_space<vmem>>, vector<1x1xf32>
    %445 = vector.broadcast %444 : vector<1x1xf32> to vector<2x1xf32>
    %446 = arith.addf %443, %445 : vector<2x1xf32>
    %c0_372 = arith.constant 0 : index
    %c0_373 = arith.constant 0 : index
    %447 = vector.load %arg8[%c0_372, %c0_373] : memref<2x1xf32, #tpu.memory_space<vmem>>, vector<2x1xf32>
    tpu.vector_store %arg8[%c0_372, %c0_373], %446 {strides = array<i32>} : memref<2x1xf32, #tpu.memory_space<vmem>>, vector<2x1xf32>,
    return
  }
  func.func @transform_0(%arg0: i32) -> (i32, i32) {
    %c0_i32 = arith.constant 0 : i32
    %c0_i32_0 = arith.constant 0 : i32
    %c0_i32_1 = arith.constant 0 : i32
    return %c0_i32, %c0_i32_0 : i32, i32
  }
  func.func @transform_1(%arg0: i32) -> (i32, i32) {
    %c0_i32 = arith.constant 0 : i32
    %c0_i32_0 = arith.constant 0 : i32
    %c0_i32_1 = arith.constant 0 : i32
    return %c0_i32, %c0_i32_0 : i32, i32
  }
  func.func @transform_2(%arg0: i32) -> (i32, i32) {
    %c0_i32 = arith.constant 0 : i32
    %c0_i32_0 = arith.constant 0 : i32
    %c0_i32_1 = arith.constant 0 : i32
    return %c0_i32, %c0_i32_0 : i32, i32
  }
  func.func @transform_3(%arg0: i32) -> (i32, i32) {
    %c0_i32 = arith.constant 0 : i32
    %c0_i32_0 = arith.constant 0 : i32
    %c0_i32_1 = arith.constant 0 : i32
    return %c0_i32, %c0_i32_0 : i32, i32
  }
  func.func @transform_4(%arg0: i32) -> (i32, i32) {
    %c0_i32 = arith.constant 0 : i32
    %c0_i32_0 = arith.constant 0 : i32
    %c0_i32_1 = arith.constant 0 : i32
    return %c0_i32, %c0_i32_0 : i32, i32
  }
  func.func @transform_5(%arg0: i32) -> (i32, i32) {
    %c0_i32 = arith.constant 0 : i32
    %c0_i32_0 = arith.constant 0 : i32
    %c0_i32_1 = arith.constant 0 : i32
    return %c0_i32, %c0_i32_0 : i32, i32
  }
  func.func @transform_6(%arg0: i32) -> (i32, i32) {
    %c0_i32 = arith.constant 0 : i32
    %c0_i32_0 = arith.constant 0 : i32
    %c0_i32_1 = arith.constant 0 : i32
    return %c0_i32, %c0_i32_0 : i32, i32
  }
  func.func @transform_7(%arg0: i32) -> (i32, i32) {
    %c0_i32 = arith.constant 0 : i32
    %c0_i32_0 = arith.constant 0 : i32
    %c0_i32_1 = arith.constant 0 : i32
    return %c0_i32, %c0_i32_0 : i32, i32
  }
}

</mosaic_0001>

<llo_original>
// kernel: discriminator_forward.1
$region0: #{discriminator_forward.1}
  #allocation0 [shape = 'u32[]', space=smem, size = 0x4, offset = 0x4, fixed_abs, tag = 'smem constant byte address 0x4 - core index']
  #allocation1 [shape = 'u32[144,128]{1,0:T(1,128)}', space=vmem, size = 0x12000, scoped, tag = 'internal scratch']
  #allocation2 [shape = 'f32[338,512]{1,0:T(8,128)}', space=vmem, size = 0xac000, scoped, tag = 'scratch operand']
  #allocation3 [shape = 'f32[50,32]{1,0:T(8,128)}', space=vmem, size = 0x7000, scoped, tag = 'scratch operand']
  #allocation4 [shape = 'f32[50,32]{1,0:T(8,128)}', space=vmem, size = 0x7000, scoped, tag = 'scratch operand']
  #allocation5 [shape = 'f32[2,512]{1,0:T(2,128)}', space=vmem, size = 0x1000, scoped, tag = 'scratch operand']
  #allocation6 [shape = 'f32[1,1]{1,0:T(1,128)S(1)}', space=vmem, size = 0x200, scoped, tag = 'scoped memory for discriminator_forward.1']
  %s0 = inlined_call_operand.vmem [shape: bf16[338,16], index: 0, kind: input, shape index: {}]
  %s1 = inlined_call_operand.vmem [shape: bf16[16,16], index: 1, kind: input, shape index: {}]
  %s2 = inlined_call_operand.vmem [shape: f32[1,16], index: 2, kind: input, shape index: {}]
  %s3 = inlined_call_operand.vmem [shape: bf16[16,512], index: 3, kind: input, shape index: {}]
  %s4 = inlined_call_operand.vmem [shape: f32[1,32], index: 4, kind: input, shape index: {}]
  %s5 = inlined_call_operand.vmem [shape: f32[512,1], index: 5, kind: input, shape index: {}]
  %s6 = inlined_call_operand.<no memory space> [shape: f32[1,1], index: 6, kind: input, shape index: {}]
  %s7 = inlined_call_operand.vmem [shape: f32[2,1], index: 7, kind: output, shape index: {}]
  %s8 = sld [smem:[#allocation0]]
  $region38: #{discriminator_forward.1} parent=0
    _
  %s10 = ssub.s32 1, %s8
  %s11 = scalar_select 0, %s10, %s8
  %v12 = vstv %s6
  %13 = vst [vmem:[#allocation6] sm:$0x1] %v12
  // Predicated region
  $region2: #{discriminator_forward.1} parent=0 // pred_check
    _
  $region3: #{discriminator_forward.1} parent=0 // pred_check_branch
    %15 = sbr.rel (0) target = $region5
  $region4: #{discriminator_forward.1} parent=0 // pred_region
    _
  $region5: #{discriminator_forward.1} parent=0 // pred_fallthru
    _
  // Predicated region
  $region6: #{discriminator_forward.1} parent=0 // pred_check
    _
  $region7: #{discriminator_forward.1} parent=0 // pred_check_branch
    %17 = sbr.rel (0) target = $region9
  $region8: #{discriminator_forward.1} parent=0 // pred_region
    _
  $region9: #{discriminator_forward.1} parent=0 // pred_fallthru
    _
  // Predicated region
  $region10: #{discriminator_forward.1} parent=0 // pred_check
    _
  $region11: #{discriminator_forward.1} parent=0 // pred_check_branch
    %19 = sbr.rel (0) target = $region13
  $region12: #{discriminator_forward.1} parent=0 // pred_region
    _
  $region13: #{discriminator_forward.1} parent=0 // pred_fallthru
    _
  // Predicated region
  $region14: #{discriminator_forward.1} parent=0 // pred_check
    _
  $region15: #{discriminator_forward.1} parent=0 // pred_check_branch
    %21 = sbr.rel (0) target = $region17
  $region16: #{discriminator_forward.1} parent=0 // pred_region
    _
  $region17: #{discriminator_forward.1} parent=0 // pred_fallthru
    _
  // Predicated region
  $region18: #{discriminator_forward.1} parent=0 // pred_check
    _
  $region19: #{discriminator_forward.1} parent=0 // pred_check_branch
    %23 = sbr.rel (0) target = $region21
  $region20: #{discriminator_forward.1} parent=0 // pred_region
    _
  $region21: #{discriminator_forward.1} parent=0 // pred_fallthru
    _
  // Predicated region
  $region22: #{discriminator_forward.1} parent=0 // pred_check
    _
  $region23: #{discriminator_forward.1} parent=0 // pred_check_branch
    %25 = sbr.rel (0) target = $region25
  $region24: #{discriminator_forward.1} parent=0 // pred_region
    _
  $region25: #{discriminator_forward.1} parent=0 // pred_fallthru
    _
  // Predicated region
  $region26: #{discriminator_forward.1} parent=0 // pred_check
    _
  $region27: #{discriminator_forward.1} parent=0 // pred_check_branch
    %27 = sbr.rel (0) target = $region29
  $region28: #{discriminator_forward.1} parent=0 // pred_region
    _
  $region29: #{discriminator_forward.1} parent=0 // pred_fallthru
    _
  %v29 = vld [vmem:[%s0] sm:$0xf]
  %v30 = vld [vmem:[%s0 + $0x4] sm:$0xf]
  %v31 = vld [vmem:[%s0 + $0x8] sm:$0xf]
  %v32 = vld [vmem:[%s0 + $0xc] sm:$0xf]
  %v33 = vld [vmem:[%s0 + $0x10] sm:$0xf]
  %v34 = vld [vmem:[%s0 + $0x14] sm:$0xf]
  %v35 = vld [vmem:[%s0 + $0x18] sm:$0xf]
  %v36 = vld [vmem:[%s0 + $0x1c] sm:$0xf]
  %v37 = vld [vmem:[%s0 + $0x20] sm:$0xf]
  %v38 = vld [vmem:[%s0 + $0x24] sm:$0xf]
  %v39 = vld [vmem:[%s0 + $0x28] sm:$0xf]
  %v40 = vld [vmem:[%s0 + $0x2c] sm:$0xf]
  %v41 = vld [vmem:[%s0 + $0x30] sm:$0xf]
  %v42 = vld [vmem:[%s0 + $0x34] sm:$0xf]
  %v43 = vld [vmem:[%s0 + $0x38] sm:$0xf]
  %v44 = vld [vmem:[%s0 + $0x3c] sm:$0xf]
  %v45 = vld [vmem:[%s0 + $0x40] sm:$0xf]
  %v46 = vld [vmem:[%s0 + $0x44] sm:$0xf]
  %v47 = vld [vmem:[%s0 + $0x48] sm:$0xf]
  %v48 = vld [vmem:[%s0 + $0x4c] sm:$0xf]
  %v49 = vld [vmem:[%s0 + $0x50] sm:$0xf]
  %v50 = vld [vmem:[%s0 + $0x54] sm:$0xf]
  %v51 = vld [vmem:[%s0 + $0x58] sm:$0xf]
  %v52 = vld [vmem:[%s0 + $0x5c] sm:$0xf]
  %v53 = vld [vmem:[%s0 + $0x60] sm:$0xf]
  %v54 = vld [vmem:[%s0 + $0x64] sm:$0xf]
  %v55 = vld [vmem:[%s0 + $0x68] sm:$0xf]
  %v56 = vld [vmem:[%s0 + $0x6c] sm:$0xf]
  %v57 = vld [vmem:[%s0 + $0x70] sm:$0xf]
  %v58 = vld [vmem:[%s0 + $0x74] sm:$0xf]
  %v59 = vld [vmem:[%s0 + $0x78] sm:$0xf]
  %v60 = vld [vmem:[%s0 + $0x7c] sm:$0xf]
  %v61 = vld [vmem:[%s0 + $0x80] sm:$0xf]
  %v62 = vld [vmem:[%s0 + $0x84] sm:$0xf]
  %v63 = vld [vmem:[%s0 + $0x88] sm:$0xf]
  %v64 = vld [vmem:[%s0 + $0x8c] sm:$0xf]
  %v65 = vld [vmem:[%s0 + $0x90] sm:$0xf]
  %v66 = vld [vmem:[%s0 + $0x94] sm:$0xf]
  %v67 = vld [vmem:[%s0 + $0x98] sm:$0xf]
  %v68 = vld [vmem:[%s0 + $0x9c] sm:$0xf]
  %v69 = vld [vmem:[%s0 + $0xa0] sm:$0xf]
  %v70 = vld [vmem:[%s0 + $0xa4] sm:$0xf]
  %v71 = vld [vmem:[%s0 + $0xa8] sm:$0x1]
  %v72 = vld [vmem:[%s1] sm:$0xf]
  %v73 = vld [vmem:[%s1 + $0x4] sm:$0xf]
  %v74 = vld [vmem:[%s2] sm:$0x1]
  %v76 = vlaneseq
  %v77 = vshrl.u32 %v76, 7
  %v78 = vsub.s32 0, %v77
  %v79 = vrot.slane %v74, %v78
  %v124 = vunpack.c.l.b16 %v29
  %v125 = vunpack.c.l.b16 %v30
  %v126 = vunpack.c.l.b16 %v31
  %v127 = vunpack.c.l.b16 %v32
  %v128 = vunpack.c.l.b16 %v33
  %v129 = vunpack.c.l.b16 %v34
  %v130 = vunpack.c.l.b16 %v35
  %v131 = vunpack.c.l.b16 %v36
  %v132 = vunpack.c.l.b16 %v37
  %v133 = vunpack.c.l.b16 %v38
  %v134 = vunpack.c.l.b16 %v39
  %v135 = vunpack.c.l.b16 %v40
  %v136 = vunpack.c.l.b16 %v41
  %v137 = vunpack.c.l.b16 %v42
  %v138 = vunpack.c.l.b16 %v43
  %v139 = vunpack.c.l.b16 %v44
  %v140 = vunpack.c.l.b16 %v45
  %v141 = vunpack.c.l.b16 %v46
  %v142 = vunpack.c.l.b16 %v47
  %v143 = vunpack.c.l.b16 %v48
  %v144 = vunpack.c.l.b16 %v49
  %v145 = vunpack.c.l.b16 %v50
  %v146 = vunpack.c.l.b16 %v51
  %v147 = vunpack.c.l.b16 %v52
  %v148 = vunpack.c.l.b16 %v53
  %v149 = vunpack.c.l.b16 %v54
  %v150 = vunpack.c.l.b16 %v55
  %v151 = vunpack.c.l.b16 %v56
  %v152 = vunpack.c.l.b16 %v57
  %v153 = vunpack.c.l.b16 %v58
  %v154 = vunpack.c.l.b16 %v59
  %v155 = vunpack.c.l.b16 %v60
  %v156 = vunpack.c.l.b16 %v61
  %v157 = vunpack.c.l.b16 %v62
  %v158 = vunpack.c.l.b16 %v63
  %v159 = vunpack.c.l.b16 %v64
  %v160 = vunpack.c.l.b16 %v65
  %v161 = vunpack.c.l.b16 %v66
  %v162 = vunpack.c.l.b16 %v67
  %v163 = vunpack.c.l.b16 %v68
  %v164 = vunpack.c.l.b16 %v69
  %v165 = vunpack.c.l.b16 %v70
  %v166 = vunpack.c.l.b16 %v71
  %v167 = vpack.c.b16 %v125, %v124
  %v168 = vpack.c.b16 %v127, %v126
  %v169 = vpack.c.b16 %v129, %v128
  %v170 = vpack.c.b16 %v131, %v130
  %v171 = vpack.c.b16 %v133, %v132
  %v172 = vpack.c.b16 %v135, %v134
  %v173 = vpack.c.b16 %v137, %v136
  %v174 = vpack.c.b16 %v139, %v138
  %v175 = vpack.c.b16 %v141, %v140
  %v176 = vpack.c.b16 %v143, %v142
  %v177 = vpack.c.b16 %v145, %v144
  %v178 = vpack.c.b16 %v147, %v146
  %v179 = vpack.c.b16 %v149, %v148
  %v180 = vpack.c.b16 %v151, %v150
  %v181 = vpack.c.b16 %v153, %v152
  %v182 = vpack.c.b16 %v155, %v154
  %v183 = vpack.c.b16 %v157, %v156
  %v184 = vpack.c.b16 %v159, %v158
  %v185 = vpack.c.b16 %v161, %v160
  %v186 = vpack.c.b16 %v163, %v162
  %v187 = vpack.c.b16 %v165, %v164
  %v188 = vpack.c.b16 %v166, %v166
  %v191 = vunpack.c.l.b16 %v72
  %v192 = vunpack.c.l.b16 %v73
  %v193 = vpack.c.b16 %v192, %v191
  %vm195 = vcmask 130048
  %v197 = vsel %vm195, %v167, 0
  %v200 = vsel %vm195, %v168, 0
  %v203 = vsel %vm195, %v169, 0
  %v206 = vsel %vm195, %v170, 0
  %v209 = vsel %vm195, %v171, 0
  %v212 = vsel %vm195, %v172, 0
  %v215 = vsel %vm195, %v173, 0
  %v218 = vsel %vm195, %v174, 0
  %v221 = vsel %vm195, %v175, 0
  %v224 = vsel %vm195, %v176, 0
  %v227 = vsel %vm195, %v177, 0
  %v230 = vsel %vm195, %v178, 0
  %v233 = vsel %vm195, %v179, 0
  %v236 = vsel %vm195, %v180, 0
  %v239 = vsel %vm195, %v181, 0
  %v242 = vsel %vm195, %v182, 0
  %v245 = vsel %vm195, %v183, 0
  %v248 = vsel %vm195, %v184, 0
  %v251 = vsel %vm195, %v185, 0
  %v254 = vsel %vm195, %v186, 0
  %v257 = vsel %vm195, %v187, 0
  %v260 = vsel %vm195, %v188, 0
  %262 = vmatprep.subr.bf16.mxu0 0
  %263 = vmatpush1.bf16.msra.mxu0 %v193
  %264 = vmatprep.subr.bf16.mxu0 0
  %265 = vmatpush1.bf16.msra.mxu0 0
  %266 = vmatprep.subr.bf16.mxu0 0
  %267 = vmatpush1.bf16.msra.mxu0 0
  %268 = vmatprep.subr.bf16.mxu0 0
  %269 = vmatpush1.bf16.msra.mxu0 0
  %270 = vmatprep.subr.bf16.mxu0 0
  %271 = vmatpush1.bf16.msra.mxu0 0
  %272 = vmatprep.subr.bf16.mxu0 0
  %273 = vmatpush1.bf16.msra.mxu0 0
  %274 = vmatprep.subr.bf16.mxu0 0
  %275 = vmatpush1.bf16.msra.mxu0 0
  %276 = vmatprep.subr.bf16.mxu0 0
  %277 = vmatpush1.bf16.msra.mxu0 0
  %278 = vmatprep.subr.bf16.mxu0 0
  %279 = vmatpush1.bf16.msra.mxu0 0
  %280 = vmatprep.subr.bf16.mxu0 0
  %281 = vmatpush1.bf16.msra.mxu0 0
  %282 = vmatprep.subr.bf16.mxu0 0
  %283 = vmatpush1.bf16.msra.mxu0 0
  %284 = vmatprep.subr.bf16.mxu0 0
  %285 = vmatpush1.bf16.msra.mxu0 0
  %286 = vmatprep.subr.bf16.mxu0 0
  %287 = vmatpush1.bf16.msra.mxu0 0
  %288 = vmatprep.subr.bf16.mxu0 0
  %289 = vmatpush1.bf16.msra.mxu0 0
  %290 = vmatprep.subr.bf16.mxu0 0
  %291 = vmatpush1.bf16.msra.mxu0 0
  %292 = vmatprep.subr.bf16.mxu0 0
  %293 = vmatpush1.bf16.msra.mxu0 0
  %294 = vmatprep.mubr.bf16.mxu0 0
  %295 = vmatmul.mubr.bf16.gmra.mrb[0].mxu0 %v197
  %v296 = vpop.f32.mrb[0].mxu0
  %v297 = vadd.f32 %v79, %v296
  %v298 = vpop.f32.mrb[0].mxu0
  %v299 = vpop.f32.mrb[0].mxu0
  %v300 = vadd.f32 %v79, %v299
  %v301 = vpop.f32.mrb[0].mxu0
  %302 = vmatprep.mubr.bf16.mxu0 0
  %303 = vmatmul.mubr.bf16.gmra.mrb[0].mxu0 %v200
  %v304 = vpop.f32.mrb[0].mxu0
  %v305 = vadd.f32 %v79, %v304
  %v306 = vpop.f32.mrb[0].mxu0
  %v307 = vpop.f32.mrb[0].mxu0
  %v308 = vadd.f32 %v79, %v307
  %v309 = vpop.f32.mrb[0].mxu0
  %310 = vmatprep.mubr.bf16.mxu0 0
  %311 = vmatmul.mubr.bf16.gmra.mrb[0].mxu0 %v203
  %v312 = vpop.f32.mrb[0].mxu0
  %v313 = vadd.f32 %v79, %v312
  %v314 = vpop.f32.mrb[0].mxu0
  %v315 = vpop.f32.mrb[0].mxu0
  %v316 = vadd.f32 %v79, %v315
  %v317 = vpop.f32.mrb[0].mxu0
  %318 = vmatprep.mubr.bf16.mxu0 0
  %319 = vmatmul.mubr.bf16.gmra.mrb[0].mxu0 %v206
  %v320 = vpop.f32.mrb[0].mxu0
  %v321 = vadd.f32 %v79, %v320
  %v322 = vpop.f32.mrb[0].mxu0
  %v323 = vpop.f32.mrb[0].mxu0
  %v324 = vadd.f32 %v79, %v323
  %v325 = vpop.f32.mrb[0].mxu0
  %326 = vmatprep.mubr.bf16.mxu0 0
  %327 = vmatmul.mubr.bf16.gmra.mrb[0].mxu0 %v209
  %v328 = vpop.f32.mrb[0].mxu0
  %v329 = vadd.f32 %v79, %v328
  %v330 = vpop.f32.mrb[0].mxu0
  %v331 = vpop.f32.mrb[0].mxu0
  %v332 = vadd.f32 %v79, %v331
  %v333 = vpop.f32.mrb[0].mxu0
  %334 = vmatprep.mubr.bf16.mxu0 0
  %335 = vmatmul.mubr.bf16.gmra.mrb[0].mxu0 %v212
  %v336 = vpop.f32.mrb[0].mxu0
  %v337 = vadd.f32 %v79, %v336
  %v338 = vpop.f32.mrb[0].mxu0
  %v339 = vpop.f32.mrb[0].mxu0
  %v340 = vadd.f32 %v79, %v339
  %v341 = vpop.f32.mrb[0].mxu0
  %342 = vmatprep.mubr.bf16.mxu0 0
  %343 = vmatmul.mubr.bf16.gmra.mrb[0].mxu0 %v215
  %v344 = vpop.f32.mrb[0].mxu0
  %v345 = vadd.f32 %v79, %v344
  %v346 = vpop.f32.mrb[0].mxu0
  %v347 = vpop.f32.mrb[0].mxu0
  %v348 = vadd.f32 %v79, %v347
  %v349 = vpop.f32.mrb[0].mxu0
  %350 = vmatprep.mubr.bf16.mxu0 0
  %351 = vmatmul.mubr.bf16.gmra.mrb[0].mxu0 %v218
  %v352 = vpop.f32.mrb[0].mxu0
  %v353 = vadd.f32 %v79, %v352
  %v354 = vpop.f32.mrb[0].mxu0
  %v355 = vpop.f32.mrb[0].mxu0
  %v356 = vadd.f32 %v79, %v355
  %v357 = vpop.f32.mrb[0].mxu0
  %358 = vmatprep.mubr.bf16.mxu0 0
  %359 = vmatmul.mubr.bf16.gmra.mrb[0].mxu0 %v221
  %v360 = vpop.f32.mrb[0].mxu0
  %v361 = vadd.f32 %v79, %v360
  %v362 = vpop.f32.mrb[0].mxu0
  %v363 = vpop.f32.mrb[0].mxu0
  %v364 = vadd.f32 %v79, %v363
  %v365 = vpop.f32.mrb[0].mxu0
  %366 = vmatprep.mubr.bf16.mxu0 0
  %367 = vmatmul.mubr.bf16.gmra.mrb[0].mxu0 %v224
  %v368 = vpop.f32.mrb[0].mxu0
  %v369 = vadd.f32 %v79, %v368
  %v370 = vpop.f32.mrb[0].mxu0
  %v371 = vpop.f32.mrb[0].mxu0
  %v372 = vadd.f32 %v79, %v371
  %v373 = vpop.f32.mrb[0].mxu0
  %374 = vmatprep.mubr.bf16.mxu0 0
  %375 = vmatmul.mubr.bf16.gmra.mrb[0].mxu0 %v227
  %v376 = vpop.f32.mrb[0].mxu0
  %v377 = vadd.f32 %v79, %v376
  %v378 = vpop.f32.mrb[0].mxu0
  %v379 = vpop.f32.mrb[0].mxu0
  %v380 = vadd.f32 %v79, %v379
  %v381 = vpop.f32.mrb[0].mxu0
  %382 = vmatprep.mubr.bf16.mxu0 0
  %383 = vmatmul.mubr.bf16.gmra.mrb[0].mxu0 %v230
  %v384 = vpop.f32.mrb[0].mxu0
  %v385 = vadd.f32 %v79, %v384
  %v386 = vpop.f32.mrb[0].mxu0
  %v387 = vpop.f32.mrb[0].mxu0
  %v388 = vadd.f32 %v79, %v387
  %v389 = vpop.f32.mrb[0].mxu0
  %390 = vmatprep.mubr.bf16.mxu0 0
  %391 = vmatmul.mubr.bf16.gmra.mrb[0].mxu0 %v233
  %v392 = vpop.f32.mrb[0].mxu0
  %v393 = vadd.f32 %v79, %v392
  %v394 = vpop.f32.mrb[0].mxu0
  %v395 = vpop.f32.mrb[0].mxu0
  %v396 = vadd.f32 %v79, %v395
  %v397 = vpop.f32.mrb[0].mxu0
  %398 = vmatprep.mubr.bf16.mxu0 0
  %399 = vmatmul.mubr.bf16.gmra.mrb[0].mxu0 %v236
  %v400 = vpop.f32.mrb[0].mxu0
  %v401 = vadd.f32 %v79, %v400
  %v402 = vpop.f32.mrb[0].mxu0
  %v403 = vpop.f32.mrb[0].mxu0
  %v404 = vadd.f32 %v79, %v403
  %v405 = vpop.f32.mrb[0].mxu0
  %406 = vmatprep.mubr.bf16.mxu0 0
  %407 = vmatmul.mubr.bf16.gmra.mrb[0].mxu0 %v239
  %v408 = vpop.f32.mrb[0].mxu0
  %v409 = vadd.f32 %v79, %v408
  %v410 = vpop.f32.mrb[0].mxu0
  %v411 = vpop.f32.mrb[0].mxu0
  %v412 = vadd.f32 %v79, %v411
  %v413 = vpop.f32.mrb[0].mxu0
  %414 = vmatprep.mubr.bf16.mxu0 0
  %415 = vmatmul.mubr.bf16.gmra.mrb[0].mxu0 %v242
  %v416 = vpop.f32.mrb[0].mxu0
  %v417 = vadd.f32 %v79, %v416
  %v418 = vpop.f32.mrb[0].mxu0
  %v419 = vpop.f32.mrb[0].mxu0
  %v420 = vadd.f32 %v79, %v419
  %v421 = vpop.f32.mrb[0].mxu0
  %422 = vmatprep.mubr.bf16.mxu0 0
  %423 = vmatmul.mubr.bf16.gmra.mrb[0].mxu0 %v245
  %v424 = vpop.f32.mrb[0].mxu0
  %v425 = vadd.f32 %v79, %v424
  %v426 = vpop.f32.mrb[0].mxu0
  %v427 = vpop.f32.mrb[0].mxu0
  %v428 = vadd.f32 %v79, %v427
  %v429 = vpop.f32.mrb[0].mxu0
  %430 = vmatprep.mubr.bf16.mxu0 0
  %431 = vmatmul.mubr.bf16.gmra.mrb[0].mxu0 %v248
  %v432 = vpop.f32.mrb[0].mxu0
  %v433 = vadd.f32 %v79, %v432
  %v434 = vpop.f32.mrb[0].mxu0
  %v435 = vpop.f32.mrb[0].mxu0
  %v436 = vadd.f32 %v79, %v435
  %v437 = vpop.f32.mrb[0].mxu0
  %438 = vmatprep.mubr.bf16.mxu0 0
  %439 = vmatmul.mubr.bf16.gmra.mrb[0].mxu0 %v251
  %v440 = vpop.f32.mrb[0].mxu0
  %v441 = vadd.f32 %v79, %v440
  %v442 = vpop.f32.mrb[0].mxu0
  %v443 = vpop.f32.mrb[0].mxu0
  %v444 = vadd.f32 %v79, %v443
  %v445 = vpop.f32.mrb[0].mxu0
  %446 = vmatprep.mubr.bf16.mxu0 0
  %447 = vmatmul.mubr.bf16.gmra.mrb[0].mxu0 %v254
  %v448 = vpop.f32.mrb[0].mxu0
  %v449 = vadd.f32 %v79, %v448
  %v450 = vpop.f32.mrb[0].mxu0
  %v451 = vpop.f32.mrb[0].mxu0
  %v452 = vadd.f32 %v79, %v451
  %v453 = vpop.f32.mrb[0].mxu0
  %454 = vmatprep.mubr.bf16.mxu0 0
  %455 = vmatmul.mubr.bf16.gmra.mrb[0].mxu0 %v257
  %v456 = vpop.f32.mrb[0].mxu0
  %v457 = vadd.f32 %v79, %v456
  %v458 = vpop.f32.mrb[0].mxu0
  %v459 = vpop.f32.mrb[0].mxu0
  %v460 = vadd.f32 %v79, %v459
  %v461 = vpop.f32.mrb[0].mxu0
  %462 = vmatprep.mubr.bf16.mxu0 0
  %463 = vmatmul.mubr.bf16.gmra.mrb[0].mxu0 %v260
  %v464 = vpop.f32.mrb[0].mxu0
  %v465 = vadd.f32 %v79, %v464
  %v466 = vpop.f32.mrb[0].mxu0
  %v467 = vpop.f32.mrb[0].mxu0
  %v468 = vpop.f32.mrb[0].mxu0
  %469 = vdwg.mxu0
  %v470 = vsel %vm195, %v297, 0.0
  %v471 = vsel %vm195, %v300, 0.0
  %v472 = vadd.f32 %v470, %v471
  %v473 = vsel %vm195, %v305, 0.0
  %v474 = vadd.f32 %v472, %v473
  %v475 = vsel %vm195, %v308, 0.0
  %v476 = vadd.f32 %v474, %v475
  %v477 = vsel %vm195, %v313, 0.0
  %v478 = vadd.f32 %v476, %v477
  %v479 = vsel %vm195, %v316, 0.0
  %v480 = vadd.f32 %v478, %v479
  %v481 = vsel %vm195, %v321, 0.0
  %v482 = vadd.f32 %v480, %v481
  %v483 = vsel %vm195, %v324, 0.0
  %v484 = vadd.f32 %v482, %v483
  %v485 = vsel %vm195, %v329, 0.0
  %v486 = vadd.f32 %v484, %v485
  %v487 = vsel %vm195, %v332, 0.0
  %v488 = vadd.f32 %v486, %v487
  %v489 = vsel %vm195, %v337, 0.0
  %v490 = vadd.f32 %v488, %v489
  %v491 = vsel %vm195, %v340, 0.0
  %v492 = vadd.f32 %v490, %v491
  %v493 = vsel %vm195, %v345, 0.0
  %v494 = vadd.f32 %v492, %v493
  %v495 = vsel %vm195, %v348, 0.0
  %v496 = vadd.f32 %v494, %v495
  %v497 = vsel %vm195, %v353, 0.0
  %v498 = vadd.f32 %v496, %v497
  %v499 = vsel %vm195, %v356, 0.0
  %v500 = vadd.f32 %v498, %v499
  %v501 = vsel %vm195, %v361, 0.0
  %v502 = vadd.f32 %v500, %v501
  %v503 = vsel %vm195, %v364, 0.0
  %v504 = vadd.f32 %v502, %v503
  %v505 = vsel %vm195, %v369, 0.0
  %v506 = vadd.f32 %v504, %v505
  %v507 = vsel %vm195, %v372, 0.0
  %v508 = vadd.f32 %v506, %v507
  %v509 = vsel %vm195, %v377, 0.0
  %v510 = vadd.f32 %v508, %v509
  %v511 = vsel %vm195, %v380, 0.0
  %v512 = vadd.f32 %v510, %v511
  %v513 = vsel %vm195, %v385, 0.0
  %v514 = vadd.f32 %v512, %v513
  %v515 = vsel %vm195, %v388, 0.0
  %v516 = vadd.f32 %v514, %v515
  %v517 = vsel %vm195, %v393, 0.0
  %v518 = vadd.f32 %v516, %v517
  %v519 = vsel %vm195, %v396, 0.0
  %v520 = vadd.f32 %v518, %v519
  %v521 = vsel %vm195, %v401, 0.0
  %v522 = vadd.f32 %v520, %v521
  %v523 = vsel %vm195, %v404, 0.0
  %v524 = vadd.f32 %v522, %v523
  %v525 = vsel %vm195, %v409, 0.0
  %v526 = vadd.f32 %v524, %v525
  %v527 = vsel %vm195, %v412, 0.0
  %v528 = vadd.f32 %v526, %v527
  %v529 = vsel %vm195, %v417, 0.0
  %v530 = vadd.f32 %v528, %v529
  %v531 = vsel %vm195, %v420, 0.0
  %v532 = vadd.f32 %v530, %v531
  %v533 = vsel %vm195, %v425, 0.0
  %v534 = vadd.f32 %v532, %v533
  %v535 = vsel %vm195, %v428, 0.0
  %v536 = vadd.f32 %v534, %v535
  %v537 = vsel %vm195, %v433, 0.0
  %v538 = vadd.f32 %v536, %v537
  %v539 = vsel %vm195, %v436, 0.0
  %v540 = vadd.f32 %v538, %v539
  %v541 = vsel %vm195, %v441, 0.0
  %v542 = vadd.f32 %v540, %v541
  %v543 = vsel %vm195, %v444, 0.0
  %v544 = vadd.f32 %v542, %v543
  %v545 = vsel %vm195, %v449, 0.0
  %v546 = vadd.f32 %v544, %v545
  %v547 = vsel %vm195, %v452, 0.0
  %v548 = vadd.f32 %v546, %v547
  %v549 = vsel %vm195, %v457, 0.0
  %v550 = vadd.f32 %v548, %v549
  %v551 = vsel %vm195, %v460, 0.0
  %v552 = vadd.f32 %v550, %v551
  %vm553 = vcmask 123904
  %v554 = vsel %vm553, %v465, 0.0
  %v555 = vadd.f32 %v552, %v554
  %v556 = vrot.slane %v555, 4
  %v557 = vadd.f32 %v555, %v556
  %v558 = vrot.slane %v557, 2
  %v559 = vadd.f32 %v557, %v558
  %v560 = vrot.slane %v559, 1
  %v561 = vadd.f32 %v559, %v560
  %v562 = vmul.f32 %v297, %v297
  %v563 = vmul.f32 %v300, %v300
  %v564 = vmul.f32 %v305, %v305
  %v565 = vmul.f32 %v308, %v308
  %v566 = vmul.f32 %v313, %v313
  %v567 = vmul.f32 %v316, %v316
  %v568 = vmul.f32 %v321, %v321
  %v569 = vmul.f32 %v324, %v324
  %v570 = vmul.f32 %v329, %v329
  %v571 = vmul.f32 %v332, %v332
  %v572 = vmul.f32 %v337, %v337
  %v573 = vmul.f32 %v340, %v340
  %v574 = vmul.f32 %v345, %v345
  %v575 = vmul.f32 %v348, %v348
  %v576 = vmul.f32 %v353, %v353
  %v577 = vmul.f32 %v356, %v356
  %v578 = vmul.f32 %v361, %v361
  %v579 = vmul.f32 %v364, %v364
  %v580 = vmul.f32 %v369, %v369
  %v581 = vmul.f32 %v372, %v372
  %v582 = vmul.f32 %v377, %v377
  %v583 = vmul.f32 %v380, %v380
  %v584 = vmul.f32 %v385, %v385
  %v585 = vmul.f32 %v388, %v388
  %v586 = vmul.f32 %v393, %v393
  %v587 = vmul.f32 %v396, %v396
  %v588 = vmul.f32 %v401, %v401
  %v589 = vmul.f32 %v404, %v404
  %v590 = vmul.f32 %v409, %v409
  %v591 = vmul.f32 %v412, %v412
  %v592 = vmul.f32 %v417, %v417
  %v593 = vmul.f32 %v420, %v420
  %v594 = vmul.f32 %v425, %v425
  %v595 = vmul.f32 %v428, %v428
  %v596 = vmul.f32 %v433, %v433
  %v597 = vmul.f32 %v436, %v436
  %v598 = vmul.f32 %v441, %v441
  %v599 = vmul.f32 %v444, %v444
  %v600 = vmul.f32 %v449, %v449
  %v601 = vmul.f32 %v452, %v452
  %v602 = vmul.f32 %v457, %v457
  %v603 = vmul.f32 %v460, %v460
  %v604 = vmul.f32 %v465, %v465
  %v605 = vsel %vm195, %v562, 0.0
  %v606 = vsel %vm195, %v563, 0.0
  %v607 = vadd.f32 %v605, %v606
  %v608 = vsel %vm195, %v564, 0.0
  %v609 = vadd.f32 %v607, %v608
  %v610 = vsel %vm195, %v565, 0.0
  %v611 = vadd.f32 %v609, %v610
  %v612 = vsel %vm195, %v566, 0.0
  %v613 = vadd.f32 %v611, %v612
  %v614 = vsel %vm195, %v567, 0.0
  %v615 = vadd.f32 %v613, %v614
  %v616 = vsel %vm195, %v568, 0.0
  %v617 = vadd.f32 %v615, %v616
  %v618 = vsel %vm195, %v569, 0.0
  %v619 = vadd.f32 %v617, %v618
  %v620 = vsel %vm195, %v570, 0.0
  %v621 = vadd.f32 %v619, %v620
  %v622 = vsel %vm195, %v571, 0.0
  %v623 = vadd.f32 %v621, %v622
  %v624 = vsel %vm195, %v572, 0.0
  %v625 = vadd.f32 %v623, %v624
  %v626 = vsel %vm195, %v573, 0.0
  %v627 = vadd.f32 %v625, %v626
  %v628 = vsel %vm195, %v574, 0.0
  %v629 = vadd.f32 %v627, %v628
  %v630 = vsel %vm195, %v575, 0.0
  %v631 = vadd.f32 %v629, %v630
  %v632 = vsel %vm195, %v576, 0.0
  %v633 = vadd.f32 %v631, %v632
  %v634 = vsel %vm195, %v577, 0.0
  %v635 = vadd.f32 %v633, %v634
  %v636 = vsel %vm195, %v578, 0.0
  %v637 = vadd.f32 %v635, %v636
  %v638 = vsel %vm195, %v579, 0.0
  %v639 = vadd.f32 %v637, %v638
  %v640 = vsel %vm195, %v580, 0.0
  %v641 = vadd.f32 %v639, %v640
  %v642 = vsel %vm195, %v581, 0.0
  %v643 = vadd.f32 %v641, %v642
  %v644 = vsel %vm195, %v582, 0.0
  %v645 = vadd.f32 %v643, %v644
  %v646 = vsel %vm195, %v583, 0.0
  %v647 = vadd.f32 %v645, %v646
  %v648 = vsel %vm195, %v584, 0.0
  %v649 = vadd.f32 %v647, %v648
  %v650 = vsel %vm195, %v585, 0.0
  %v651 = vadd.f32 %v649, %v650
  %v652 = vsel %vm195, %v586, 0.0
  %v653 = vadd.f32 %v651, %v652
  %v654 = vsel %vm195, %v587, 0.0
  %v655 = vadd.f32 %v653, %v654
  %v656 = vsel %vm195, %v588, 0.0
  %v657 = vadd.f32 %v655, %v656
  %v658 = vsel %vm195, %v589, 0.0
  %v659 = vadd.f32 %v657, %v658
  %v660 = vsel %vm195, %v590, 0.0
  %v661 = vadd.f32 %v659, %v660
  %v662 = vsel %vm195, %v591, 0.0
  %v663 = vadd.f32 %v661, %v662
  %v664 = vsel %vm195, %v592, 0.0
  %v665 = vadd.f32 %v663, %v664
  %v666 = vsel %vm195, %v593, 0.0
  %v667 = vadd.f32 %v665, %v666
  %v668 = vsel %vm195, %v594, 0.0
  %v669 = vadd.f32 %v667, %v668
  %v670 = vsel %vm195, %v595, 0.0
  %v671 = vadd.f32 %v669, %v670
  %v672 = vsel %vm195, %v596, 0.0
  %v673 = vadd.f32 %v671, %v672
  %v674 = vsel %vm195, %v597, 0.0
  %v675 = vadd.f32 %v673, %v674
  %v676 = vsel %vm195, %v598, 0.0
  %v677 = vadd.f32 %v675, %v676
  %v678 = vsel %vm195, %v599, 0.0
  %v679 = vadd.f32 %v677, %v678
  %v680 = vsel %vm195, %v600, 0.0
  %v681 = vadd.f32 %v679, %v680
  %v682 = vsel %vm195, %v601, 0.0
  %v683 = vadd.f32 %v681, %v682
  %v684 = vsel %vm195, %v602, 0.0
  %v685 = vadd.f32 %v683, %v684
  %v686 = vsel %vm195, %v603, 0.0
  %v687 = vadd.f32 %v685, %v686
  %v688 = vsel %vm553, %v604, 0.0
  %v689 = vadd.f32 %v687, %v688
  %v690 = vrot.slane %v689, 4
  %v691 = vadd.f32 %v689, %v690
  %v692 = vrot.slane %v691, 2
  %v693 = vadd.f32 %v691, %v692
  %v694 = vrot.slane %v693, 1
  %v695 = vadd.f32 %v693, %v694
  %v696 = vmul.f32 %v561, 0.00295858
  %v697 = vmul.f32 %v695, 0.00295858
  %v698 = vmul.f32 %v696, %v696
  %v699 = vsub.f32 %v697, %v698
  %v700 = vsub.f32 %v297, %v696
  %v701 = vsub.f32 %v300, %v696
  %v702 = vsub.f32 %v305, %v696
  %v703 = vsub.f32 %v308, %v696
  %v704 = vsub.f32 %v313, %v696
  %v705 = vsub.f32 %v316, %v696
  %v706 = vsub.f32 %v321, %v696
  %v707 = vsub.f32 %v324, %v696
  %v708 = vsub.f32 %v329, %v696
  %v709 = vsub.f32 %v332, %v696
  %v710 = vsub.f32 %v337, %v696
  %v711 = vsub.f32 %v340, %v696
  %v712 = vsub.f32 %v345, %v696
  %v713 = vsub.f32 %v348, %v696
  %v714 = vsub.f32 %v353, %v696
  %v715 = vsub.f32 %v356, %v696
  %v716 = vsub.f32 %v361, %v696
  %v717 = vsub.f32 %v364, %v696
  %v718 = vsub.f32 %v369, %v696
  %v719 = vsub.f32 %v372, %v696
  %v720 = vsub.f32 %v377, %v696
  %v721 = vsub.f32 %v380, %v696
  %v722 = vsub.f32 %v385, %v696
  %v723 = vsub.f32 %v388, %v696
  %v724 = vsub.f32 %v393, %v696
  %v725 = vsub.f32 %v396, %v696
  %v726 = vsub.f32 %v401, %v696
  %v727 = vsub.f32 %v404, %v696
  %v728 = vsub.f32 %v409, %v696
  %v729 = vsub.f32 %v412, %v696
  %v730 = vsub.f32 %v417, %v696
  %v731 = vsub.f32 %v420, %v696
  %v732 = vsub.f32 %v425, %v696
  %v733 = vsub.f32 %v428, %v696
  %v734 = vsub.f32 %v433, %v696
  %v735 = vsub.f32 %v436, %v696
  %v736 = vsub.f32 %v441, %v696
  %v737 = vsub.f32 %v444, %v696
  %v738 = vsub.f32 %v449, %v696
  %v739 = vsub.f32 %v452, %v696
  %v740 = vsub.f32 %v457, %v696
  %v741 = vsub.f32 %v460, %v696
  %v742 = vsub.f32 %v465, %v696
  %v743 = vadd.f32 %v699, 1e-05
  %v744 = vrsqrt.pop %v743
  %v745 = vmul.f32 %v700, %v744
  %v746 = vmul.f32 %v701, %v744
  %v747 = vmul.f32 %v702, %v744
  %v748 = vmul.f32 %v703, %v744
  %v749 = vmul.f32 %v704, %v744
  %v750 = vmul.f32 %v705, %v744
  %v751 = vmul.f32 %v706, %v744
  %v752 = vmul.f32 %v707, %v744
  %v753 = vmul.f32 %v708, %v744
  %v754 = vmul.f32 %v709, %v744
  %v755 = vmul.f32 %v710, %v744
  %v756 = vmul.f32 %v711, %v744
  %v757 = vmul.f32 %v712, %v744
  %v758 = vmul.f32 %v713, %v744
  %v759 = vmul.f32 %v714, %v744
  %v760 = vmul.f32 %v715, %v744
  %v761 = vmul.f32 %v716, %v744
  %v762 = vmul.f32 %v717, %v744
  %v763 = vmul.f32 %v718, %v744
  %v764 = vmul.f32 %v719, %v744
  %v765 = vmul.f32 %v720, %v744
  %v766 = vmul.f32 %v721, %v744
  %v767 = vmul.f32 %v722, %v744
  %v768 = vmul.f32 %v723, %v744
  %v769 = vmul.f32 %v724, %v744
  %v770 = vmul.f32 %v725, %v744
  %v771 = vmul.f32 %v726, %v744
  %v772 = vmul.f32 %v727, %v744
  %v773 = vmul.f32 %v728, %v744
  %v774 = vmul.f32 %v729, %v744
  %v775 = vmul.f32 %v730, %v744
  %v776 = vmul.f32 %v731, %v744
  %v777 = vmul.f32 %v732, %v744
  %v778 = vmul.f32 %v733, %v744
  %v779 = vmul.f32 %v734, %v744
  %v780 = vmul.f32 %v735, %v744
  %v781 = vmul.f32 %v736, %v744
  %v782 = vmul.f32 %v737, %v744
  %v783 = vmul.f32 %v738, %v744
  %v784 = vmul.f32 %v739, %v744
  %v785 = vmul.f32 %v740, %v744
  %v786 = vmul.f32 %v741, %v744
  %v787 = vmul.f32 %v742, %v744
  %v788 = vmul.f32 %v745, 0.2
  %v789 = vmul.f32 %v746, 0.2
  %v790 = vmul.f32 %v747, 0.2
  %v791 = vmul.f32 %v748, 0.2
  %v792 = vmul.f32 %v749, 0.2
  %v793 = vmul.f32 %v750, 0.2
  %v794 = vmul.f32 %v751, 0.2
  %v795 = vmul.f32 %v752, 0.2
  %v796 = vmul.f32 %v753, 0.2
  %v797 = vmul.f32 %v754, 0.2
  %v798 = vmul.f32 %v755, 0.2
  %v799 = vmul.f32 %v756, 0.2
  %v800 = vmul.f32 %v757, 0.2
  %v801 = vmul.f32 %v758, 0.2
  %v802 = vmul.f32 %v759, 0.2
  %v803 = vmul.f32 %v760, 0.2
  %v804 = vmul.f32 %v761, 0.2
  %v805 = vmul.f32 %v762, 0.2
  %v806 = vmul.f32 %v763, 0.2
  %v807 = vmul.f32 %v764, 0.2
  %v808 = vmul.f32 %v765, 0.2
  %v809 = vmul.f32 %v766, 0.2
  %v810 = vmul.f32 %v767, 0.2
  %v811 = vmul.f32 %v768, 0.2
  %v812 = vmul.f32 %v769, 0.2
  %v813 = vmul.f32 %v770, 0.2
  %v814 = vmul.f32 %v771, 0.2
  %v815 = vmul.f32 %v772, 0.2
  %v816 = vmul.f32 %v773, 0.2
  %v817 = vmul.f32 %v774, 0.2
  %v818 = vmul.f32 %v775, 0.2
  %v819 = vmul.f32 %v776, 0.2
  %v820 = vmul.f32 %v777, 0.2
  %v821 = vmul.f32 %v778, 0.2
  %v822 = vmul.f32 %v779, 0.2
  %v823 = vmul.f32 %v780, 0.2
  %v824 = vmul.f32 %v781, 0.2
  %v825 = vmul.f32 %v782, 0.2
  %v826 = vmul.f32 %v783, 0.2
  %v827 = vmul.f32 %v784, 0.2
  %v828 = vmul.f32 %v785, 0.2
  %v829 = vmul.f32 %v786, 0.2
  %v830 = vmul.f32 %v787, 0.2
  %v831 = vmax.f32 %v745, %v788
  %v832 = vmax.f32 %v746, %v789
  %v833 = vmax.f32 %v747, %v790
  %v834 = vmax.f32 %v748, %v791
  %v835 = vmax.f32 %v749, %v792
  %v836 = vmax.f32 %v750, %v793
  %v837 = vmax.f32 %v751, %v794
  %v838 = vmax.f32 %v752, %v795
  %v839 = vmax.f32 %v753, %v796
  %v840 = vmax.f32 %v754, %v797
  %v841 = vmax.f32 %v755, %v798
  %v842 = vmax.f32 %v756, %v799
  %v843 = vmax.f32 %v757, %v800
  %v844 = vmax.f32 %v758, %v801
  %v845 = vmax.f32 %v759, %v802
  %v846 = vmax.f32 %v760, %v803
  %v847 = vmax.f32 %v761, %v804
  %v848 = vmax.f32 %v762, %v805
  %v849 = vmax.f32 %v763, %v806
  %v850 = vmax.f32 %v764, %v807
  %v851 = vmax.f32 %v765, %v808
  %v852 = vmax.f32 %v766, %v809
  %v853 = vmax.f32 %v767, %v810
  %v854 = vmax.f32 %v768, %v811
  %v855 = vmax.f32 %v769, %v812
  %v856 = vmax.f32 %v770, %v813
  %v857 = vmax.f32 %v771, %v814
  %v858 = vmax.f32 %v772, %v815
  %v859 = vmax.f32 %v773, %v816
  %v860 = vmax.f32 %v774, %v817
  %v861 = vmax.f32 %v775, %v818
  %v862 = vmax.f32 %v776, %v819
  %v863 = vmax.f32 %v777, %v820
  %v864 = vmax.f32 %v778, %v821
  %v865 = vmax.f32 %v779, %v822
  %v866 = vmax.f32 %v780, %v823
  %v867 = vmax.f32 %v781, %v824
  %v868 = vmax.f32 %v782, %v825
  %v869 = vmax.f32 %v783, %v826
  %v870 = vmax.f32 %v784, %v827
  %v871 = vmax.f32 %v785, %v828
  %v872 = vmax.f32 %v786, %v829
  %v873 = vmax.f32 %v787, %v830
  %v874 = vpack.c.bf16 %v832, %v831
  %v875 = vpack.c.bf16 %v834, %v833
  %v876 = vpack.c.bf16 %v836, %v835
  %v877 = vpack.c.bf16 %v838, %v837
  %v878 = vpack.c.bf16 %v840, %v839
  %v879 = vpack.c.bf16 %v842, %v841
  %v880 = vpack.c.bf16 %v844, %v843
  %v881 = vpack.c.bf16 %v846, %v845
  %v882 = vpack.c.bf16 %v848, %v847
  %v883 = vpack.c.bf16 %v850, %v849
  %v884 = vpack.c.bf16 %v852, %v851
  %v885 = vpack.c.bf16 %v854, %v853
  %v886 = vpack.c.bf16 %v856, %v855
  %v887 = vpack.c.bf16 %v858, %v857
  %v888 = vpack.c.bf16 %v860, %v859
  %v889 = vpack.c.bf16 %v862, %v861
  %v890 = vpack.c.bf16 %v864, %v863
  %v891 = vpack.c.bf16 %v866, %v865
  %v892 = vpack.c.bf16 %v868, %v867
  %v893 = vpack.c.bf16 %v870, %v869
  %v894 = vpack.c.bf16 %v872, %v871
  %v895 = vpack.c.bf16 %v873, %v873
  %v896 = vld [vmem:[%s3] sm:$0xff]
  %v897 = vld [vmem:[%s3 + $0x8] sm:$0xff]
  %v898 = vld [vmem:[%s3 + $0x10] sm:$0xff]
  %v899 = vld [vmem:[%s3 + $0x18] sm:$0xff]
  %v904 = vunpack.c.l.b16 %v896
  %v905 = vunpack.c.h.b16 %v896
  %v906 = vunpack.c.l.b16 %v897
  %v907 = vunpack.c.h.b16 %v897
  %v908 = vunpack.c.l.b16 %v898
  %v909 = vunpack.c.h.b16 %v898
  %v910 = vunpack.c.l.b16 %v899
  %v911 = vunpack.c.h.b16 %v899
  %v912 = vpack.c.b16 %v908, %v904
  %v913 = vpack.c.b16 %v909, %v905
  %v914 = vpack.c.b16 %v910, %v906
  %v915 = vpack.c.b16 %v911, %v907
  %v921 = vsel %vm195, %v874, 0
  %v924 = vsel %vm195, %v875, 0
  %v927 = vsel %vm195, %v876, 0
  %v930 = vsel %vm195, %v877, 0
  %v933 = vsel %vm195, %v878, 0
  %v936 = vsel %vm195, %v879, 0
  %v939 = vsel %vm195, %v880, 0
  %v942 = vsel %vm195, %v881, 0
  %v945 = vsel %vm195, %v882, 0
  %v948 = vsel %vm195, %v883, 0
  %v951 = vsel %vm195, %v884, 0
  %v954 = vsel %vm195, %v885, 0
  %v957 = vsel %vm195, %v886, 0
  %v960 = vsel %vm195, %v887, 0
  %v963 = vsel %vm195, %v888, 0
  %v966 = vsel %vm195, %v889, 0
  %v969 = vsel %vm195, %v890, 0
  %v972 = vsel %vm195, %v891, 0
  %v975 = vsel %vm195, %v892, 0
  %v978 = vsel %vm195, %v893, 0
  %v981 = vsel %vm195, %v894, 0
  %v984 = vsel %vm195, %v895, 0
  %986 = vmatprep.subr.bf16.mxu0 %v913
  %987 = vmatpush1.bf16.msra.mxu0 %v912
  %988 = vmatprep.subr.bf16.mxu0 0
  %989 = vmatpush1.bf16.msra.mxu0 0
  %990 = vmatprep.subr.bf16.mxu0 0
  %991 = vmatpush1.bf16.msra.mxu0 0
  %992 = vmatprep.subr.bf16.mxu0 0
  %993 = vmatpush1.bf16.msra.mxu0 0
  %994 = vmatprep.subr.bf16.mxu0 0
  %995 = vmatpush1.bf16.msra.mxu0 0
  %996 = vmatprep.subr.bf16.mxu0 0
  %997 = vmatpush1.bf16.msra.mxu0 0
  %998 = vmatprep.subr.bf16.mxu0 0
  %999 = vmatpush1.bf16.msra.mxu0 0
  %1000 = vmatprep.subr.bf16.mxu0 0
  %1001 = vmatpush1.bf16.msra.mxu0 0
  %1002 = vmatprep.subr.bf16.mxu0 0
  %1003 = vmatpush1.bf16.msra.mxu0 0
  %1004 = vmatprep.subr.bf16.mxu0 0
  %1005 = vmatpush1.bf16.msra.mxu0 0
  %1006 = vmatprep.subr.bf16.mxu0 0
  %1007 = vmatpush1.bf16.msra.mxu0 0
  %1008 = vmatprep.subr.bf16.mxu0 0
  %1009 = vmatpush1.bf16.msra.mxu0 0
  %1010 = vmatprep.subr.bf16.mxu0 0
  %1011 = vmatpush1.bf16.msra.mxu0 0
  %1012 = vmatprep.subr.bf16.mxu0 0
  %1013 = vmatpush1.bf16.msra.mxu0 0
  %1014 = vmatprep.subr.bf16.mxu0 0
  %1015 = vmatpush1.bf16.msra.mxu0 0
  %1016 = vmatprep.subr.bf16.mxu0 0
  %1017 = vmatpush1.bf16.msra.mxu0 0
  %1018 = vmatprep.mubr.bf16.mxu0 0
  %1019 = vmatmul.mubr.bf16.gmra.mrb[0].mxu0 %v921
  %v1020 = vpop.f32.mrb[0].mxu0
  %v1021 = vadd.f32 0.0, %v1020
  %v1022 = vpop.f32.mrb[0].mxu0
  %v1023 = vadd.f32 0.0, %v1022
  %v1024 = vpop.f32.mrb[0].mxu0
  %v1025 = vadd.f32 0.0, %v1024
  %v1026 = vpop.f32.mrb[0].mxu0
  %v1027 = vadd.f32 0.0, %v1026
  %1028 = vmatprep.mubr.bf16.mxu0 0
  %1029 = vmatmul.mubr.bf16.gmra.mrb[0].mxu0 %v924
  %v1030 = vpop.f32.mrb[0].mxu0
  %v1031 = vadd.f32 0.0, %v1030
  %v1032 = vpop.f32.mrb[0].mxu0
  %v1033 = vadd.f32 0.0, %v1032
  %v1034 = vpop.f32.mrb[0].mxu0
  %v1035 = vadd.f32 0.0, %v1034
  %v1036 = vpop.f32.mrb[0].mxu0
  %v1037 = vadd.f32 0.0, %v1036
  %1038 = vmatprep.mubr.bf16.mxu0 0
  %1039 = vmatmul.mubr.bf16.gmra.mrb[0].mxu0 %v927
  %v1040 = vpop.f32.mrb[0].mxu0
  %v1041 = vadd.f32 0.0, %v1040
  %v1042 = vpop.f32.mrb[0].mxu0
  %v1043 = vadd.f32 0.0, %v1042
  %v1044 = vpop.f32.mrb[0].mxu0
  %v1045 = vadd.f32 0.0, %v1044
  %v1046 = vpop.f32.mrb[0].mxu0
  %v1047 = vadd.f32 0.0, %v1046
  %1048 = vmatprep.mubr.bf16.mxu0 0
  %1049 = vmatmul.mubr.bf16.gmra.mrb[0].mxu0 %v930
  %v1050 = vpop.f32.mrb[0].mxu0
  %v1051 = vadd.f32 0.0, %v1050
  %v1052 = vpop.f32.mrb[0].mxu0
  %v1053 = vadd.f32 0.0, %v1052
  %v1054 = vpop.f32.mrb[0].mxu0
  %v1055 = vadd.f32 0.0, %v1054
  %v1056 = vpop.f32.mrb[0].mxu0
  %v1057 = vadd.f32 0.0, %v1056
  %1058 = vmatprep.mubr.bf16.mxu0 0
  %1059 = vmatmul.mubr.bf16.gmra.mrb[0].mxu0 %v933
  %v1060 = vpop.f32.mrb[0].mxu0
  %v1061 = vadd.f32 0.0, %v1060
  %v1062 = vpop.f32.mrb[0].mxu0
  %v1063 = vadd.f32 0.0, %v1062
  %v1064 = vpop.f32.mrb[0].mxu0
  %v1065 = vadd.f32 0.0, %v1064
  %v1066 = vpop.f32.mrb[0].mxu0
  %v1067 = vadd.f32 0.0, %v1066
  %1068 = vmatprep.mubr.bf16.mxu0 0
  %1069 = vmatmul.mubr.bf16.gmra.mrb[0].mxu0 %v936
  %v1070 = vpop.f32.mrb[0].mxu0
  %v1071 = vadd.f32 0.0, %v1070
  %v1072 = vpop.f32.mrb[0].mxu0
  %v1073 = vadd.f32 0.0, %v1072
  %v1074 = vpop.f32.mrb[0].mxu0
  %v1075 = vadd.f32 0.0, %v1074
  %v1076 = vpop.f32.mrb[0].mxu0
  %v1077 = vadd.f32 0.0, %v1076
  %1078 = vmatprep.mubr.bf16.mxu0 0
  %1079 = vmatmul.mubr.bf16.gmra.mrb[0].mxu0 %v939
  %v1080 = vpop.f32.mrb[0].mxu0
  %v1081 = vadd.f32 0.0, %v1080
  %v1082 = vpop.f32.mrb[0].mxu0
  %v1083 = vadd.f32 0.0, %v1082
  %v1084 = vpop.f32.mrb[0].mxu0
  %v1085 = vadd.f32 0.0, %v1084
  %v1086 = vpop.f32.mrb[0].mxu0
  %v1087 = vadd.f32 0.0, %v1086
  %1088 = vmatprep.mubr.bf16.mxu0 0
  %1089 = vmatmul.mubr.bf16.gmra.mrb[0].mxu0 %v942
  %v1090 = vpop.f32.mrb[0].mxu0
  %v1091 = vadd.f32 0.0, %v1090
  %v1092 = vpop.f32.mrb[0].mxu0
  %v1093 = vadd.f32 0.0, %v1092
  %v1094 = vpop.f32.mrb[0].mxu0
  %v1095 = vadd.f32 0.0, %v1094
  %v1096 = vpop.f32.mrb[0].mxu0
  %v1097 = vadd.f32 0.0, %v1096
  %1098 = vmatprep.mubr.bf16.mxu0 0
  %1099 = vmatmul.mubr.bf16.gmra.mrb[0].mxu0 %v945
  %v1100 = vpop.f32.mrb[0].mxu0
  %v1101 = vadd.f32 0.0, %v1100
  %v1102 = vpop.f32.mrb[0].mxu0
  %v1103 = vadd.f32 0.0, %v1102
  %v1104 = vpop.f32.mrb[0].mxu0
  %v1105 = vadd.f32 0.0, %v1104
  %v1106 = vpop.f32.mrb[0].mxu0
  %v1107 = vadd.f32 0.0, %v1106
  %1108 = vmatprep.mubr.bf16.mxu0 0
  %1109 = vmatmul.mubr.bf16.gmra.mrb[0].mxu0 %v948
  %v1110 = vpop.f32.mrb[0].mxu0
  %v1111 = vadd.f32 0.0, %v1110
  %v1112 = vpop.f32.mrb[0].mxu0
  %v1113 = vadd.f32 0.0, %v1112
  %v1114 = vpop.f32.mrb[0].mxu0
  %v1115 = vadd.f32 0.0, %v1114
  %v1116 = vpop.f32.mrb[0].mxu0
  %v1117 = vadd.f32 0.0, %v1116
  %1118 = vmatprep.mubr.bf16.mxu0 0
  %1119 = vmatmul.mubr.bf16.gmra.mrb[0].mxu0 %v951
  %v1120 = vpop.f32.mrb[0].mxu0
  %v1121 = vadd.f32 0.0, %v1120
  %v1122 = vpop.f32.mrb[0].mxu0
  %v1123 = vadd.f32 0.0, %v1122
  %v1124 = vpop.f32.mrb[0].mxu0
  %v1125 = vadd.f32 0.0, %v1124
  %v1126 = vpop.f32.mrb[0].mxu0
  %v1127 = vadd.f32 0.0, %v1126
  %1128 = vmatprep.mubr.bf16.mxu0 0
  %1129 = vmatmul.mubr.bf16.gmra.mrb[0].mxu0 %v954
  %v1130 = vpop.f32.mrb[0].mxu0
  %v1131 = vadd.f32 0.0, %v1130
  %v1132 = vpop.f32.mrb[0].mxu0
  %v1133 = vadd.f32 0.0, %v1132
  %v1134 = vpop.f32.mrb[0].mxu0
  %v1135 = vadd.f32 0.0, %v1134
  %v1136 = vpop.f32.mrb[0].mxu0
  %v1137 = vadd.f32 0.0, %v1136
  %1138 = vmatprep.mubr.bf16.mxu0 0
  %1139 = vmatmul.mubr.bf16.gmra.mrb[0].mxu0 %v957
  %v1140 = vpop.f32.mrb[0].mxu0
  %v1141 = vadd.f32 0.0, %v1140
  %v1142 = vpop.f32.mrb[0].mxu0
  %v1143 = vadd.f32 0.0, %v1142
  %v1144 = vpop.f32.mrb[0].mxu0
  %v1145 = vadd.f32 0.0, %v1144
  %v1146 = vpop.f32.mrb[0].mxu0
  %v1147 = vadd.f32 0.0, %v1146
  %1148 = vmatprep.mubr.bf16.mxu0 0
  %1149 = vmatmul.mubr.bf16.gmra.mrb[0].mxu0 %v960
  %v1150 = vpop.f32.mrb[0].mxu0
  %v1151 = vadd.f32 0.0, %v1150
  %v1152 = vpop.f32.mrb[0].mxu0
  %v1153 = vadd.f32 0.0, %v1152
  %v1154 = vpop.f32.mrb[0].mxu0
  %v1155 = vadd.f32 0.0, %v1154
  %v1156 = vpop.f32.mrb[0].mxu0
  %v1157 = vadd.f32 0.0, %v1156
  %1158 = vmatprep.mubr.bf16.mxu0 0
  %1159 = vmatmul.mubr.bf16.gmra.mrb[0].mxu0 %v963
  %v1160 = vpop.f32.mrb[0].mxu0
  %v1161 = vadd.f32 0.0, %v1160
  %v1162 = vpop.f32.mrb[0].mxu0
  %v1163 = vadd.f32 0.0, %v1162
  %v1164 = vpop.f32.mrb[0].mxu0
  %v1165 = vadd.f32 0.0, %v1164
  %v1166 = vpop.f32.mrb[0].mxu0
  %v1167 = vadd.f32 0.0, %v1166
  %1168 = vmatprep.mubr.bf16.mxu0 0
  %1169 = vmatmul.mubr.bf16.gmra.mrb[0].mxu0 %v966
  %v1170 = vpop.f32.mrb[0].mxu0
  %v1171 = vadd.f32 0.0, %v1170
  %v1172 = vpop.f32.mrb[0].mxu0
  %v1173 = vadd.f32 0.0, %v1172
  %v1174 = vpop.f32.mrb[0].mxu0
  %v1175 = vadd.f32 0.0, %v1174
  %v1176 = vpop.f32.mrb[0].mxu0
  %v1177 = vadd.f32 0.0, %v1176
  %1178 = vmatprep.mubr.bf16.mxu0 0
  %1179 = vmatmul.mubr.bf16.gmra.mrb[0].mxu0 %v969
  %v1180 = vpop.f32.mrb[0].mxu0
  %v1181 = vadd.f32 0.0, %v1180
  %v1182 = vpop.f32.mrb[0].mxu0
  %v1183 = vadd.f32 0.0, %v1182
  %v1184 = vpop.f32.mrb[0].mxu0
  %v1185 = vadd.f32 0.0, %v1184
  %v1186 = vpop.f32.mrb[0].mxu0
  %v1187 = vadd.f32 0.0, %v1186
  %1188 = vmatprep.mubr.bf16.mxu0 0
  %1189 = vmatmul.mubr.bf16.gmra.mrb[0].mxu0 %v972
  %v1190 = vpop.f32.mrb[0].mxu0
  %v1191 = vadd.f32 0.0, %v1190
  %v1192 = vpop.f32.mrb[0].mxu0
  %v1193 = vadd.f32 0.0, %v1192
  %v1194 = vpop.f32.mrb[0].mxu0
  %v1195 = vadd.f32 0.0, %v1194
  %v1196 = vpop.f32.mrb[0].mxu0
  %v1197 = vadd.f32 0.0, %v1196
  %1198 = vmatprep.mubr.bf16.mxu0 0
  %1199 = vmatmul.mubr.bf16.gmra.mrb[0].mxu0 %v975
  %v1200 = vpop.f32.mrb[0].mxu0
  %v1201 = vadd.f32 0.0, %v1200
  %v1202 = vpop.f32.mrb[0].mxu0
  %v1203 = vadd.f32 0.0, %v1202
  %v1204 = vpop.f32.mrb[0].mxu0
  %v1205 = vadd.f32 0.0, %v1204
  %v1206 = vpop.f32.mrb[0].mxu0
  %v1207 = vadd.f32 0.0, %v1206
  %1208 = vmatprep.mubr.bf16.mxu0 0
  %1209 = vmatmul.mubr.bf16.gmra.mrb[0].mxu0 %v978
  %v1210 = vpop.f32.mrb[0].mxu0
  %v1211 = vadd.f32 0.0, %v1210
  %v1212 = vpop.f32.mrb[0].mxu0
  %v1213 = vadd.f32 0.0, %v1212
  %v1214 = vpop.f32.mrb[0].mxu0
  %v1215 = vadd.f32 0.0, %v1214
  %v1216 = vpop.f32.mrb[0].mxu0
  %v1217 = vadd.f32 0.0, %v1216
  %1218 = vmatprep.mubr.bf16.mxu0 0
  %1219 = vmatmul.mubr.bf16.gmra.mrb[0].mxu0 %v981
  %v1220 = vpop.f32.mrb[0].mxu0
  %v1221 = vadd.f32 0.0, %v1220
  %v1222 = vpop.f32.mrb[0].mxu0
  %v1223 = vadd.f32 0.0, %v1222
  %v1224 = vpop.f32.mrb[0].mxu0
  %v1225 = vadd.f32 0.0, %v1224
  %v1226 = vpop.f32.mrb[0].mxu0
  %v1227 = vadd.f32 0.0, %v1226
  %1228 = vmatprep.mubr.bf16.mxu0 0
  %1229 = vmatmul.mubr.bf16.gmra.mrb[0].mxu0 %v984
  %v1230 = vpop.f32.mrb[0].mxu0
  %v1231 = vadd.f32 0.0, %v1230
  %v1232 = vpop.f32.mrb[0].mxu0
  %v1233 = vadd.f32 0.0, %v1232
  %v1234 = vpop.f32.mrb[0].mxu0
  %v1235 = vpop.f32.mrb[0].mxu0
  %1236 = vdwg.mxu0
  %1237 = vmatprep.subr.bf16.mxu0 %v915
  %1238 = vmatpush1.bf16.msra.mxu0 %v914
  %1239 = vmatprep.subr.bf16.mxu0 0
  %1240 = vmatpush1.bf16.msra.mxu0 0
  %1241 = vmatprep.subr.bf16.mxu0 0
  %1242 = vmatpush1.bf16.msra.mxu0 0
  %1243 = vmatprep.subr.bf16.mxu0 0
  %1244 = vmatpush1.bf16.msra.mxu0 0
  %1245 = vmatprep.subr.bf16.mxu0 0
  %1246 = vmatpush1.bf16.msra.mxu0 0
  %1247 = vmatprep.subr.bf16.mxu0 0
  %1248 = vmatpush1.bf16.msra.mxu0 0
  %1249 = vmatprep.subr.bf16.mxu0 0
  %1250 = vmatpush1.bf16.msra.mxu0 0
  %1251 = vmatprep.subr.bf16.mxu0 0
  %1252 = vmatpush1.bf16.msra.mxu0 0
  %1253 = vmatprep.subr.bf16.mxu0 0
  %1254 = vmatpush1.bf16.msra.mxu0 0
  %1255 = vmatprep.subr.bf16.mxu0 0
  %1256 = vmatpush1.bf16.msra.mxu0 0
  %1257 = vmatprep.subr.bf16.mxu0 0
  %1258 = vmatpush1.bf16.msra.mxu0 0
  %1259 = vmatprep.subr.bf16.mxu0 0
  %1260 = vmatpush1.bf16.msra.mxu0 0
  %1261 = vmatprep.subr.bf16.mxu0 0
  %1262 = vmatpush1.bf16.msra.mxu0 0
  %1263 = vmatprep.subr.bf16.mxu0 0
  %1264 = vmatpush1.bf16.msra.mxu0 0
  %1265 = vmatprep.subr.bf16.mxu0 0
  %1266 = vmatpush1.bf16.msra.mxu0 0
  %1267 = vmatprep.subr.bf16.mxu0 0
  %1268 = vmatpush1.bf16.msra.mxu0 0
  %1269 = vmatprep.mubr.bf16.mxu0 0
  %1270 = vmatmul.mubr.bf16.gmra.mrb[0].mxu0 %v921
  %v1271 = vpop.f32.mrb[0].mxu0
  %v1272 = vadd.f32 0.0, %v1271
  %v1273 = vpop.f32.mrb[0].mxu0
  %v1274 = vadd.f32 0.0, %v1273
  %v1275 = vpop.f32.mrb[0].mxu0
  %v1276 = vadd.f32 0.0, %v1275
  %v1277 = vpop.f32.mrb[0].mxu0
  %v1278 = vadd.f32 0.0, %v1277
  %1279 = vmatprep.mubr.bf16.mxu0 0
  %1280 = vmatmul.mubr.bf16.gmra.mrb[0].mxu0 %v924
  %v1281 = vpop.f32.mrb[0].mxu0
  %v1282 = vadd.f32 0.0, %v1281
  %v1283 = vpop.f32.mrb[0].mxu0
  %v1284 = vadd.f32 0.0, %v1283
  %v1285 = vpop.f32.mrb[0].mxu0
  %v1286 = vadd.f32 0.0, %v1285
  %v1287 = vpop.f32.mrb[0].mxu0
  %v1288 = vadd.f32 0.0, %v1287
  %1289 = vmatprep.mubr.bf16.mxu0 0
  %1290 = vmatmul.mubr.bf16.gmra.mrb[0].mxu0 %v927
  %v1291 = vpop.f32.mrb[0].mxu0
  %v1292 = vadd.f32 0.0, %v1291
  %v1293 = vpop.f32.mrb[0].mxu0
  %v1294 = vadd.f32 0.0, %v1293
  %v1295 = vpop.f32.mrb[0].mxu0
  %v1296 = vadd.f32 0.0, %v1295
  %v1297 = vpop.f32.mrb[0].mxu0
  %v1298 = vadd.f32 0.0, %v1297
  %1299 = vmatprep.mubr.bf16.mxu0 0
  %1300 = vmatmul.mubr.bf16.gmra.mrb[0].mxu0 %v930
  %v1301 = vpop.f32.mrb[0].mxu0
  %v1302 = vadd.f32 0.0, %v1301
  %v1303 = vpop.f32.mrb[0].mxu0
  %v1304 = vadd.f32 0.0, %v1303
  %v1305 = vpop.f32.mrb[0].mxu0
  %v1306 = vadd.f32 0.0, %v1305
  %v1307 = vpop.f32.mrb[0].mxu0
  %v1308 = vadd.f32 0.0, %v1307
  %1309 = vmatprep.mubr.bf16.mxu0 0
  %1310 = vmatmul.mubr.bf16.gmra.mrb[0].mxu0 %v933
  %v1311 = vpop.f32.mrb[0].mxu0
  %v1312 = vadd.f32 0.0, %v1311
  %v1313 = vpop.f32.mrb[0].mxu0
  %v1314 = vadd.f32 0.0, %v1313
  %v1315 = vpop.f32.mrb[0].mxu0
  %v1316 = vadd.f32 0.0, %v1315
  %v1317 = vpop.f32.mrb[0].mxu0
  %v1318 = vadd.f32 0.0, %v1317
  %1319 = vmatprep.mubr.bf16.mxu0 0
  %1320 = vmatmul.mubr.bf16.gmra.mrb[0].mxu0 %v936
  %v1321 = vpop.f32.mrb[0].mxu0
  %v1322 = vadd.f32 0.0, %v1321
  %v1323 = vpop.f32.mrb[0].mxu0
  %v1324 = vadd.f32 0.0, %v1323
  %v1325 = vpop.f32.mrb[0].mxu0
  %v1326 = vadd.f32 0.0, %v1325
  %v1327 = vpop.f32.mrb[0].mxu0
  %v1328 = vadd.f32 0.0, %v1327
  %1329 = vmatprep.mubr.bf16.mxu0 0
  %1330 = vmatmul.mubr.bf16.gmra.mrb[0].mxu0 %v939
  %v1331 = vpop.f32.mrb[0].mxu0
  %v1332 = vadd.f32 0.0, %v1331
  %v1333 = vpop.f32.mrb[0].mxu0
  %v1334 = vadd.f32 0.0, %v1333
  %v1335 = vpop.f32.mrb[0].mxu0
  %v1336 = vadd.f32 0.0, %v1335
  %v1337 = vpop.f32.mrb[0].mxu0
  %v1338 = vadd.f32 0.0, %v1337
  %1339 = vmatprep.mubr.bf16.mxu0 0
  %1340 = vmatmul.mubr.bf16.gmra.mrb[0].mxu0 %v942
  %v1341 = vpop.f32.mrb[0].mxu0
  %v1342 = vadd.f32 0.0, %v1341
  %v1343 = vpop.f32.mrb[0].mxu0
  %v1344 = vadd.f32 0.0, %v1343
  %v1345 = vpop.f32.mrb[0].mxu0
  %v1346 = vadd.f32 0.0, %v1345
  %v1347 = vpop.f32.mrb[0].mxu0
  %v1348 = vadd.f32 0.0, %v1347
  %1349 = vmatprep.mubr.bf16.mxu0 0
  %1350 = vmatmul.mubr.bf16.gmra.mrb[0].mxu0 %v945
  %v1351 = vpop.f32.mrb[0].mxu0
  %v1352 = vadd.f32 0.0, %v1351
  %v1353 = vpop.f32.mrb[0].mxu0
  %v1354 = vadd.f32 0.0, %v1353
  %v1355 = vpop.f32.mrb[0].mxu0
  %v1356 = vadd.f32 0.0, %v1355
  %v1357 = vpop.f32.mrb[0].mxu0
  %v1358 = vadd.f32 0.0, %v1357
  %1359 = vmatprep.mubr.bf16.mxu0 0
  %1360 = vmatmul.mubr.bf16.gmra.mrb[0].mxu0 %v948
  %v1361 = vpop.f32.mrb[0].mxu0
  %v1362 = vadd.f32 0.0, %v1361
  %v1363 = vpop.f32.mrb[0].mxu0
  %v1364 = vadd.f32 0.0, %v1363
  %v1365 = vpop.f32.mrb[0].mxu0
  %v1366 = vadd.f32 0.0, %v1365
  %v1367 = vpop.f32.mrb[0].mxu0
  %v1368 = vadd.f32 0.0, %v1367
  %1369 = vmatprep.mubr.bf16.mxu0 0
  %1370 = vmatmul.mubr.bf16.gmra.mrb[0].mxu0 %v951
  %v1371 = vpop.f32.mrb[0].mxu0
  %v1372 = vadd.f32 0.0, %v1371
  %v1373 = vpop.f32.mrb[0].mxu0
  %v1374 = vadd.f32 0.0, %v1373
  %v1375 = vpop.f32.mrb[0].mxu0
  %v1376 = vadd.f32 0.0, %v1375
  %v1377 = vpop.f32.mrb[0].mxu0
  %v1378 = vadd.f32 0.0, %v1377
  %1379 = vmatprep.mubr.bf16.mxu0 0
  %1380 = vmatmul.mubr.bf16.gmra.mrb[0].mxu0 %v954
  %v1381 = vpop.f32.mrb[0].mxu0
  %v1382 = vadd.f32 0.0, %v1381
  %v1383 = vpop.f32.mrb[0].mxu0
  %v1384 = vadd.f32 0.0, %v1383
  %v1385 = vpop.f32.mrb[0].mxu0
  %v1386 = vadd.f32 0.0, %v1385
  %v1387 = vpop.f32.mrb[0].mxu0
  %v1388 = vadd.f32 0.0, %v1387
  %1389 = vmatprep.mubr.bf16.mxu0 0
  %1390 = vmatmul.mubr.bf16.gmra.mrb[0].mxu0 %v957
  %v1391 = vpop.f32.mrb[0].mxu0
  %v1392 = vadd.f32 0.0, %v1391
  %v1393 = vpop.f32.mrb[0].mxu0
  %v1394 = vadd.f32 0.0, %v1393
  %v1395 = vpop.f32.mrb[0].mxu0
  %v1396 = vadd.f32 0.0, %v1395
  %v1397 = vpop.f32.mrb[0].mxu0
  %v1398 = vadd.f32 0.0, %v1397
  %1399 = vmatprep.mubr.bf16.mxu0 0
  %1400 = vmatmul.mubr.bf16.gmra.mrb[0].mxu0 %v960
  %v1401 = vpop.f32.mrb[0].mxu0
  %v1402 = vadd.f32 0.0, %v1401
  %v1403 = vpop.f32.mrb[0].mxu0
  %v1404 = vadd.f32 0.0, %v1403
  %v1405 = vpop.f32.mrb[0].mxu0
  %v1406 = vadd.f32 0.0, %v1405
  %v1407 = vpop.f32.mrb[0].mxu0
  %v1408 = vadd.f32 0.0, %v1407
  %1409 = vmatprep.mubr.bf16.mxu0 0
  %1410 = vmatmul.mubr.bf16.gmra.mrb[0].mxu0 %v963
  %v1411 = vpop.f32.mrb[0].mxu0
  %v1412 = vadd.f32 0.0, %v1411
  %v1413 = vpop.f32.mrb[0].mxu0
  %v1414 = vadd.f32 0.0, %v1413
  %v1415 = vpop.f32.mrb[0].mxu0
  %v1416 = vadd.f32 0.0, %v1415
  %v1417 = vpop.f32.mrb[0].mxu0
  %v1418 = vadd.f32 0.0, %v1417
  %1419 = vmatprep.mubr.bf16.mxu0 0
  %1420 = vmatmul.mubr.bf16.gmra.mrb[0].mxu0 %v966
  %v1421 = vpop.f32.mrb[0].mxu0
  %v1422 = vadd.f32 0.0, %v1421
  %v1423 = vpop.f32.mrb[0].mxu0
  %v1424 = vadd.f32 0.0, %v1423
  %v1425 = vpop.f32.mrb[0].mxu0
  %v1426 = vadd.f32 0.0, %v1425
  %v1427 = vpop.f32.mrb[0].mxu0
  %v1428 = vadd.f32 0.0, %v1427
  %1429 = vmatprep.mubr.bf16.mxu0 0
  %1430 = vmatmul.mubr.bf16.gmra.mrb[0].mxu0 %v969
  %v1431 = vpop.f32.mrb[0].mxu0
  %v1432 = vadd.f32 0.0, %v1431
  %v1433 = vpop.f32.mrb[0].mxu0
  %v1434 = vadd.f32 0.0, %v1433
  %v1435 = vpop.f32.mrb[0].mxu0
  %v1436 = vadd.f32 0.0, %v1435
  %v1437 = vpop.f32.mrb[0].mxu0
  %v1438 = vadd.f32 0.0, %v1437
  %1439 = vmatprep.mubr.bf16.mxu0 0
  %1440 = vmatmul.mubr.bf16.gmra.mrb[0].mxu0 %v972
  %v1441 = vpop.f32.mrb[0].mxu0
  %v1442 = vadd.f32 0.0, %v1441
  %v1443 = vpop.f32.mrb[0].mxu0
  %v1444 = vadd.f32 0.0, %v1443
  %v1445 = vpop.f32.mrb[0].mxu0
  %v1446 = vadd.f32 0.0, %v1445
  %v1447 = vpop.f32.mrb[0].mxu0
  %v1448 = vadd.f32 0.0, %v1447
  %1449 = vmatprep.mubr.bf16.mxu0 0
  %1450 = vmatmul.mubr.bf16.gmra.mrb[0].mxu0 %v975
  %v1451 = vpop.f32.mrb[0].mxu0
  %v1452 = vadd.f32 0.0, %v1451
  %v1453 = vpop.f32.mrb[0].mxu0
  %v1454 = vadd.f32 0.0, %v1453
  %v1455 = vpop.f32.mrb[0].mxu0
  %v1456 = vadd.f32 0.0, %v1455
  %v1457 = vpop.f32.mrb[0].mxu0
  %v1458 = vadd.f32 0.0, %v1457
  %1459 = vmatprep.mubr.bf16.mxu0 0
  %1460 = vmatmul.mubr.bf16.gmra.mrb[0].mxu0 %v978
  %v1461 = vpop.f32.mrb[0].mxu0
  %v1462 = vadd.f32 0.0, %v1461
  %v1463 = vpop.f32.mrb[0].mxu0
  %v1464 = vadd.f32 0.0, %v1463
  %v1465 = vpop.f32.mrb[0].mxu0
  %v1466 = vadd.f32 0.0, %v1465
  %v1467 = vpop.f32.mrb[0].mxu0
  %v1468 = vadd.f32 0.0, %v1467
  %1469 = vmatprep.mubr.bf16.mxu0 0
  %1470 = vmatmul.mubr.bf16.gmra.mrb[0].mxu0 %v981
  %v1471 = vpop.f32.mrb[0].mxu0
  %v1472 = vadd.f32 0.0, %v1471
  %v1473 = vpop.f32.mrb[0].mxu0
  %v1474 = vadd.f32 0.0, %v1473
  %v1475 = vpop.f32.mrb[0].mxu0
  %v1476 = vadd.f32 0.0, %v1475
  %v1477 = vpop.f32.mrb[0].mxu0
  %v1478 = vadd.f32 0.0, %v1477
  %1479 = vmatprep.mubr.bf16.mxu0 0
  %1480 = vmatmul.mubr.bf16.gmra.mrb[0].mxu0 %v984
  %v1481 = vpop.f32.mrb[0].mxu0
  %v1482 = vadd.f32 0.0, %v1481
  %v1483 = vpop.f32.mrb[0].mxu0
  %v1484 = vadd.f32 0.0, %v1483
  %v1485 = vpop.f32.mrb[0].mxu0
  %v1486 = vpop.f32.mrb[0].mxu0
  %1487 = vdwg.mxu0
  %1488 = vst [vmem:[#allocation2] sm:$0xff] %v1021
  %1489 = vst [vmem:[#allocation2 + $0x8] sm:$0xff] %v1023
  %1490 = vst [vmem:[#allocation2 + $0x10] sm:$0xff] %v1272
  %1491 = vst [vmem:[#allocation2 + $0x18] sm:$0xff] %v1274
  %1492 = vst [vmem:[#allocation2 + $0x20] sm:$0xff] %v1025
  %1493 = vst [vmem:[#allocation2 + $0x28] sm:$0xff] %v1027
  %1494 = vst [vmem:[#allocation2 + $0x30] sm:$0xff] %v1276
  %1495 = vst [vmem:[#allocation2 + $0x38] sm:$0xff] %v1278
  %1496 = vst [vmem:[#allocation2 + $0x40] sm:$0xff] %v1031
  %1497 = vst [vmem:[#allocation2 + $0x48] sm:$0xff] %v1033
  %1498 = vst [vmem:[#allocation2 + $0x50] sm:$0xff] %v1282
  %1499 = vst [vmem:[#allocation2 + $0x58] sm:$0xff] %v1284
  %1500 = vst [vmem:[#allocation2 + $0x60] sm:$0xff] %v1035
  %1501 = vst [vmem:[#allocation2 + $0x68] sm:$0xff] %v1037
  %1502 = vst [vmem:[#allocation2 + $0x70] sm:$0xff] %v1286
  %1503 = vst [vmem:[#allocation2 + $0x78] sm:$0xff] %v1288
  %1504 = vst [vmem:[#allocation2 + $0x80] sm:$0xff] %v1041
  %1505 = vst [vmem:[#allocation2 + $0x88] sm:$0xff] %v1043
  %1506 = vst [vmem:[#allocation2 + $0x90] sm:$0xff] %v1292
  %1507 = vst [vmem:[#allocation2 + $0x98] sm:$0xff] %v1294
  %1508 = vst [vmem:[#allocation2 + $0xa0] sm:$0xff] %v1045
  %1509 = vst [vmem:[#allocation2 + $0xa8] sm:$0xff] %v1047
  %1510 = vst [vmem:[#allocation2 + $0xb0] sm:$0xff] %v1296
  %1511 = vst [vmem:[#allocation2 + $0xb8] sm:$0xff] %v1298
  %1512 = vst [vmem:[#allocation2 + $0xc0] sm:$0xff] %v1051
  %1513 = vst [vmem:[#allocation2 + $0xc8] sm:$0xff] %v1053
  %1514 = vst [vmem:[#allocation2 + $0xd0] sm:$0xff] %v1302
  %1515 = vst [vmem:[#allocation2 + $0xd8] sm:$0xff] %v1304
  %1516 = vst [vmem:[#allocation2 + $0xe0] sm:$0xff] %v1055
  %1517 = vst [vmem:[#allocation2 + $0xe8] sm:$0xff] %v1057
  %1518 = vst [vmem:[#allocation2 + $0xf0] sm:$0xff] %v1306
  %1519 = vst [vmem:[#allocation2 + $0xf8] sm:$0xff] %v1308
  %1520 = vst [vmem:[#allocation2 + $0x100] sm:$0xff] %v1061
  %1521 = vst [vmem:[#allocation2 + $0x108] sm:$0xff] %v1063
  %1522 = vst [vmem:[#allocation2 + $0x110] sm:$0xff] %v1312
  %1523 = vst [vmem:[#allocation2 + $0x118] sm:$0xff] %v1314
  %1524 = vst [vmem:[#allocation2 + $0x120] sm:$0xff] %v1065
  %1525 = vst [vmem:[#allocation2 + $0x128] sm:$0xff] %v1067
  %1526 = vst [vmem:[#allocation2 + $0x130] sm:$0xff] %v1316
  %1527 = vst [vmem:[#allocation2 + $0x138] sm:$0xff] %v1318
  %1528 = vst [vmem:[#allocation2 + $0x140] sm:$0xff] %v1071
  %1529 = vst [vmem:[#allocation2 + $0x148] sm:$0xff] %v1073
  %1530 = vst [vmem:[#allocation2 + $0x150] sm:$0xff] %v1322
  %1531 = vst [vmem:[#allocation2 + $0x158] sm:$0xff] %v1324
  %1532 = vst [vmem:[#allocation2 + $0x160] sm:$0xff] %v1075
  %1533 = vst [vmem:[#allocation2 + $0x168] sm:$0xff] %v1077
  %1534 = vst [vmem:[#allocation2 + $0x170] sm:$0xff] %v1326
  %1535 = vst [vmem:[#allocation2 + $0x178] sm:$0xff] %v1328
  %1536 = vst [vmem:[#allocation2 + $0x180] sm:$0xff] %v1081
  %1537 = vst [vmem:[#allocation2 + $0x188] sm:$0xff] %v1083
  %1538 = vst [vmem:[#allocation2 + $0x190] sm:$0xff] %v1332
  %1539 = vst [vmem:[#allocation2 + $0x198] sm:$0xff] %v1334
  %1540 = vst [vmem:[#allocation2 + $0x1a0] sm:$0xff] %v1085
  %1541 = vst [vmem:[#allocation2 + $0x1a8] sm:$0xff] %v1087
  %1542 = vst [vmem:[#allocation2 + $0x1b0] sm:$0xff] %v1336
  %1543 = vst [vmem:[#allocation2 + $0x1b8] sm:$0xff] %v1338
  %1544 = vst [vmem:[#allocation2 + $0x1c0] sm:$0xff] %v1091
  %1545 = vst [vmem:[#allocation2 + $0x1c8] sm:$0xff] %v1093
  %1546 = vst [vmem:[#allocation2 + $0x1d0] sm:$0xff] %v1342
  %1547 = vst [vmem:[#allocation2 + $0x1d8] sm:$0xff] %v1344
  %1548 = vst [vmem:[#allocation2 + $0x1e0] sm:$0xff] %v1095
  %1549 = vst [vmem:[#allocation2 + $0x1e8] sm:$0xff] %v1097
  %1550 = vst [vmem:[#allocation2 + $0x1f0] sm:$0xff] %v1346
  %1551 = vst [vmem:[#allocation2 + $0x1f8] sm:$0xff] %v1348
  %1552 = vst [vmem:[#allocation2 + $0x200] sm:$0xff] %v1101
  %1553 = vst [vmem:[#allocation2 + $0x208] sm:$0xff] %v1103
  %1554 = vst [vmem:[#allocation2 + $0x210] sm:$0xff] %v1352
  %1555 = vst [vmem:[#allocation2 + $0x218] sm:$0xff] %v1354
  %1556 = vst [vmem:[#allocation2 + $0x220] sm:$0xff] %v1105
  %1557 = vst [vmem:[#allocation2 + $0x228] sm:$0xff] %v1107
  %1558 = vst [vmem:[#allocation2 + $0x230] sm:$0xff] %v1356
  %1559 = vst [vmem:[#allocation2 + $0x238] sm:$0xff] %v1358
  %1560 = vst [vmem:[#allocation2 + $0x240] sm:$0xff] %v1111
  %1561 = vst [vmem:[#allocation2 + $0x248] sm:$0xff] %v1113
  %1562 = vst [vmem:[#allocation2 + $0x250] sm:$0xff] %v1362
  %1563 = vst [vmem:[#allocation2 + $0x258] sm:$0xff] %v1364
  %1564 = vst [vmem:[#allocation2 + $0x260] sm:$0xff] %v1115
  %1565 = vst [vmem:[#allocation2 + $0x268] sm:$0xff] %v1117
  %1566 = vst [vmem:[#allocation2 + $0x270] sm:$0xff] %v1366
  %1567 = vst [vmem:[#allocation2 + $0x278] sm:$0xff] %v1368
  %1568 = vst [vmem:[#allocation2 + $0x280] sm:$0xff] %v1121
  %1569 = vst [vmem:[#allocation2 + $0x288] sm:$0xff] %v1123
  %1570 = vst [vmem:[#allocation2 + $0x290] sm:$0xff] %v1372
  %1571 = vst [vmem:[#allocation2 + $0x298] sm:$0xff] %v1374
  %1572 = vst [vmem:[#allocation2 + $0x2a0] sm:$0xff] %v1125
  %1573 = vst [vmem:[#allocation2 + $0x2a8] sm:$0xff] %v1127
  %1574 = vst [vmem:[#allocation2 + $0x2b0] sm:$0xff] %v1376
  %1575 = vst [vmem:[#allocation2 + $0x2b8] sm:$0xff] %v1378
  %1576 = vst [vmem:[#allocation2 + $0x2c0] sm:$0xff] %v1131
  %1577 = vst [vmem:[#allocation2 + $0x2c8] sm:$0xff] %v1133
  %1578 = vst [vmem:[#allocation2 + $0x2d0] sm:$0xff] %v1382
  %1579 = vst [vmem:[#allocation2 + $0x2d8] sm:$0xff] %v1384
  %1580 = vst [vmem:[#allocation2 + $0x2e0] sm:$0xff] %v1135
  %1581 = vst [vmem:[#allocation2 + $0x2e8] sm:$0xff] %v1137
  %1582 = vst [vmem:[#allocation2 + $0x2f0] sm:$0xff] %v1386
  %1583 = vst [vmem:[#allocation2 + $0x2f8] sm:$0xff] %v1388
  %1584 = vst [vmem:[#allocation2 + $0x300] sm:$0xff] %v1141
  %1585 = vst [vmem:[#allocation2 + $0x308] sm:$0xff] %v1143
  %1586 = vst [vmem:[#allocation2 + $0x310] sm:$0xff] %v1392
  %1587 = vst [vmem:[#allocation2 + $0x318] sm:$0xff] %v1394
  %1588 = vst [vmem:[#allocation2 + $0x320] sm:$0xff] %v1145
  %1589 = vst [vmem:[#allocation2 + $0x328] sm:$0xff] %v1147
  %1590 = vst [vmem:[#allocation2 + $0x330] sm:$0xff] %v1396
  %1591 = vst [vmem:[#allocation2 + $0x338] sm:$0xff] %v1398
  %1592 = vst [vmem:[#allocation2 + $0x340] sm:$0xff] %v1151
  %1593 = vst [vmem:[#allocation2 + $0x348] sm:$0xff] %v1153
  %1594 = vst [vmem:[#allocation2 + $0x350] sm:$0xff] %v1402
  %1595 = vst [vmem:[#allocation2 + $0x358] sm:$0xff] %v1404
  %1596 = vst [vmem:[#allocation2 + $0x360] sm:$0xff] %v1155
  %1597 = vst [vmem:[#allocation2 + $0x368] sm:$0xff] %v1157
  %1598 = vst [vmem:[#allocation2 + $0x370] sm:$0xff] %v1406
  %1599 = vst [vmem:[#allocation2 + $0x378] sm:$0xff] %v1408
  %1600 = vst [vmem:[#allocation2 + $0x380] sm:$0xff] %v1161
  %1601 = vst [vmem:[#allocation2 + $0x388] sm:$0xff] %v1163
  %1602 = vst [vmem:[#allocation2 + $0x390] sm:$0xff] %v1412
  %1603 = vst [vmem:[#allocation2 + $0x398] sm:$0xff] %v1414
  %1604 = vst [vmem:[#allocation2 + $0x3a0] sm:$0xff] %v1165
  %1605 = vst [vmem:[#allocation2 + $0x3a8] sm:$0xff] %v1167
  %1606 = vst [vmem:[#allocation2 + $0x3b0] sm:$0xff] %v1416
  %1607 = vst [vmem:[#allocation2 + $0x3b8] sm:$0xff] %v1418
  %1608 = vst [vmem:[#allocation2 + $0x3c0] sm:$0xff] %v1171
  %1609 = vst [vmem:[#allocation2 + $0x3c8] sm:$0xff] %v1173
  %1610 = vst [vmem:[#allocation2 + $0x3d0] sm:$0xff] %v1422
  %1611 = vst [vmem:[#allocation2 + $0x3d8] sm:$0xff] %v1424
  %1612 = vst [vmem:[#allocation2 + $0x3e0] sm:$0xff] %v1175
  %1613 = vst [vmem:[#allocation2 + $0x3e8] sm:$0xff] %v1177
  %1614 = vst [vmem:[#allocation2 + $0x3f0] sm:$0xff] %v1426
  %1615 = vst [vmem:[#allocation2 + $0x3f8] sm:$0xff] %v1428
  %1616 = vst [vmem:[#allocation2 + $0x400] sm:$0xff] %v1181
  %1617 = vst [vmem:[#allocation2 + $0x408] sm:$0xff] %v1183
  %1618 = vst [vmem:[#allocation2 + $0x410] sm:$0xff] %v1432
  %1619 = vst [vmem:[#allocation2 + $0x418] sm:$0xff] %v1434
  %1620 = vst [vmem:[#allocation2 + $0x420] sm:$0xff] %v1185
  %1621 = vst [vmem:[#allocation2 + $0x428] sm:$0xff] %v1187
  %1622 = vst [vmem:[#allocation2 + $0x430] sm:$0xff] %v1436
  %1623 = vst [vmem:[#allocation2 + $0x438] sm:$0xff] %v1438
  %1624 = vst [vmem:[#allocation2 + $0x440] sm:$0xff] %v1191
  %1625 = vst [vmem:[#allocation2 + $0x448] sm:$0xff] %v1193
  %1626 = vst [vmem:[#allocation2 + $0x450] sm:$0xff] %v1442
  %1627 = vst [vmem:[#allocation2 + $0x458] sm:$0xff] %v1444
  %1628 = vst [vmem:[#allocation2 + $0x460] sm:$0xff] %v1195
  %1629 = vst [vmem:[#allocation2 + $0x468] sm:$0xff] %v1197
  %1630 = vst [vmem:[#allocation2 + $0x470] sm:$0xff] %v1446
  %1631 = vst [vmem:[#allocation2 + $0x478] sm:$0xff] %v1448
  %1632 = vst [vmem:[#allocation2 + $0x480] sm:$0xff] %v1201
  %1633 = vst [vmem:[#allocation2 + $0x488] sm:$0xff] %v1203
  %1634 = vst [vmem:[#allocation2 + $0x490] sm:$0xff] %v1452
  %1635 = vst [vmem:[#allocation2 + $0x498] sm:$0xff] %v1454
  %1636 = vst [vmem:[#allocation2 + $0x4a0] sm:$0xff] %v1205
  %1637 = vst [vmem:[#allocation2 + $0x4a8] sm:$0xff] %v1207
  %1638 = vst [vmem:[#allocation2 + $0x4b0] sm:$0xff] %v1456
  %1639 = vst [vmem:[#allocation2 + $0x4b8] sm:$0xff] %v1458
  %1640 = vst [vmem:[#allocation2 + $0x4c0] sm:$0xff] %v1211
  %1641 = vst [vmem:[#allocation2 + $0x4c8] sm:$0xff] %v1213
  %1642 = vst [vmem:[#allocation2 + $0x4d0] sm:$0xff] %v1462
  %1643 = vst [vmem:[#allocation2 + $0x4d8] sm:$0xff] %v1464
  %1644 = vst [vmem:[#allocation2 + $0x4e0] sm:$0xff] %v1215
  %1645 = vst [vmem:[#allocation2 + $0x4e8] sm:$0xff] %v1217
  %1646 = vst [vmem:[#allocation2 + $0x4f0] sm:$0xff] %v1466
  %1647 = vst [vmem:[#allocation2 + $0x4f8] sm:$0xff] %v1468
  %1648 = vst [vmem:[#allocation2 + $0x500] sm:$0xff] %v1221
  %1649 = vst [vmem:[#allocation2 + $0x508] sm:$0xff] %v1223
  %1650 = vst [vmem:[#allocation2 + $0x510] sm:$0xff] %v1472
  %1651 = vst [vmem:[#allocation2 + $0x518] sm:$0xff] %v1474
  %1652 = vst [vmem:[#allocation2 + $0x520] sm:$0xff] %v1225
  %1653 = vst [vmem:[#allocation2 + $0x528] sm:$0xff] %v1227
  %1654 = vst [vmem:[#allocation2 + $0x530] sm:$0xff] %v1476
  %1655 = vst [vmem:[#allocation2 + $0x538] sm:$0xff] %v1478
  %1656 = vst [vmem:[#allocation2 + $0x540] sm:$0x3] %v1231
  %1657 = vst [vmem:[#allocation2 + $0x548] sm:$0x3] %v1233
  %1658 = vst [vmem:[#allocation2 + $0x550] sm:$0x3] %v1482
  %1659 = vst [vmem:[#allocation2 + $0x558] sm:$0x3] %v1484
  %v1660 = vld [vmem:[#allocation2] sm:$0x1f]
  %v1661 = vld [vmem:[#allocation2 + $0x180] sm:$0x7c]
  %v1663 = vrot.slane %v1661, 2
  %1664 = vrot.lane.b32.xlu0 %v1663, 96
  %v1665 = vpop.permute.xlu0 %1664
  %v1667 = vadd.f32 %v1660, %v1665
  %v1668 = vld [vmem:[#allocation2] sm:$0x3e]
  %v1670 = vrot.slane %v1668, 1
  %1671 = vrot.lane.b32.xlu0 %v1670, 64
  %v1672 = vpop.permute.xlu0 %1671
  %v1674 = vadd.f32 %v1667, %v1672
  %v1675 = vld [vmem:[#allocation2 + $0x180] sm:$0xf8]
  %v1677 = vrot.slane %v1675, 3
  %1678 = vrot.lane.b32.xlu0 %v1677, 32
  %v1679 = vpop.permute.xlu0 %1678
  %v1681 = vadd.f32 %v1674, %v1679
  %v1682 = vld [vmem:[#allocation2 + $0x2c8] sm:$0xc0]
  %v1683 = vld [vmem:[#allocation2 + $0x2e8] sm:$0x7]
  %vm1686 = vcmask 1041408
  %v1687 = vrot.slane %v1682, 6
  %v1688 = vrot.slane %v1683, 6
  %v1689 = vsel %vm1686, %v1687, %v1688
  %v1691 = vadd.f32 %v1681, %v1689
  %v1692 = vld [vmem:[#allocation2 + $0x428] sm:$0x7c]
  %v1694 = vrot.slane %v1692, 2
  %1695 = vrot.lane.b32.xlu0 %v1694, 96
  %v1696 = vpop.permute.xlu0 %1695
  %v1698 = vadd.f32 %v1691, %v1696
  %v1699 = vld [vmem:[#allocation2 + $0x2c8] sm:$0x80]
  %v1700 = vld [vmem:[#allocation2 + $0x2e8] sm:$0xf]
  %vm1703 = vcmask 1040384
  %v1704 = vrot.slane %v1699, 7
  %v1705 = vrot.slane %v1700, 7
  %v1706 = vsel %vm1703, %v1704, %v1705
  %1707 = vrot.lane.b32.xlu0 %v1706, 64
  %v1708 = vpop.permute.xlu0 %1707
  %v1710 = vadd.f32 %v1698, %v1708
  %v1711 = vld [vmem:[#allocation2 + $0x428] sm:$0xf8]
  %v1713 = vrot.slane %v1711, 3
  %1714 = vrot.lane.b32.xlu0 %v1713, 32
  %v1715 = vpop.permute.xlu0 %1714
  %v1717 = vadd.f32 %v1710, %v1715
  %v1718 = vld [vmem:[#allocation2 + $0x10] sm:$0x80]
  %v1719 = vld [vmem:[#allocation2 + $0x30] sm:$0xf]
  %v1722 = vrot.slane %v1718, 7
  %v1723 = vrot.slane %v1719, 7
  %v1724 = vsel %vm1703, %v1722, %v1723
  %v1726 = vadd.f32 %v1717, %v1724
  %v1727 = vld [vmem:[#allocation2 + $0x1b0] sm:$0x1f]
  %1729 = vrot.lane.b32.xlu0 %v1727, 96
  %v1730 = vpop.permute.xlu0 %1729
  %v1732 = vadd.f32 %v1726, %v1730
  %v1733 = vld [vmem:[#allocation2 + $0x30] sm:$0x1f]
  %1735 = vrot.lane.b32.xlu0 %v1733, 64
  %v1736 = vpop.permute.xlu0 %1735
  %v1738 = vadd.f32 %v1732, %v1736
  %v1739 = vld [vmem:[#allocation2 + $0x1b0] sm:$0x3e]
  %v1741 = vrot.slane %v1739, 1
  %1742 = vrot.lane.b32.xlu0 %v1741, 32
  %v1743 = vpop.permute.xlu0 %1742
  %v1745 = vadd.f32 %v1738, %v1743
  %v1746 = vld [vmem:[#allocation2 + $0x2f8] sm:$0xe0]
  %v1747 = vld [vmem:[#allocation2 + $0x318] sm:$0x3]
  %vm1750 = vcmask 1042432
  %v1751 = vrot.slane %v1746, 5
  %v1752 = vrot.slane %v1747, 5
  %v1753 = vsel %vm1750, %v1751, %v1752
  %v1755 = vadd.f32 %v1745, %v1753
  %v1756 = vld [vmem:[#allocation2 + $0x458] sm:$0x1f]
  %1758 = vrot.lane.b32.xlu0 %v1756, 96
  %v1759 = vpop.permute.xlu0 %1758
  %v1761 = vadd.f32 %v1755, %v1759
  %v1762 = vld [vmem:[#allocation2 + $0x2f8] sm:$0xc0]
  %v1763 = vld [vmem:[#allocation2 + $0x318] sm:$0x7]
  %v1766 = vrot.slane %v1762, 6
  %v1767 = vrot.slane %v1763, 6
  %v1768 = vsel %vm1686, %v1766, %v1767
  %1769 = vrot.lane.b32.xlu0 %v1768, 64
  %v1770 = vpop.permute.xlu0 %1769
  %v1772 = vadd.f32 %v1761, %v1770
  %v1773 = vld [vmem:[#allocation2 + $0x458] sm:$0x3e]
  %v1775 = vrot.slane %v1773, 1
  %1776 = vrot.lane.b32.xlu0 %v1775, 32
  %v1777 = vpop.permute.xlu0 %1776
  %v1779 = vadd.f32 %v1772, %v1777
  %vm1780 = vcmask 258048
  %1781 = vst.msk [vmem:[#allocation3] sm:$0x1f] %vm1780, %v1779
  %v1782 = vld [vmem:[#allocation2] sm:$0x80]
  %v1783 = vld [vmem:[#allocation2 + $0x20] sm:$0xf]
  %v1784 = vld [vmem:[#allocation2 + $0x1a0] sm:$0x1f]
  %v1786 = vrot.slane %v1784, 1
  %1787 = vrot.lane.b32.xlu0 %v1786, 96
  %v1788 = vpop.permute.xlu0 %1787
  %v1790 = vadd.f32 %v1782, %v1788
  %v1791 = vadd.f32 %v1783, %v1788
  %v1792 = vld [vmem:[#allocation2 + $0x20] sm:$0x1f]
  %v1794 = vrot.slane %v1792, 1
  %1795 = vrot.lane.b32.xlu0 %v1794, 64
  %v1796 = vpop.permute.xlu0 %1795
  %v1798 = vadd.f32 %v1790, %v1796
  %v1799 = vadd.f32 %v1791, %v1796
  %v1800 = vld [vmem:[#allocation2 + $0x1a0] sm:$0x3e]
  %v1802 = vrot.slane %v1800, 2
  %1803 = vrot.lane.b32.xlu0 %v1802, 32
  %v1804 = vpop.permute.xlu0 %1803
  %v1806 = vadd.f32 %v1798, %v1804
  %v1807 = vadd.f32 %v1799, %v1804
  %v1808 = vld [vmem:[#allocation2 + $0x2e8] sm:$0xe0]
  %v1809 = vld [vmem:[#allocation2 + $0x308] sm:$0x3]
  %v1812 = vrot.slane %v1808, 6
  %v1813 = vrot.slane %v1809, 6
  %v1814 = vsel %vm1686, %v1812, %v1813
  %v1817 = vadd.f32 %v1806, %v1812
  %v1818 = vadd.f32 %v1807, %v1814
  %v1819 = vld [vmem:[#allocation2 + $0x448] sm:$0x1f]
  %v1821 = vrot.slane %v1819, 1
  %1822 = vrot.lane.b32.xlu0 %v1821, 96
  %v1823 = vpop.permute.xlu0 %1822
  %v1825 = vadd.f32 %v1817, %v1823
  %v1826 = vadd.f32 %v1818, %v1823
  %v1827 = vld [vmem:[#allocation2 + $0x2e8] sm:$0xc0]
  %v1828 = vld [vmem:[#allocation2 + $0x308] sm:$0x7]
  %v1831 = vrot.slane %v1827, 7
  %v1832 = vrot.slane %v1828, 7
  %v1833 = vsel %vm1703, %v1831, %v1832
  %1834 = vrot.lane.b32.xlu0 %v1831, 64
  %v1835 = vpop.permute.xlu0 %1834
  %1836 = vrot.lane.b32.xlu0 %v1833, 64
  %v1837 = vpop.permute.xlu0 %1836
  %v1840 = vadd.f32 %v1825, %v1835
  %v1841 = vadd.f32 %v1826, %v1837
  %v1842 = vld [vmem:[#allocation2 + $0x448] sm:$0x3e]
  %v1844 = vrot.slane %v1842, 2
  %1845 = vrot.lane.b32.xlu0 %v1844, 32
  %v1846 = vpop.permute.xlu0 %1845
  %v1848 = vadd.f32 %v1840, %v1846
  %v1849 = vadd.f32 %v1841, %v1846
  %v1850 = vld [vmem:[#allocation2 + $0x30] sm:$0xc0]
  %v1851 = vld [vmem:[#allocation2 + $0x50] sm:$0x7]
  %v1854 = vrot.slane %v1850, 7
  %v1855 = vrot.slane %v1851, 7
  %v1856 = vsel %vm1703, %v1854, %v1855
  %v1859 = vadd.f32 %v1848, %v1854
  %v1860 = vadd.f32 %v1849, %v1856
  %v1861 = vld [vmem:[#allocation2 + $0x1b0] sm:$0xc0]
  %v1862 = vld [vmem:[#allocation2 + $0x1d0] sm:$0x7]
  %v1865 = vrot.slane %v1861, 7
  %v1866 = vrot.slane %v1862, 7
  %v1867 = vsel %vm1703, %v1865, %v1866
  %1868 = vrot.lane.b32.xlu0 %v1865, 96
  %v1869 = vpop.permute.xlu0 %1868
  %1870 = vrot.lane.b32.xlu0 %v1867, 96
  %v1871 = vpop.permute.xlu0 %1870
  %v1874 = vadd.f32 %v1859, %v1869
  %v1875 = vadd.f32 %v1860, %v1871
  %v1876 = vld [vmem:[#allocation2 + $0x30] sm:$0x80]
  %v1877 = vld [vmem:[#allocation2 + $0x50] sm:$0xf]
  %1880 = vrot.lane.b32.xlu0 %v1876, 64
  %v1881 = vpop.permute.xlu0 %1880
  %1882 = vrot.lane.b32.xlu0 %v1877, 64
  %v1883 = vpop.permute.xlu0 %1882
  %v1886 = vadd.f32 %v1874, %v1881
  %v1887 = vadd.f32 %v1875, %v1883
  %v1888 = vld [vmem:[#allocation2 + $0x1b0] sm:$0x80]
  %v1889 = vld [vmem:[#allocation2 + $0x1d0] sm:$0xf]
  %1892 = vrot.lane.b32.xlu0 %v1888, 32
  %v1893 = vpop.permute.xlu0 %1892
  %1894 = vrot.lane.b32.xlu0 %v1889, 32
  %v1895 = vpop.permute.xlu0 %1894
  %v1898 = vadd.f32 %v1886, %v1893
  %v1899 = vadd.f32 %v1887, %v1895
  %v1900 = vld [vmem:[#allocation2 + $0x318] sm:$0xf0]
  %v1901 = vld [vmem:[#allocation2 + $0x338] sm:$0x1]
  %v1904 = vrot.slane %v1900, 5
  %v1905 = vrot.slane %v1901, 5
  %v1906 = vsel %vm1750, %v1904, %v1905
  %v1909 = vadd.f32 %v1898, %v1904
  %v1910 = vadd.f32 %v1899, %v1906
  %v1911 = vld [vmem:[#allocation2 + $0x458] sm:$0xc0]
  %v1912 = vld [vmem:[#allocation2 + $0x478] sm:$0x7]
  %v1915 = vrot.slane %v1911, 7
  %v1916 = vrot.slane %v1912, 7
  %v1917 = vsel %vm1703, %v1915, %v1916
  %1918 = vrot.lane.b32.xlu0 %v1915, 96
  %v1919 = vpop.permute.xlu0 %1918
  %1920 = vrot.lane.b32.xlu0 %v1917, 96
  %v1921 = vpop.permute.xlu0 %1920
  %v1924 = vadd.f32 %v1909, %v1919
  %v1925 = vadd.f32 %v1910, %v1921
  %v1926 = vld [vmem:[#allocation2 + $0x318] sm:$0xe0]
  %v1927 = vld [vmem:[#allocation2 + $0x338] sm:$0x3]
  %v1930 = vrot.slane %v1926, 6
  %v1931 = vrot.slane %v1927, 6
  %v1932 = vsel %vm1686, %v1930, %v1931
  %1933 = vrot.lane.b32.xlu0 %v1930, 64
  %v1934 = vpop.permute.xlu0 %1933
  %1935 = vrot.lane.b32.xlu0 %v1932, 64
  %v1936 = vpop.permute.xlu0 %1935
  %v1939 = vadd.f32 %v1924, %v1934
  %v1940 = vadd.f32 %v1925, %v1936
  %v1941 = vld [vmem:[#allocation2 + $0x458] sm:$0x80]
  %v1942 = vld [vmem:[#allocation2 + $0x478] sm:$0xf]
  %1945 = vrot.lane.b32.xlu0 %v1941, 32
  %v1946 = vpop.permute.xlu0 %1945
  %1947 = vrot.lane.b32.xlu0 %v1942, 32
  %v1948 = vpop.permute.xlu0 %1947
  %v1951 = vadd.f32 %v1939, %v1946
  %v1952 = vadd.f32 %v1940, %v1948
  %vm1953 = vcmask 261127
  %1954 = vst.msk [vmem:[#allocation3 - $0x2] sm:$0x80] %vm1953, %v1951
  %vm1955 = vcmask 257024
  %1956 = vst.msk [vmem:[#allocation3 + $0x6] sm:$0xf] %vm1955, %v1952
  %v1957 = vld [vmem:[#allocation2 + $0x20] sm:$0xc0]
  %v1958 = vld [vmem:[#allocation2 + $0x40] sm:$0x7]
  %v1959 = vld [vmem:[#allocation2 + $0x1a0] sm:$0xc0]
  %v1960 = vld [vmem:[#allocation2 + $0x1c0] sm:$0x7]
  %1963 = vrot.lane.b32.xlu0 %v1959, 96
  %v1964 = vpop.permute.xlu0 %1963
  %1965 = vrot.lane.b32.xlu0 %v1960, 96
  %v1966 = vpop.permute.xlu0 %1965
  %v1969 = vadd.f32 %v1957, %v1964
  %v1970 = vadd.f32 %v1958, %v1966
  %v1971 = vld [vmem:[#allocation2 + $0x20] sm:$0x80]
  %v1972 = vld [vmem:[#allocation2 + $0x40] sm:$0xf]
  %vm1975 = vcmask 1046528
  %v1976 = vrot.slane %v1971, 1
  %v1977 = vrot.slane %v1972, 1
  %v1978 = vsel %vm1975, %v1976, %v1977
  %1979 = vrot.lane.b32.xlu0 %v1978, 64
  %v1980 = vpop.permute.xlu0 %1979
  %1981 = vrot.lane.b32.xlu0 %v1977, 64
  %v1982 = vpop.permute.xlu0 %1981
  %v1985 = vadd.f32 %v1969, %v1980
  %v1986 = vadd.f32 %v1970, %v1982
  %v1987 = vld [vmem:[#allocation2 + $0x1a0] sm:$0x80]
  %v1988 = vld [vmem:[#allocation2 + $0x1c0] sm:$0xf]
  %v1991 = vrot.slane %v1987, 1
  %v1992 = vrot.slane %v1988, 1
  %v1993 = vsel %vm1975, %v1991, %v1992
  %1994 = vrot.lane.b32.xlu0 %v1993, 32
  %v1995 = vpop.permute.xlu0 %1994
  %1996 = vrot.lane.b32.xlu0 %v1992, 32
  %v1997 = vpop.permute.xlu0 %1996
  %v2000 = vadd.f32 %v1985, %v1995
  %v2001 = vadd.f32 %v1986, %v1997
  %v2002 = vld [vmem:[#allocation2 + $0x308] sm:$0xf0]
  %v2003 = vld [vmem:[#allocation2 + $0x328] sm:$0x1]
  %v2006 = vrot.slane %v2002, 6
  %v2007 = vrot.slane %v2003, 6
  %v2008 = vsel %vm1686, %v2006, %v2007
  %v2011 = vadd.f32 %v2000, %v2006
  %v2012 = vadd.f32 %v2001, %v2008
  %v2013 = vld [vmem:[#allocation2 + $0x448] sm:$0xc0]
  %v2014 = vld [vmem:[#allocation2 + $0x468] sm:$0x7]
  %2017 = vrot.lane.b32.xlu0 %v2013, 96
  %v2018 = vpop.permute.xlu0 %2017
  %2019 = vrot.lane.b32.xlu0 %v2014, 96
  %v2020 = vpop.permute.xlu0 %2019
  %v2023 = vadd.f32 %v2011, %v2018
  %v2024 = vadd.f32 %v2012, %v2020
  %v2025 = vld [vmem:[#allocation2 + $0x308] sm:$0xe0]
  %v2026 = vld [vmem:[#allocation2 + $0x328] sm:$0x3]
  %v2029 = vrot.slane %v2025, 7
  %v2030 = vrot.slane %v2026, 7
  %v2031 = vsel %vm1703, %v2029, %v2030
  %2032 = vrot.lane.b32.xlu0 %v2029, 64
  %v2033 = vpop.permute.xlu0 %2032
  %2034 = vrot.lane.b32.xlu0 %v2031, 64
  %v2035 = vpop.permute.xlu0 %2034
  %v2038 = vadd.f32 %v2023, %v2033
  %v2039 = vadd.f32 %v2024, %v2035
  %v2040 = vld [vmem:[#allocation2 + $0x448] sm:$0x80]
  %v2041 = vld [vmem:[#allocation2 + $0x468] sm:$0xf]
  %v2044 = vrot.slane %v2040, 1
  %v2045 = vrot.slane %v2041, 1
  %v2046 = vsel %vm1975, %v2044, %v2045
  %2047 = vrot.lane.b32.xlu0 %v2046, 32
  %v2048 = vpop.permute.xlu0 %2047
  %2049 = vrot.lane.b32.xlu0 %v2045, 32
  %v2050 = vpop.permute.xlu0 %2049
  %v2053 = vadd.f32 %v2038, %v2048
  %v2054 = vadd.f32 %v2039, %v2050
  %v2055 = vld [vmem:[#allocation2 + $0x50] sm:$0xe0]
  %v2056 = vld [vmem:[#allocation2 + $0x70] sm:$0x3]
  %v2059 = vrot.slane %v2055, 7
  %v2060 = vrot.slane %v2056, 7
  %v2061 = vsel %vm1703, %v2059, %v2060
  %v2064 = vadd.f32 %v2053, %v2059
  %v2065 = vadd.f32 %v2054, %v2061
  %v2066 = vld [vmem:[#allocation2 + $0x1d0] sm:$0xf0]
  %v2067 = vld [vmem:[#allocation2 + $0x1f0] sm:$0x1]
  %v2070 = vrot.slane %v2066, 6
  %v2071 = vrot.slane %v2067, 6
  %v2072 = vsel %vm1686, %v2070, %v2071
  %2073 = vrot.lane.b32.xlu0 %v2070, 96
  %v2074 = vpop.permute.xlu0 %2073
  %2075 = vrot.lane.b32.xlu0 %v2072, 96
  %v2076 = vpop.permute.xlu0 %2075
  %v2079 = vadd.f32 %v2064, %v2074
  %v2080 = vadd.f32 %v2065, %v2076
  %v2081 = vld [vmem:[#allocation2 + $0x50] sm:$0xc0]
  %v2082 = vld [vmem:[#allocation2 + $0x70] sm:$0x7]
  %2085 = vrot.lane.b32.xlu0 %v2081, 64
  %v2086 = vpop.permute.xlu0 %2085
  %2087 = vrot.lane.b32.xlu0 %v2082, 64
  %v2088 = vpop.permute.xlu0 %2087
  %v2091 = vadd.f32 %v2079, %v2086
  %v2092 = vadd.f32 %v2080, %v2088
  %v2093 = vld [vmem:[#allocation2 + $0x1d0] sm:$0xe0]
  %v2094 = vld [vmem:[#allocation2 + $0x1f0] sm:$0x3]
  %v2097 = vrot.slane %v2093, 7
  %v2098 = vrot.slane %v2094, 7
  %v2099 = vsel %vm1703, %v2097, %v2098
  %2100 = vrot.lane.b32.xlu0 %v2097, 32
  %v2101 = vpop.permute.xlu0 %2100
  %2102 = vrot.lane.b32.xlu0 %v2099, 32
  %v2103 = vpop.permute.xlu0 %2102
  %v2106 = vadd.f32 %v2091, %v2101
  %v2107 = vadd.f32 %v2092, %v2103
  %v2108 = vld [vmem:[#allocation2 + $0x338] sm:$0xf8]
  %v2110 = vrot.slane %v2108, 5
  %v2112 = vadd.f32 %v2106, %v2110
  %v2113 = vadd.f32 %v2107, %v2110
  %v2114 = vld [vmem:[#allocation2 + $0x478] sm:$0xf0]
  %v2115 = vld [vmem:[#allocation2 + $0x498] sm:$0x1]
  %v2118 = vrot.slane %v2114, 6
  %v2119 = vrot.slane %v2115, 6
  %v2120 = vsel %vm1686, %v2118, %v2119
  %2121 = vrot.lane.b32.xlu0 %v2118, 96
  %v2122 = vpop.permute.xlu0 %2121
  %2123 = vrot.lane.b32.xlu0 %v2120, 96
  %v2124 = vpop.permute.xlu0 %2123
  %v2127 = vadd.f32 %v2112, %v2122
  %v2128 = vadd.f32 %v2113, %v2124
  %v2129 = vld [vmem:[#allocation2 + $0x338] sm:$0xf0]
  %v2130 = vld [vmem:[#allocation2 + $0x358] sm:$0x1]
  %v2133 = vrot.slane %v2129, 6
  %v2134 = vrot.slane %v2130, 6
  %v2135 = vsel %vm1686, %v2133, %v2134
  %2136 = vrot.lane.b32.xlu0 %v2133, 64
  %v2137 = vpop.permute.xlu0 %2136
  %2138 = vrot.lane.b32.xlu0 %v2135, 64
  %v2139 = vpop.permute.xlu0 %2138
  %v2142 = vadd.f32 %v2127, %v2137
  %v2143 = vadd.f32 %v2128, %v2139
  %v2144 = vld [vmem:[#allocation2 + $0x478] sm:$0xe0]
  %v2145 = vld [vmem:[#allocation2 + $0x498] sm:$0x3]
  %v2148 = vrot.slane %v2144, 7
  %v2149 = vrot.slane %v2145, 7
  %v2150 = vsel %vm1703, %v2148, %v2149
  %2151 = vrot.lane.b32.xlu0 %v2148, 32
  %v2152 = vpop.permute.xlu0 %2151
  %2153 = vrot.lane.b32.xlu0 %v2150, 32
  %v2154 = vpop.permute.xlu0 %2153
  %v2157 = vadd.f32 %v2142, %v2152
  %v2158 = vadd.f32 %v2143, %v2154
  %vm2159 = vcmask 261126
  %2160 = vst.msk [vmem:[#allocation3 + $0x4] sm:$0xc0] %vm2159, %v2157
  %vm2161 = vcmask 256000
  %2162 = vst.msk [vmem:[#allocation3 + $0xc] sm:$0x7] %vm2161, %v2158
  %v2163 = vld [vmem:[#allocation2 + $0x40] sm:$0xe0]
  %v2164 = vld [vmem:[#allocation2 + $0x60] sm:$0x3]
  %v2165 = vld [vmem:[#allocation2 + $0x1c0] sm:$0xf0]
  %v2166 = vld [vmem:[#allocation2 + $0x1e0] sm:$0x1]
  %v2169 = vrot.slane %v2165, 7
  %v2170 = vrot.slane %v2166, 7
  %v2171 = vsel %vm1703, %v2169, %v2170
  %2172 = vrot.lane.b32.xlu0 %v2169, 96
  %v2173 = vpop.permute.xlu0 %2172
  %2174 = vrot.lane.b32.xlu0 %v2171, 96
  %v2175 = vpop.permute.xlu0 %2174
  %v2178 = vadd.f32 %v2163, %v2173
  %v2179 = vadd.f32 %v2164, %v2175
  %v2180 = vld [vmem:[#allocation2 + $0x40] sm:$0xc0]
  %v2181 = vld [vmem:[#allocation2 + $0x60] sm:$0x7]
  %v2184 = vrot.slane %v2180, 1
  %v2185 = vrot.slane %v2181, 1
  %v2186 = vsel %vm1975, %v2184, %v2185
  %2187 = vrot.lane.b32.xlu0 %v2186, 64
  %v2188 = vpop.permute.xlu0 %2187
  %2189 = vrot.lane.b32.xlu0 %v2185, 64
  %v2190 = vpop.permute.xlu0 %2189
  %v2193 = vadd.f32 %v2178, %v2188
  %v2194 = vadd.f32 %v2179, %v2190
  %v2195 = vld [vmem:[#allocation2 + $0x1c0] sm:$0xe0]
  %v2196 = vld [vmem:[#allocation2 + $0x1e0] sm:$0x3]
  %2199 = vrot.lane.b32.xlu0 %v2195, 32
  %v2200 = vpop.permute.xlu0 %2199
  %2201 = vrot.lane.b32.xlu0 %v2196, 32
  %v2202 = vpop.permute.xlu0 %2201
  %v2205 = vadd.f32 %v2193, %v2200
  %v2206 = vadd.f32 %v2194, %v2202
  %v2207 = vld [vmem:[#allocation2 + $0x328] sm:$0xf8]
  %v2209 = vrot.slane %v2207, 6
  %v2211 = vadd.f32 %v2205, %v2209
  %v2212 = vadd.f32 %v2206, %v2209
  %v2213 = vld [vmem:[#allocation2 + $0x468] sm:$0xf0]
  %v2214 = vld [vmem:[#allocation2 + $0x488] sm:$0x1]
  %v2217 = vrot.slane %v2213, 7
  %v2218 = vrot.slane %v2214, 7
  %v2219 = vsel %vm1703, %v2217, %v2218
  %2220 = vrot.lane.b32.xlu0 %v2217, 96
  %v2221 = vpop.permute.xlu0 %2220
  %2222 = vrot.lane.b32.xlu0 %v2219, 96
  %v2223 = vpop.permute.xlu0 %2222
  %v2226 = vadd.f32 %v2211, %v2221
  %v2227 = vadd.f32 %v2212, %v2223
  %v2228 = vld [vmem:[#allocation2 + $0x328] sm:$0xf0]
  %v2229 = vld [vmem:[#allocation2 + $0x348] sm:$0x1]
  %v2232 = vrot.slane %v2228, 7
  %v2233 = vrot.slane %v2229, 7
  %v2234 = vsel %vm1703, %v2232, %v2233
  %2235 = vrot.lane.b32.xlu0 %v2232, 64
  %v2236 = vpop.permute.xlu0 %2235
  %2237 = vrot.lane.b32.xlu0 %v2234, 64
  %v2238 = vpop.permute.xlu0 %2237
  %v2241 = vadd.f32 %v2226, %v2236
  %v2242 = vadd.f32 %v2227, %v2238
  %v2243 = vld [vmem:[#allocation2 + $0x468] sm:$0xe0]
  %v2244 = vld [vmem:[#allocation2 + $0x488] sm:$0x3]
  %2247 = vrot.lane.b32.xlu0 %v2243, 32
  %v2248 = vpop.permute.xlu0 %2247
  %2249 = vrot.lane.b32.xlu0 %v2244, 32
  %v2250 = vpop.permute.xlu0 %2249
  %v2253 = vadd.f32 %v2241, %v2248
  %v2254 = vadd.f32 %v2242, %v2250
  %v2255 = vld [vmem:[#allocation2 + $0x70] sm:$0xf0]
  %v2256 = vld [vmem:[#allocation2 + $0x90] sm:$0x1]
  %v2259 = vrot.slane %v2255, 7
  %v2260 = vrot.slane %v2256, 7
  %v2261 = vsel %vm1703, %v2259, %v2260
  %v2264 = vadd.f32 %v2253, %v2259
  %v2265 = vadd.f32 %v2254, %v2261
  %v2266 = vld [vmem:[#allocation2 + $0x1f0] sm:$0x7c]
  %v2268 = vrot.slane %v2266, 5
  %2269 = vrot.lane.b32.xlu0 %v2268, 96
  %v2270 = vpop.permute.xlu0 %2269
  %v2272 = vadd.f32 %v2264, %v2270
  %v2273 = vadd.f32 %v2265, %v2270
  %v2274 = vld [vmem:[#allocation2 + $0x70] sm:$0xe0]
  %v2275 = vld [vmem:[#allocation2 + $0x90] sm:$0x3]
  %2278 = vrot.lane.b32.xlu0 %v2274, 64
  %v2279 = vpop.permute.xlu0 %2278
  %2280 = vrot.lane.b32.xlu0 %v2275, 64
  %v2281 = vpop.permute.xlu0 %2280
  %v2284 = vadd.f32 %v2272, %v2279
  %v2285 = vadd.f32 %v2273, %v2281
  %v2286 = vld [vmem:[#allocation2 + $0x1f0] sm:$0xf8]
  %v2288 = vrot.slane %v2286, 6
  %2289 = vrot.lane.b32.xlu0 %v2288, 32
  %v2290 = vpop.permute.xlu0 %2289
  %v2292 = vadd.f32 %v2284, %v2290
  %v2293 = vadd.f32 %v2285, %v2290
  %v2294 = vld [vmem:[#allocation2 + $0x358] sm:$0x7c]
  %v2296 = vrot.slane %v2294, 5
  %v2298 = vadd.f32 %v2292, %v2296
  %v2299 = vadd.f32 %v2293, %v2296
  %v2300 = vld [vmem:[#allocation2 + $0x498] sm:$0x7c]
  %v2302 = vrot.slane %v2300, 5
  %2303 = vrot.lane.b32.xlu0 %v2302, 96
  %v2304 = vpop.permute.xlu0 %2303
  %v2306 = vadd.f32 %v2298, %v2304
  %v2307 = vadd.f32 %v2299, %v2304
  %v2308 = vld [vmem:[#allocation2 + $0x358] sm:$0xf8]
  %v2310 = vrot.slane %v2308, 6
  %2311 = vrot.lane.b32.xlu0 %v2310, 64
  %v2312 = vpop.permute.xlu0 %2311
  %v2314 = vadd.f32 %v2306, %v2312
  %v2315 = vadd.f32 %v2307, %v2312
  %v2316 = vld [vmem:[#allocation2 + $0x498] sm:$0xf8]
  %v2318 = vrot.slane %v2316, 6
  %2319 = vrot.lane.b32.xlu0 %v2318, 32
  %v2320 = vpop.permute.xlu0 %2319
  %v2322 = vadd.f32 %v2314, %v2320
  %v2323 = vadd.f32 %v2315, %v2320
  %vm2324 = vcmask 261125
  %2325 = vst.msk [vmem:[#allocation3 + $0xa] sm:$0xe0] %vm2324, %v2322
  %vm2326 = vcmask 254976
  %2327 = vst.msk [vmem:[#allocation3 + $0x12] sm:$0x3] %vm2326, %v2323
  %v2328 = vld [vmem:[#allocation2 + $0x60] sm:$0xf0]
  %v2329 = vld [vmem:[#allocation2 + $0x80] sm:$0x1]
  %v2330 = vld [vmem:[#allocation2 + $0x1e0] sm:$0x7c]
  %v2332 = vrot.slane %v2330, 6
  %2333 = vrot.lane.b32.xlu0 %v2332, 96
  %v2334 = vpop.permute.xlu0 %2333
  %v2336 = vadd.f32 %v2328, %v2334
  %v2337 = vadd.f32 %v2329, %v2334
  %v2338 = vld [vmem:[#allocation2 + $0x60] sm:$0xe0]
  %v2339 = vld [vmem:[#allocation2 + $0x80] sm:$0x3]
  %v2342 = vrot.slane %v2338, 1
  %v2343 = vrot.slane %v2339, 1
  %v2344 = vsel %vm1975, %v2342, %v2343
  %2345 = vrot.lane.b32.xlu0 %v2344, 64
  %v2346 = vpop.permute.xlu0 %2345
  %2347 = vrot.lane.b32.xlu0 %v2343, 64
  %v2348 = vpop.permute.xlu0 %2347
  %v2351 = vadd.f32 %v2336, %v2346
  %v2352 = vadd.f32 %v2337, %v2348
  %v2353 = vld [vmem:[#allocation2 + $0x1e0] sm:$0xf8]
  %v2355 = vrot.slane %v2353, 7
  %2356 = vrot.lane.b32.xlu0 %v2355, 32
  %v2357 = vpop.permute.xlu0 %2356
  %v2359 = vadd.f32 %v2351, %v2357
  %v2360 = vadd.f32 %v2352, %v2357
  %v2361 = vld [vmem:[#allocation2 + $0x348] sm:$0x7c]
  %v2363 = vrot.slane %v2361, 6
  %v2365 = vadd.f32 %v2359, %v2363
  %v2366 = vadd.f32 %v2360, %v2363
  %v2367 = vld [vmem:[#allocation2 + $0x488] sm:$0x7c]
  %v2369 = vrot.slane %v2367, 6
  %2370 = vrot.lane.b32.xlu0 %v2369, 96
  %v2371 = vpop.permute.xlu0 %2370
  %v2373 = vadd.f32 %v2365, %v2371
  %v2374 = vadd.f32 %v2366, %v2371
  %v2375 = vld [vmem:[#allocation2 + $0x348] sm:$0xf8]
  %v2377 = vrot.slane %v2375, 7
  %2378 = vrot.lane.b32.xlu0 %v2377, 64
  %v2379 = vpop.permute.xlu0 %2378
  %v2381 = vadd.f32 %v2373, %v2379
  %v2382 = vadd.f32 %v2374, %v2379
  %v2383 = vld [vmem:[#allocation2 + $0x488] sm:$0xf8]
  %v2385 = vrot.slane %v2383, 7
  %2386 = vrot.lane.b32.xlu0 %v2385, 32
  %v2387 = vpop.permute.xlu0 %2386
  %v2389 = vadd.f32 %v2381, %v2387
  %v2390 = vadd.f32 %v2382, %v2387
  %v2391 = vld [vmem:[#allocation2 + $0x90] sm:$0xf8]
  %v2393 = vrot.slane %v2391, 7
  %v2395 = vadd.f32 %v2389, %v2393
  %v2396 = vadd.f32 %v2390, %v2393
  %v2397 = vld [vmem:[#allocation2 + $0x210] sm:$0x1f]
  %v2399 = vrot.slane %v2397, 4
  %2400 = vrot.lane.b32.xlu0 %v2399, 96
  %v2401 = vpop.permute.xlu0 %2400
  %v2403 = vadd.f32 %v2395, %v2401
  %v2404 = vadd.f32 %v2396, %v2401
  %v2405 = vld [vmem:[#allocation2 + $0x90] sm:$0xf0]
  %v2406 = vld [vmem:[#allocation2 + $0xb0] sm:$0x1]
  %2409 = vrot.lane.b32.xlu0 %v2405, 64
  %v2410 = vpop.permute.xlu0 %2409
  %2411 = vrot.lane.b32.xlu0 %v2406, 64
  %v2412 = vpop.permute.xlu0 %2411
  %v2415 = vadd.f32 %v2403, %v2410
  %v2416 = vadd.f32 %v2404, %v2412
  %v2417 = vld [vmem:[#allocation2 + $0x210] sm:$0x3e]
  %v2419 = vrot.slane %v2417, 5
  %2420 = vrot.lane.b32.xlu0 %v2419, 32
  %v2421 = vpop.permute.xlu0 %2420
  %v2423 = vadd.f32 %v2415, %v2421
  %v2424 = vadd.f32 %v2416, %v2421
  %v2425 = vld [vmem:[#allocation2 + $0x378] sm:$0x3e]
  %v2427 = vrot.slane %v2425, 5
  %v2429 = vadd.f32 %v2423, %v2427
  %v2430 = vadd.f32 %v2424, %v2427
  %v2431 = vld [vmem:[#allocation2 + $0x4b8] sm:$0x1f]
  %v2433 = vrot.slane %v2431, 4
  %2434 = vrot.lane.b32.xlu0 %v2433, 96
  %v2435 = vpop.permute.xlu0 %2434
  %v2437 = vadd.f32 %v2429, %v2435
  %v2438 = vadd.f32 %v2430, %v2435
  %v2439 = vld [vmem:[#allocation2 + $0x378] sm:$0x7c]
  %v2441 = vrot.slane %v2439, 6
  %2442 = vrot.lane.b32.xlu0 %v2441, 64
  %v2443 = vpop.permute.xlu0 %2442
  %v2445 = vadd.f32 %v2437, %v2443
  %v2446 = vadd.f32 %v2438, %v2443
  %v2447 = vld [vmem:[#allocation2 + $0x4b8] sm:$0x3e]
  %v2449 = vrot.slane %v2447, 5
  %2450 = vrot.lane.b32.xlu0 %v2449, 32
  %v2451 = vpop.permute.xlu0 %2450
  %v2453 = vadd.f32 %v2445, %v2451
  %v2454 = vadd.f32 %v2446, %v2451
  %vm2455 = vcmask 261124
  %2456 = vst.msk [vmem:[#allocation3 + $0x10] sm:$0xf0] %vm2455, %v2453
  %vm2457 = vcmask 253952
  %2458 = vst.msk [vmem:[#allocation3 + $0x18] sm:$0x1] %vm2457, %v2454
  %v2459 = vld [vmem:[#allocation2 + $0xc0] sm:$0x3e]
  %v2460 = vld [vmem:[#allocation2 + $0x220] sm:$0xf0]
  %v2461 = vld [vmem:[#allocation2 + $0x240] sm:$0x1]
  %vm2464 = vcmask 1044480
  %v2465 = vrot.slane %v2460, 3
  %v2466 = vrot.slane %v2461, 3
  %v2467 = vsel %vm2464, %v2465, %v2466
  %2468 = vrot.lane.b32.xlu0 %v2467, 96
  %v2469 = vpop.permute.xlu0 %2468
  %v2471 = vadd.f32 %v2459, %v2469
  %v2472 = vld [vmem:[#allocation2 + $0xc0] sm:$0x7c]
  %v2474 = vrot.slane %v2472, 1
  %2475 = vrot.lane.b32.xlu0 %v2474, 64
  %v2476 = vpop.permute.xlu0 %2475
  %v2478 = vadd.f32 %v2471, %v2476
  %v2479 = vld [vmem:[#allocation2 + $0x220] sm:$0xe0]
  %v2480 = vld [vmem:[#allocation2 + $0x240] sm:$0x3]
  %vm2483 = vcmask 1043456
  %v2484 = vrot.slane %v2479, 4
  %v2485 = vrot.slane %v2480, 4
  %v2486 = vsel %vm2483, %v2484, %v2485
  %2487 = vrot.lane.b32.xlu0 %v2486, 32
  %v2488 = vpop.permute.xlu0 %2487
  %v2490 = vadd.f32 %v2478, %v2488
  %v2491 = vld [vmem:[#allocation2 + $0x388] sm:$0x1f]
  %v2493 = vrot.slane %v2491, 7
  %v2495 = vadd.f32 %v2490, %v2493
  %v2496 = vld [vmem:[#allocation2 + $0x4a8] sm:$0xc0]
  %v2497 = vld [vmem:[#allocation2 + $0x4c8] sm:$0x7]
  %v2500 = vrot.slane %v2496, 5
  %v2501 = vrot.slane %v2497, 5
  %v2502 = vsel %vm1750, %v2500, %v2501
  %2503 = vrot.lane.b32.xlu0 %v2502, 96
  %v2504 = vpop.permute.xlu0 %2503
  %v2506 = vadd.f32 %v2495, %v2504
  %v2507 = vld [vmem:[#allocation2 + $0x388] sm:$0x3e]
  %2509 = vrot.lane.b32.xlu0 %v2507, 64
  %v2510 = vpop.permute.xlu0 %2509
  %v2512 = vadd.f32 %v2506, %v2510
  %v2513 = vld [vmem:[#allocation2 + $0x4a8] sm:$0x80]
  %v2514 = vld [vmem:[#allocation2 + $0x4c8] sm:$0xf]
  %v2517 = vrot.slane %v2513, 6
  %v2518 = vrot.slane %v2514, 6
  %v2519 = vsel %vm1686, %v2517, %v2518
  %2520 = vrot.lane.b32.xlu0 %v2519, 32
  %v2521 = vpop.permute.xlu0 %2520
  %v2523 = vadd.f32 %v2512, %v2521
  %v2524 = vld [vmem:[#allocation2 + $0xf0] sm:$0x1f]
  %v2526 = vrot.slane %v2524, 7
  %v2528 = vadd.f32 %v2523, %v2526
  %v2529 = vld [vmem:[#allocation2 + $0x250] sm:$0x7c]
  %v2531 = vrot.slane %v2529, 1
  %2532 = vrot.lane.b32.xlu0 %v2531, 96
  %v2533 = vpop.permute.xlu0 %2532
  %v2535 = vadd.f32 %v2528, %v2533
  %v2536 = vld [vmem:[#allocation2 + $0xf0] sm:$0x3e]
  %2538 = vrot.lane.b32.xlu0 %v2536, 64
  %v2539 = vpop.permute.xlu0 %2538
  %v2541 = vadd.f32 %v2535, %v2539
  %v2542 = vld [vmem:[#allocation2 + $0x250] sm:$0xf8]
  %v2544 = vrot.slane %v2542, 2
  %2545 = vrot.lane.b32.xlu0 %v2544, 32
  %v2546 = vpop.permute.xlu0 %2545
  %v2548 = vadd.f32 %v2541, %v2546
  %v2549 = vld [vmem:[#allocation2 + $0x398] sm:$0x80]
  %v2550 = vld [vmem:[#allocation2 + $0x3b8] sm:$0xf]
  %v2553 = vrot.slane %v2549, 6
  %v2554 = vrot.slane %v2550, 6
  %v2555 = vsel %vm1686, %v2553, %v2554
  %v2557 = vadd.f32 %v2548, %v2555
  %v2558 = vld [vmem:[#allocation2 + $0x4d8] sm:$0xf0]
  %v2559 = vld [vmem:[#allocation2 + $0x4f8] sm:$0x1]
  %v2562 = vrot.slane %v2558, 3
  %v2563 = vrot.slane %v2559, 3
  %v2564 = vsel %vm2464, %v2562, %v2563
  %2565 = vrot.lane.b32.xlu0 %v2564, 96
  %v2566 = vpop.permute.xlu0 %2565
  %v2568 = vadd.f32 %v2557, %v2566
  %v2569 = vld [vmem:[#allocation2 + $0x3b8] sm:$0x1f]
  %v2571 = vrot.slane %v2569, 7
  %2572 = vrot.lane.b32.xlu0 %v2571, 64
  %v2573 = vpop.permute.xlu0 %2572
  %v2575 = vadd.f32 %v2568, %v2573
  %v2576 = vld [vmem:[#allocation2 + $0x4d8] sm:$0xe0]
  %v2577 = vld [vmem:[#allocation2 + $0x4f8] sm:$0x3]
  %v2580 = vrot.slane %v2576, 4
  %v2581 = vrot.slane %v2577, 4
  %v2582 = vsel %vm2483, %v2580, %v2581
  %2583 = vrot.lane.b32.xlu0 %v2582, 32
  %v2584 = vpop.permute.xlu0 %2583
  %v2586 = vadd.f32 %v2575, %v2584
  %vm2587 = vcmask 259073
  %2588 = vst.msk [vmem:[#allocation3 + $0x18] sm:$0x3e] %vm2587, %v2586
  %v2589 = vld [vmem:[#allocation2 + $0xe0] sm:$0x1f]
  %v2590 = vld [vmem:[#allocation2 + $0x240] sm:$0x7c]
  %v2592 = vrot.slane %v2590, 2
  %2593 = vrot.lane.b32.xlu0 %v2592, 96
  %v2594 = vpop.permute.xlu0 %2593
  %v2596 = vadd.f32 %v2589, %v2594
  %v2597 = vld [vmem:[#allocation2 + $0xe0] sm:$0x3e]
  %v2599 = vrot.slane %v2597, 1
  %2600 = vrot.lane.b32.xlu0 %v2599, 64
  %v2601 = vpop.permute.xlu0 %2600
  %v2603 = vadd.f32 %v2596, %v2601
  %v2604 = vld [vmem:[#allocation2 + $0x240] sm:$0xf8]
  %v2606 = vrot.slane %v2604, 3
  %2607 = vrot.lane.b32.xlu0 %v2606, 32
  %v2608 = vpop.permute.xlu0 %2607
  %v2610 = vadd.f32 %v2603, %v2608
  %v2611 = vld [vmem:[#allocation2 + $0x388] sm:$0x80]
  %v2612 = vld [vmem:[#allocation2 + $0x3a8] sm:$0xf]
  %v2615 = vrot.slane %v2611, 7
  %v2616 = vrot.slane %v2612, 7
  %v2617 = vsel %vm1703, %v2615, %v2616
  %v2619 = vadd.f32 %v2610, %v2617
  %v2620 = vld [vmem:[#allocation2 + $0x4c8] sm:$0xf0]
  %v2621 = vld [vmem:[#allocation2 + $0x4e8] sm:$0x1]
  %v2624 = vrot.slane %v2620, 4
  %v2625 = vrot.slane %v2621, 4
  %v2626 = vsel %vm2483, %v2624, %v2625
  %2627 = vrot.lane.b32.xlu0 %v2626, 96
  %v2628 = vpop.permute.xlu0 %2627
  %v2630 = vadd.f32 %v2619, %v2628
  %v2631 = vld [vmem:[#allocation2 + $0x3a8] sm:$0x1f]
  %2633 = vrot.lane.b32.xlu0 %v2631, 64
  %v2634 = vpop.permute.xlu0 %2633
  %v2636 = vadd.f32 %v2630, %v2634
  %v2637 = vld [vmem:[#allocation2 + $0x4c8] sm:$0xe0]
  %v2638 = vld [vmem:[#allocation2 + $0x4e8] sm:$0x3]
  %v2641 = vrot.slane %v2637, 5
  %v2642 = vrot.slane %v2638, 5
  %v2643 = vsel %vm1750, %v2641, %v2642
  %2644 = vrot.lane.b32.xlu0 %v2643, 32
  %v2645 = vpop.permute.xlu0 %2644
  %v2647 = vadd.f32 %v2636, %v2645
  %v2648 = vld [vmem:[#allocation2 + $0xf0] sm:$0x80]
  %v2649 = vld [vmem:[#allocation2 + $0x110] sm:$0xf]
  %v2652 = vrot.slane %v2648, 7
  %v2653 = vrot.slane %v2649, 7
  %v2654 = vsel %vm1703, %v2652, %v2653
  %v2656 = vadd.f32 %v2647, %v2654
  %v2657 = vld [vmem:[#allocation2 + $0x270] sm:$0x1f]
  %2659 = vrot.lane.b32.xlu0 %v2657, 96
  %v2660 = vpop.permute.xlu0 %2659
  %v2662 = vadd.f32 %v2656, %v2660
  %v2663 = vld [vmem:[#allocation2 + $0x110] sm:$0x1f]
  %2665 = vrot.lane.b32.xlu0 %v2663, 64
  %v2666 = vpop.permute.xlu0 %2665
  %v2668 = vadd.f32 %v2662, %v2666
  %v2669 = vld [vmem:[#allocation2 + $0x270] sm:$0x3e]
  %v2671 = vrot.slane %v2669, 1
  %2672 = vrot.lane.b32.xlu0 %v2671, 32
  %v2673 = vpop.permute.xlu0 %2672
  %v2675 = vadd.f32 %v2668, %v2673
  %v2676 = vld [vmem:[#allocation2 + $0x3b8] sm:$0xc0]
  %v2677 = vld [vmem:[#allocation2 + $0x3d8] sm:$0x7]
  %v2680 = vrot.slane %v2676, 6
  %v2681 = vrot.slane %v2677, 6
  %v2682 = vsel %vm1686, %v2680, %v2681
  %v2684 = vadd.f32 %v2675, %v2682
  %v2685 = vld [vmem:[#allocation2 + $0x4f8] sm:$0x7c]
  %v2687 = vrot.slane %v2685, 2
  %2688 = vrot.lane.b32.xlu0 %v2687, 96
  %v2689 = vpop.permute.xlu0 %2688
  %v2691 = vadd.f32 %v2684, %v2689
  %v2692 = vld [vmem:[#allocation2 + $0x3b8] sm:$0x80]
  %v2693 = vld [vmem:[#allocation2 + $0x3d8] sm:$0xf]
  %v2696 = vrot.slane %v2692, 7
  %v2697 = vrot.slane %v2693, 7
  %v2698 = vsel %vm1703, %v2696, %v2697
  %2699 = vrot.lane.b32.xlu0 %v2698, 64
  %v2700 = vpop.permute.xlu0 %2699
  %v2702 = vadd.f32 %v2691, %v2700
  %v2703 = vld [vmem:[#allocation2 + $0x4f8] sm:$0xf8]
  %v2705 = vrot.slane %v2703, 3
  %2706 = vrot.lane.b32.xlu0 %v2705, 32
  %v2707 = vpop.permute.xlu0 %2706
  %v2709 = vadd.f32 %v2702, %v2707
  %2710 = vst.msk [vmem:[#allocation3 + $0x1e] sm:$0x1f] %vm1780, %v2709
  %v2711 = vld [vmem:[#allocation2 + $0xe0] sm:$0x80]
  %v2712 = vld [vmem:[#allocation2 + $0x100] sm:$0xf]
  %v2713 = vld [vmem:[#allocation2 + $0x260] sm:$0x1f]
  %v2715 = vrot.slane %v2713, 1
  %2716 = vrot.lane.b32.xlu0 %v2715, 96
  %v2717 = vpop.permute.xlu0 %2716
  %v2719 = vadd.f32 %v2711, %v2717
  %v2720 = vadd.f32 %v2712, %v2717
  %v2721 = vld [vmem:[#allocation2 + $0x100] sm:$0x1f]
  %v2723 = vrot.slane %v2721, 1
  %2724 = vrot.lane.b32.xlu0 %v2723, 64
  %v2725 = vpop.permute.xlu0 %2724
  %v2727 = vadd.f32 %v2719, %v2725
  %v2728 = vadd.f32 %v2720, %v2725
  %v2729 = vld [vmem:[#allocation2 + $0x260] sm:$0x3e]
  %v2731 = vrot.slane %v2729, 2
  %2732 = vrot.lane.b32.xlu0 %v2731, 32
  %v2733 = vpop.permute.xlu0 %2732
  %v2735 = vadd.f32 %v2727, %v2733
  %v2736 = vadd.f32 %v2728, %v2733
  %v2737 = vld [vmem:[#allocation2 + $0x3a8] sm:$0xc0]
  %v2738 = vld [vmem:[#allocation2 + $0x3c8] sm:$0x7]
  %v2741 = vrot.slane %v2737, 7
  %v2742 = vrot.slane %v2738, 7
  %v2743 = vsel %vm1703, %v2741, %v2742
  %v2746 = vadd.f32 %v2735, %v2741
  %v2747 = vadd.f32 %v2736, %v2743
  %v2748 = vld [vmem:[#allocation2 + $0x4e8] sm:$0x7c]
  %v2750 = vrot.slane %v2748, 3
  %2751 = vrot.lane.b32.xlu0 %v2750, 96
  %v2752 = vpop.permute.xlu0 %2751
  %v2754 = vadd.f32 %v2746, %v2752
  %v2755 = vadd.f32 %v2747, %v2752
  %v2756 = vld [vmem:[#allocation2 + $0x3a8] sm:$0x80]
  %v2757 = vld [vmem:[#allocation2 + $0x3c8] sm:$0xf]
  %2760 = vrot.lane.b32.xlu0 %v2756, 64
  %v2761 = vpop.permute.xlu0 %2760
  %2762 = vrot.lane.b32.xlu0 %v2757, 64
  %v2763 = vpop.permute.xlu0 %2762
  %v2766 = vadd.f32 %v2754, %v2761
  %v2767 = vadd.f32 %v2755, %v2763
  %v2768 = vld [vmem:[#allocation2 + $0x4e8] sm:$0xf8]
  %v2770 = vrot.slane %v2768, 4
  %2771 = vrot.lane.b32.xlu0 %v2770, 32
  %v2772 = vpop.permute.xlu0 %2771
  %v2774 = vadd.f32 %v2766, %v2772
  %v2775 = vadd.f32 %v2767, %v2772
  %v2776 = vld [vmem:[#allocation2 + $0x110] sm:$0xc0]
  %v2777 = vld [vmem:[#allocation2 + $0x130] sm:$0x7]
  %v2780 = vrot.slane %v2776, 7
  %v2781 = vrot.slane %v2777, 7
  %v2782 = vsel %vm1703, %v2780, %v2781
  %v2785 = vadd.f32 %v2774, %v2780
  %v2786 = vadd.f32 %v2775, %v2782
  %v2787 = vld [vmem:[#allocation2 + $0x270] sm:$0xc0]
  %v2788 = vld [vmem:[#allocation2 + $0x290] sm:$0x7]
  %v2791 = vrot.slane %v2787, 7
  %v2792 = vrot.slane %v2788, 7
  %v2793 = vsel %vm1703, %v2791, %v2792
  %2794 = vrot.lane.b32.xlu0 %v2791, 96
  %v2795 = vpop.permute.xlu0 %2794
  %2796 = vrot.lane.b32.xlu0 %v2793, 96
  %v2797 = vpop.permute.xlu0 %2796
  %v2800 = vadd.f32 %v2785, %v2795
  %v2801 = vadd.f32 %v2786, %v2797
  %v2802 = vld [vmem:[#allocation2 + $0x110] sm:$0x80]
  %v2803 = vld [vmem:[#allocation2 + $0x130] sm:$0xf]
  %2806 = vrot.lane.b32.xlu0 %v2802, 64
  %v2807 = vpop.permute.xlu0 %2806
  %2808 = vrot.lane.b32.xlu0 %v2803, 64
  %v2809 = vpop.permute.xlu0 %2808
  %v2812 = vadd.f32 %v2800, %v2807
  %v2813 = vadd.f32 %v2801, %v2809
  %v2814 = vld [vmem:[#allocation2 + $0x270] sm:$0x80]
  %v2815 = vld [vmem:[#allocation2 + $0x290] sm:$0xf]
  %2818 = vrot.lane.b32.xlu0 %v2814, 32
  %v2819 = vpop.permute.xlu0 %2818
  %2820 = vrot.lane.b32.xlu0 %v2815, 32
  %v2821 = vpop.permute.xlu0 %2820
  %v2824 = vadd.f32 %v2812, %v2819
  %v2825 = vadd.f32 %v2813, %v2821
  %v2826 = vld [vmem:[#allocation2 + $0x3d8] sm:$0xe0]
  %v2827 = vld [vmem:[#allocation2 + $0x3f8] sm:$0x3]
  %v2830 = vrot.slane %v2826, 6
  %v2831 = vrot.slane %v2827, 6
  %v2832 = vsel %vm1686, %v2830, %v2831
  %v2835 = vadd.f32 %v2824, %v2830
  %v2836 = vadd.f32 %v2825, %v2832
  %v2837 = vld [vmem:[#allocation2 + $0x518] sm:$0x1f]
  %v2839 = vrot.slane %v2837, 1
  %2840 = vrot.lane.b32.xlu0 %v2839, 96
  %v2841 = vpop.permute.xlu0 %2840
  %v2843 = vadd.f32 %v2835, %v2841
  %v2844 = vadd.f32 %v2836, %v2841
  %v2845 = vld [vmem:[#allocation2 + $0x3d8] sm:$0xc0]
  %v2846 = vld [vmem:[#allocation2 + $0x3f8] sm:$0x7]
  %v2849 = vrot.slane %v2845, 7
  %v2850 = vrot.slane %v2846, 7
  %v2851 = vsel %vm1703, %v2849, %v2850
  %2852 = vrot.lane.b32.xlu0 %v2849, 64
  %v2853 = vpop.permute.xlu0 %2852
  %2854 = vrot.lane.b32.xlu0 %v2851, 64
  %v2855 = vpop.permute.xlu0 %2854
  %v2858 = vadd.f32 %v2843, %v2853
  %v2859 = vadd.f32 %v2844, %v2855
  %v2860 = vld [vmem:[#allocation2 + $0x518] sm:$0x3e]
  %v2862 = vrot.slane %v2860, 2
  %2863 = vrot.lane.b32.xlu0 %v2862, 32
  %v2864 = vpop.permute.xlu0 %2863
  %v2866 = vadd.f32 %v2858, %v2864
  %v2867 = vadd.f32 %v2859, %v2864
  %2868 = vst.msk [vmem:[#allocation3 + $0x1c] sm:$0x80] %vm1953, %v2866
  %2869 = vst.msk [vmem:[#allocation3 + $0x24] sm:$0xf] %vm1955, %v2867
  %v2870 = vld [vmem:[#allocation2 + $0x100] sm:$0xc0]
  %v2871 = vld [vmem:[#allocation2 + $0x120] sm:$0x7]
  %v2872 = vld [vmem:[#allocation2 + $0x260] sm:$0xc0]
  %v2873 = vld [vmem:[#allocation2 + $0x280] sm:$0x7]
  %2876 = vrot.lane.b32.xlu0 %v2872, 96
  %v2877 = vpop.permute.xlu0 %2876
  %2878 = vrot.lane.b32.xlu0 %v2873, 96
  %v2879 = vpop.permute.xlu0 %2878
  %v2882 = vadd.f32 %v2870, %v2877
  %v2883 = vadd.f32 %v2871, %v2879
  %v2884 = vld [vmem:[#allocation2 + $0x100] sm:$0x80]
  %v2885 = vld [vmem:[#allocation2 + $0x120] sm:$0xf]
  %v2888 = vrot.slane %v2884, 1
  %v2889 = vrot.slane %v2885, 1
  %v2890 = vsel %vm1975, %v2888, %v2889
  %2891 = vrot.lane.b32.xlu0 %v2890, 64
  %v2892 = vpop.permute.xlu0 %2891
  %2893 = vrot.lane.b32.xlu0 %v2889, 64
  %v2894 = vpop.permute.xlu0 %2893
  %v2897 = vadd.f32 %v2882, %v2892
  %v2898 = vadd.f32 %v2883, %v2894
  %v2899 = vld [vmem:[#allocation2 + $0x260] sm:$0x80]
  %v2900 = vld [vmem:[#allocation2 + $0x280] sm:$0xf]
  %v2903 = vrot.slane %v2899, 1
  %v2904 = vrot.slane %v2900, 1
  %v2905 = vsel %vm1975, %v2903, %v2904
  %2906 = vrot.lane.b32.xlu0 %v2905, 32
  %v2907 = vpop.permute.xlu0 %2906
  %2908 = vrot.lane.b32.xlu0 %v2904, 32
  %v2909 = vpop.permute.xlu0 %2908
  %v2912 = vadd.f32 %v2897, %v2907
  %v2913 = vadd.f32 %v2898, %v2909
  %v2914 = vld [vmem:[#allocation2 + $0x3c8] sm:$0xe0]
  %v2915 = vld [vmem:[#allocation2 + $0x3e8] sm:$0x3]
  %v2918 = vrot.slane %v2914, 7
  %v2919 = vrot.slane %v2915, 7
  %v2920 = vsel %vm1703, %v2918, %v2919
  %v2923 = vadd.f32 %v2912, %v2918
  %v2924 = vadd.f32 %v2913, %v2920
  %v2925 = vld [vmem:[#allocation2 + $0x508] sm:$0x1f]
  %v2927 = vrot.slane %v2925, 2
  %2928 = vrot.lane.b32.xlu0 %v2927, 96
  %v2929 = vpop.permute.xlu0 %2928
  %v2931 = vadd.f32 %v2923, %v2929
  %v2932 = vadd.f32 %v2924, %v2929
  %v2933 = vld [vmem:[#allocation2 + $0x3c8] sm:$0xc0]
  %v2934 = vld [vmem:[#allocation2 + $0x3e8] sm:$0x7]
  %2937 = vrot.lane.b32.xlu0 %v2933, 64
  %v2938 = vpop.permute.xlu0 %2937
  %2939 = vrot.lane.b32.xlu0 %v2934, 64
  %v2940 = vpop.permute.xlu0 %2939
  %v2943 = vadd.f32 %v2931, %v2938
  %v2944 = vadd.f32 %v2932, %v2940
  %v2945 = vld [vmem:[#allocation2 + $0x508] sm:$0x3e]
  %v2947 = vrot.slane %v2945, 3
  %2948 = vrot.lane.b32.xlu0 %v2947, 32
  %v2949 = vpop.permute.xlu0 %2948
  %v2951 = vadd.f32 %v2943, %v2949
  %v2952 = vadd.f32 %v2944, %v2949
  %v2953 = vld [vmem:[#allocation2 + $0x130] sm:$0xe0]
  %v2954 = vld [vmem:[#allocation2 + $0x150] sm:$0x3]
  %v2957 = vrot.slane %v2953, 7
  %v2958 = vrot.slane %v2954, 7
  %v2959 = vsel %vm1703, %v2957, %v2958
  %v2962 = vadd.f32 %v2951, %v2957
  %v2963 = vadd.f32 %v2952, %v2959
  %v2964 = vld [vmem:[#allocation2 + $0x290] sm:$0xf0]
  %v2965 = vld [vmem:[#allocation2 + $0x2b0] sm:$0x1]
  %v2968 = vrot.slane %v2964, 6
  %v2969 = vrot.slane %v2965, 6
  %v2970 = vsel %vm1686, %v2968, %v2969
  %2971 = vrot.lane.b32.xlu0 %v2968, 96
  %v2972 = vpop.permute.xlu0 %2971
  %2973 = vrot.lane.b32.xlu0 %v2970, 96
  %v2974 = vpop.permute.xlu0 %2973
  %v2977 = vadd.f32 %v2962, %v2972
  %v2978 = vadd.f32 %v2963, %v2974
  %v2979 = vld [vmem:[#allocation2 + $0x130] sm:$0xc0]
  %v2980 = vld [vmem:[#allocation2 + $0x150] sm:$0x7]
  %2983 = vrot.lane.b32.xlu0 %v2979, 64
  %v2984 = vpop.permute.xlu0 %2983
  %2985 = vrot.lane.b32.xlu0 %v2980, 64
  %v2986 = vpop.permute.xlu0 %2985
  %v2989 = vadd.f32 %v2977, %v2984
  %v2990 = vadd.f32 %v2978, %v2986
  %v2991 = vld [vmem:[#allocation2 + $0x290] sm:$0xe0]
  %v2992 = vld [vmem:[#allocation2 + $0x2b0] sm:$0x3]
  %v2995 = vrot.slane %v2991, 7
  %v2996 = vrot.slane %v2992, 7
  %v2997 = vsel %vm1703, %v2995, %v2996
  %2998 = vrot.lane.b32.xlu0 %v2995, 32
  %v2999 = vpop.permute.xlu0 %2998
  %3000 = vrot.lane.b32.xlu0 %v2997, 32
  %v3001 = vpop.permute.xlu0 %3000
  %v3004 = vadd.f32 %v2989, %v2999
  %v3005 = vadd.f32 %v2990, %v3001
  %v3006 = vld [vmem:[#allocation2 + $0x3f8] sm:$0xf0]
  %v3007 = vld [vmem:[#allocation2 + $0x418] sm:$0x1]
  %v3010 = vrot.slane %v3006, 6
  %v3011 = vrot.slane %v3007, 6
  %v3012 = vsel %vm1686, %v3010, %v3011
  %v3015 = vadd.f32 %v3004, %v3010
  %v3016 = vadd.f32 %v3005, %v3012
  %v3017 = vld [vmem:[#allocation2 + $0x518] sm:$0xc0]
  %v3018 = vld [vmem:[#allocation2 + $0x538] sm:$0x7]
  %3021 = vrot.lane.b32.xlu0 %v3017, 96
  %v3022 = vpop.permute.xlu0 %3021
  %3023 = vrot.lane.b32.xlu0 %v3018, 96
  %v3024 = vpop.permute.xlu0 %3023
  %v3027 = vadd.f32 %v3015, %v3022
  %v3028 = vadd.f32 %v3016, %v3024
  %v3029 = vld [vmem:[#allocation2 + $0x3f8] sm:$0xe0]
  %v3030 = vld [vmem:[#allocation2 + $0x418] sm:$0x3]
  %v3033 = vrot.slane %v3029, 7
  %v3034 = vrot.slane %v3030, 7
  %v3035 = vsel %vm1703, %v3033, %v3034
  %3036 = vrot.lane.b32.xlu0 %v3033, 64
  %v3037 = vpop.permute.xlu0 %3036
  %3038 = vrot.lane.b32.xlu0 %v3035, 64
  %v3039 = vpop.permute.xlu0 %3038
  %v3042 = vadd.f32 %v3027, %v3037
  %v3043 = vadd.f32 %v3028, %v3039
  %v3044 = vld [vmem:[#allocation2 + $0x518] sm:$0x80]
  %v3045 = vld [vmem:[#allocation2 + $0x538] sm:$0xf]
  %v3048 = vrot.slane %v3044, 1
  %v3049 = vrot.slane %v3045, 1
  %v3050 = vsel %vm1975, %v3048, %v3049
  %3051 = vrot.lane.b32.xlu0 %v3050, 32
  %v3052 = vpop.permute.xlu0 %3051
  %3053 = vrot.lane.b32.xlu0 %v3049, 32
  %v3054 = vpop.permute.xlu0 %3053
  %v3057 = vadd.f32 %v3042, %v3052
  %v3058 = vadd.f32 %v3043, %v3054
  %3059 = vst.msk [vmem:[#allocation3 + $0x22] sm:$0xc0] %vm2159, %v3057
  %3060 = vst.msk [vmem:[#allocation3 + $0x2a] sm:$0x7] %vm2161, %v3058
  %v3061 = vld [vmem:[#allocation2 + $0x120] sm:$0xe0]
  %v3062 = vld [vmem:[#allocation2 + $0x140] sm:$0x3]
  %v3063 = vld [vmem:[#allocation2 + $0x280] sm:$0xf0]
  %v3064 = vld [vmem:[#allocation2 + $0x2a0] sm:$0x1]
  %v3067 = vrot.slane %v3063, 7
  %v3068 = vrot.slane %v3064, 7
  %v3069 = vsel %vm1703, %v3067, %v3068
  %3070 = vrot.lane.b32.xlu0 %v3067, 96
  %v3071 = vpop.permute.xlu0 %3070
  %3072 = vrot.lane.b32.xlu0 %v3069, 96
  %v3073 = vpop.permute.xlu0 %3072
  %v3076 = vadd.f32 %v3061, %v3071
  %v3077 = vadd.f32 %v3062, %v3073
  %v3078 = vld [vmem:[#allocation2 + $0x120] sm:$0xc0]
  %v3079 = vld [vmem:[#allocation2 + $0x140] sm:$0x7]
  %v3082 = vrot.slane %v3078, 1
  %v3083 = vrot.slane %v3079, 1
  %v3084 = vsel %vm1975, %v3082, %v3083
  %3085 = vrot.lane.b32.xlu0 %v3084, 64
  %v3086 = vpop.permute.xlu0 %3085
  %3087 = vrot.lane.b32.xlu0 %v3083, 64
  %v3088 = vpop.permute.xlu0 %3087
  %v3091 = vadd.f32 %v3076, %v3086
  %v3092 = vadd.f32 %v3077, %v3088
  %v3093 = vld [vmem:[#allocation2 + $0x280] sm:$0xe0]
  %v3094 = vld [vmem:[#allocation2 + $0x2a0] sm:$0x3]
  %3097 = vrot.lane.b32.xlu0 %v3093, 32
  %v3098 = vpop.permute.xlu0 %3097
  %3099 = vrot.lane.b32.xlu0 %v3094, 32
  %v3100 = vpop.permute.xlu0 %3099
  %v3103 = vadd.f32 %v3091, %v3098
  %v3104 = vadd.f32 %v3092, %v3100
  %v3105 = vld [vmem:[#allocation2 + $0x3e8] sm:$0xf0]
  %v3106 = vld [vmem:[#allocation2 + $0x408] sm:$0x1]
  %v3109 = vrot.slane %v3105, 7
  %v3110 = vrot.slane %v3106, 7
  %v3111 = vsel %vm1703, %v3109, %v3110
  %v3114 = vadd.f32 %v3103, %v3109
  %v3115 = vadd.f32 %v3104, %v3111
  %v3116 = vld [vmem:[#allocation2 + $0x508] sm:$0xc0]
  %v3117 = vld [vmem:[#allocation2 + $0x528] sm:$0x7]
  %v3120 = vrot.slane %v3116, 1
  %v3121 = vrot.slane %v3117, 1
  %v3122 = vsel %vm1975, %v3120, %v3121
  %3123 = vrot.lane.b32.xlu0 %v3122, 96
  %v3124 = vpop.permute.xlu0 %3123
  %3125 = vrot.lane.b32.xlu0 %v3121, 96
  %v3126 = vpop.permute.xlu0 %3125
  %v3129 = vadd.f32 %v3114, %v3124
  %v3130 = vadd.f32 %v3115, %v3126
  %v3131 = vld [vmem:[#allocation2 + $0x3e8] sm:$0xe0]
  %v3132 = vld [vmem:[#allocation2 + $0x408] sm:$0x3]
  %3135 = vrot.lane.b32.xlu0 %v3131, 64
  %v3136 = vpop.permute.xlu0 %3135
  %3137 = vrot.lane.b32.xlu0 %v3132, 64
  %v3138 = vpop.permute.xlu0 %3137
  %v3141 = vadd.f32 %v3129, %v3136
  %v3142 = vadd.f32 %v3130, %v3138
  %v3143 = vld [vmem:[#allocation2 + $0x508] sm:$0x80]
  %v3144 = vld [vmem:[#allocation2 + $0x528] sm:$0xf]
  %vm3147 = vcmask 1045504
  %v3148 = vrot.slane %v3143, 2
  %v3149 = vrot.slane %v3144, 2
  %v3150 = vsel %vm3147, %v3148, %v3149
  %3151 = vrot.lane.b32.xlu0 %v3150, 32
  %v3152 = vpop.permute.xlu0 %3151
  %3153 = vrot.lane.b32.xlu0 %v3149, 32
  %v3154 = vpop.permute.xlu0 %3153
  %v3157 = vadd.f32 %v3141, %v3152
  %v3158 = vadd.f32 %v3142, %v3154
  %v3159 = vld [vmem:[#allocation2 + $0x150] sm:$0xf0]
  %v3160 = vld [vmem:[#allocation2 + $0x170] sm:$0x1]
  %v3163 = vrot.slane %v3159, 7
  %v3164 = vrot.slane %v3160, 7
  %v3165 = vsel %vm1703, %v3163, %v3164
  %v3168 = vadd.f32 %v3157, %v3163
  %v3169 = vadd.f32 %v3158, %v3165
  %v3170 = vld [vmem:[#allocation2 + $0x2b0] sm:$0x7c]
  %v3172 = vrot.slane %v3170, 5
  %3173 = vrot.lane.b32.xlu0 %v3172, 96
  %v3174 = vpop.permute.xlu0 %3173
  %v3176 = vadd.f32 %v3168, %v3174
  %v3177 = vadd.f32 %v3169, %v3174
  %v3178 = vld [vmem:[#allocation2 + $0x150] sm:$0xe0]
  %v3179 = vld [vmem:[#allocation2 + $0x170] sm:$0x3]
  %3182 = vrot.lane.b32.xlu0 %v3178, 64
  %v3183 = vpop.permute.xlu0 %3182
  %3184 = vrot.lane.b32.xlu0 %v3179, 64
  %v3185 = vpop.permute.xlu0 %3184
  %v3188 = vadd.f32 %v3176, %v3183
  %v3189 = vadd.f32 %v3177, %v3185
  %v3190 = vld [vmem:[#allocation2 + $0x2b0] sm:$0xf8]
  %v3192 = vrot.slane %v3190, 6
  %3193 = vrot.lane.b32.xlu0 %v3192, 32
  %v3194 = vpop.permute.xlu0 %3193
  %v3196 = vadd.f32 %v3188, %v3194
  %v3197 = vadd.f32 %v3189, %v3194
  %v3198 = vld [vmem:[#allocation2 + $0x418] sm:$0xf8]
  %v3200 = vrot.slane %v3198, 6
  %v3202 = vadd.f32 %v3196, %v3200
  %v3203 = vadd.f32 %v3197, %v3200
  %v3204 = vld [vmem:[#allocation2 + $0x538] sm:$0xf0]
  %v3205 = vld [vmem:[#allocation2 + $0x558] sm:$0x1]
  %v3208 = vrot.slane %v3204, 7
  %v3209 = vrot.slane %v3205, 7
  %v3210 = vsel %vm1703, %v3208, %v3209
  %3211 = vrot.lane.b32.xlu0 %v3208, 96
  %v3212 = vpop.permute.xlu0 %3211
  %3213 = vrot.lane.b32.xlu0 %v3210, 96
  %v3214 = vpop.permute.xlu0 %3213
  %v3217 = vadd.f32 %v3202, %v3212
  %v3218 = vadd.f32 %v3203, %v3214
  %v3219 = vld [vmem:[#allocation2 + $0x418] sm:$0xf0]
  %v3220 = vld [vmem:[#allocation2 + $0x438] sm:$0x1]
  %v3223 = vrot.slane %v3219, 7
  %v3224 = vrot.slane %v3220, 7
  %v3225 = vsel %vm1703, %v3223, %v3224
  %3226 = vrot.lane.b32.xlu0 %v3223, 64
  %v3227 = vpop.permute.xlu0 %3226
  %3228 = vrot.lane.b32.xlu0 %v3225, 64
  %v3229 = vpop.permute.xlu0 %3228
  %v3232 = vadd.f32 %v3217, %v3227
  %v3233 = vadd.f32 %v3218, %v3229
  %v3234 = vld [vmem:[#allocation2 + $0x538] sm:$0xe0]
  %v3235 = vld [vmem:[#allocation2 + $0x558] sm:$0x3]
  %3238 = vrot.lane.b32.xlu0 %v3234, 32
  %v3239 = vpop.permute.xlu0 %3238
  %3240 = vrot.lane.b32.xlu0 %v3235, 32
  %v3241 = vpop.permute.xlu0 %3240
  %v3244 = vadd.f32 %v3232, %v3239
  %v3245 = vadd.f32 %v3233, %v3241
  %3246 = vst.msk [vmem:[#allocation3 + $0x28] sm:$0xe0] %vm2324, %v3244
  %3247 = vst.msk [vmem:[#allocation3 + $0x30] sm:$0x3] %vm2326, %v3245
  %v3248 = vld [vmem:[#allocation3] sm:$0xff]
  %v3249 = vld [vmem:[#allocation3 + $0x8] sm:$0xff]
  %v3250 = vld [vmem:[#allocation3 + $0x10] sm:$0xff]
  %v3251 = vld [vmem:[#allocation3 + $0x18] sm:$0xff]
  %v3252 = vld [vmem:[#allocation3 + $0x20] sm:$0xff]
  %v3253 = vld [vmem:[#allocation3 + $0x28] sm:$0xff]
  %v3254 = vld [vmem:[#allocation3 + $0x30] sm:$0x3]
  %v3255 = vld [vmem:[%s4] sm:$0x1]
  %v3257 = vlaneseq
  %v3258 = vshrl.u32 %v3257, 7
  %v3259 = vsub.s32 0, %v3258
  %v3260 = vrot.slane %v3255, %v3259
  %v3262 = vadd.f32 %v3248, %v3260
  %v3263 = vadd.f32 %v3249, %v3260
  %v3264 = vadd.f32 %v3250, %v3260
  %v3265 = vadd.f32 %v3251, %v3260
  %v3266 = vadd.f32 %v3252, %v3260
  %v3267 = vadd.f32 %v3253, %v3260
  %v3268 = vadd.f32 %v3254, %v3260
  %vm3269 = vcmask 261120
  %v3270 = vsel %vm3269, %v3262, 0.0
  %v3271 = vsel %vm3269, %v3263, 0.0
  %v3272 = vadd.f32 %v3270, %v3271
  %v3273 = vsel %vm3269, %v3264, 0.0
  %v3274 = vadd.f32 %v3272, %v3273
  %v3275 = vsel %vm3269, %v3265, 0.0
  %v3276 = vadd.f32 %v3274, %v3275
  %v3277 = vsel %vm3269, %v3266, 0.0
  %v3278 = vadd.f32 %v3276, %v3277
  %v3279 = vsel %vm3269, %v3267, 0.0
  %v3280 = vadd.f32 %v3278, %v3279
  %v3281 = vsel %vm2326, %v3268, 0.0
  %v3282 = vadd.f32 %v3280, %v3281
  %v3283 = vrot.slane %v3282, 4
  %v3284 = vadd.f32 %v3282, %v3283
  %v3285 = vrot.slane %v3284, 2
  %v3286 = vadd.f32 %v3284, %v3285
  %v3287 = vrot.slane %v3286, 1
  %v3288 = vadd.f32 %v3286, %v3287
  %v3289 = vmul.f32 %v3262, %v3262
  %v3290 = vmul.f32 %v3263, %v3263
  %v3291 = vmul.f32 %v3264, %v3264
  %v3292 = vmul.f32 %v3265, %v3265
  %v3293 = vmul.f32 %v3266, %v3266
  %v3294 = vmul.f32 %v3267, %v3267
  %v3295 = vmul.f32 %v3268, %v3268
  %v3296 = vsel %vm3269, %v3289, 0.0
  %v3297 = vsel %vm3269, %v3290, 0.0
  %v3298 = vadd.f32 %v3296, %v3297
  %v3299 = vsel %vm3269, %v3291, 0.0
  %v3300 = vadd.f32 %v3298, %v3299
  %v3301 = vsel %vm3269, %v3292, 0.0
  %v3302 = vadd.f32 %v3300, %v3301
  %v3303 = vsel %vm3269, %v3293, 0.0
  %v3304 = vadd.f32 %v3302, %v3303
  %v3305 = vsel %vm3269, %v3294, 0.0
  %v3306 = vadd.f32 %v3304, %v3305
  %v3307 = vsel %vm2326, %v3295, 0.0
  %v3308 = vadd.f32 %v3306, %v3307
  %v3309 = vrot.slane %v3308, 4
  %v3310 = vadd.f32 %v3308, %v3309
  %v3311 = vrot.slane %v3310, 2
  %v3312 = vadd.f32 %v3310, %v3311
  %v3313 = vrot.slane %v3312, 1
  %v3314 = vadd.f32 %v3312, %v3313
  %v3315 = vmul.f32 %v3288, 0.02
  %v3316 = vmul.f32 %v3314, 0.02
  %v3317 = vmul.f32 %v3315, %v3315
  %v3318 = vsub.f32 %v3316, %v3317
  %v3319 = vsub.f32 %v3262, %v3315
  %v3320 = vsub.f32 %v3263, %v3315
  %v3321 = vsub.f32 %v3264, %v3315
  %v3322 = vsub.f32 %v3265, %v3315
  %v3323 = vsub.f32 %v3266, %v3315
  %v3324 = vsub.f32 %v3267, %v3315
  %v3325 = vsub.f32 %v3268, %v3315
  %v3326 = vadd.f32 %v3318, 1e-05
  %v3327 = vrsqrt.pop %v3326
  %v3328 = vmul.f32 %v3319, %v3327
  %v3329 = vmul.f32 %v3320, %v3327
  %v3330 = vmul.f32 %v3321, %v3327
  %v3331 = vmul.f32 %v3322, %v3327
  %v3332 = vmul.f32 %v3323, %v3327
  %v3333 = vmul.f32 %v3324, %v3327
  %v3334 = vmul.f32 %v3325, %v3327
  %v3335 = vmul.f32 %v3328, 0.2
  %v3336 = vmul.f32 %v3329, 0.2
  %v3337 = vmul.f32 %v3330, 0.2
  %v3338 = vmul.f32 %v3331, 0.2
  %v3339 = vmul.f32 %v3332, 0.2
  %v3340 = vmul.f32 %v3333, 0.2
  %v3341 = vmul.f32 %v3334, 0.2
  %v3342 = vmax.f32 %v3328, %v3335
  %v3343 = vmax.f32 %v3329, %v3336
  %v3344 = vmax.f32 %v3330, %v3337
  %v3345 = vmax.f32 %v3331, %v3338
  %v3346 = vmax.f32 %v3332, %v3339
  %v3347 = vmax.f32 %v3333, %v3340
  %v3348 = vmax.f32 %v3334, %v3341
  %3349 = vst.msk [vmem:[#allocation4] sm:$0xff] %vm3269, %v3342
  %3350 = vst.msk [vmem:[#allocation4 + $0x8] sm:$0xff] %vm3269, %v3343
  %3351 = vst.msk [vmem:[#allocation4 + $0x10] sm:$0xff] %vm3269, %v3344
  %3352 = vst.msk [vmem:[#allocation4 + $0x18] sm:$0xff] %vm3269, %v3345
  %3353 = vst.msk [vmem:[#allocation4 + $0x20] sm:$0xff] %vm3269, %v3346
  %3354 = vst.msk [vmem:[#allocation4 + $0x28] sm:$0xff] %vm3269, %v3347
  %3355 = vst.msk [vmem:[#allocation4 + $0x30] sm:$0x3] %vm2326, %v3348
  %v3356 = vld [vmem:[#allocation4] sm:$0x1]
  %3357 = vst.msk [vmem:[#allocation5] sm:$0x1] %vm2457, %v3356
  %v3358 = vld [vmem:[#allocation4 + $0x1] sm:$0x1]
  %v3361 = vunpack.c.l.s4 1983009808
  %v3362 = vunpack.c.0.s8 %v3361
  %v3363 = vlaneseq
  %v3364 = vshrl.u32 %v3363, 7
  %v3365 = vsub.s32 %v3362, %v3364
  %v3366 = vrot.slane %v3358, %v3365
  %3367 = vrot.lane.b32.xlu0 %v3366, 32
  %v3368 = vpop.permute.xlu0 %3367
  %vm3370 = vcmask 516352
  %3371 = vst.msk [vmem:[#allocation5] sm:$0x1] %vm3370, %v3368
  %v3372 = vld [vmem:[#allocation4 + $0x2] sm:$0x1]
  %v3375 = vunpack.c.l.s4 1983009808
  %v3376 = vunpack.c.0.s8 %v3375
  %v3377 = vlaneseq
  %v3378 = vshrl.u32 %v3377, 7
  %v3379 = vsub.s32 %v3376, %v3378
  %v3380 = vrot.slane %v3372, %v3379
  %3381 = vrot.lane.b32.xlu0 %v3380, 64
  %v3382 = vpop.permute.xlu0 %3381
  %vm3384 = vcmask 778752
  %3385 = vst.msk [vmem:[#allocation5] sm:$0x1] %vm3384, %v3382
  %v3386 = vld [vmem:[#allocation4 + $0x3] sm:$0x1]
  %v3389 = vunpack.c.l.s4 1983009808
  %v3390 = vunpack.c.0.s8 %v3389
  %v3391 = vlaneseq
  %v3392 = vshrl.u32 %v3391, 7
  %v3393 = vsub.s32 %v3390, %v3392
  %v3394 = vrot.slane %v3386, %v3393
  %3395 = vrot.lane.b32.xlu0 %v3394, 96
  %v3396 = vpop.permute.xlu0 %3395
  %vm3398 = vcmask 1041152
  %3399 = vst.msk [vmem:[#allocation5] sm:$0x1] %vm3398, %v3396
  %v3400 = vld [vmem:[#allocation4 + $0x5] sm:$0x1]
  %3401 = vst.msk [vmem:[#allocation5 + $0x2] sm:$0x1] %vm2457, %v3400
  %v3402 = vld [vmem:[#allocation4 + $0x6] sm:$0x1]
  %v3405 = vunpack.c.l.s4 1983009808
  %v3406 = vunpack.c.0.s8 %v3405
  %v3407 = vlaneseq
  %v3408 = vshrl.u32 %v3407, 7
  %v3409 = vsub.s32 %v3406, %v3408
  %v3410 = vrot.slane %v3402, %v3409
  %3411 = vrot.lane.b32.xlu0 %v3410, 32
  %v3412 = vpop.permute.xlu0 %3411
  %3414 = vst.msk [vmem:[#allocation5 + $0x2] sm:$0x1] %vm3370, %v3412
  %v3415 = vld [vmem:[#allocation4 + $0x7] sm:$0x1]
  %v3418 = vunpack.c.l.s4 1983009808
  %v3419 = vunpack.c.0.s8 %v3418
  %v3420 = vlaneseq
  %v3421 = vshrl.u32 %v3420, 7
  %v3422 = vsub.s32 %v3419, %v3421
  %v3423 = vrot.slane %v3415, %v3422
  %3424 = vrot.lane.b32.xlu0 %v3423, 64
  %v3425 = vpop.permute.xlu0 %3424
  %3427 = vst.msk [vmem:[#allocation5 + $0x2] sm:$0x1] %vm3384, %v3425
  %v3428 = vld [vmem:[#allocation4 + $0x8] sm:$0x1]
  %v3431 = vunpack.c.l.s4 1983009808
  %v3432 = vunpack.c.0.s8 %v3431
  %v3433 = vlaneseq
  %v3434 = vshrl.u32 %v3433, 7
  %v3435 = vsub.s32 %v3432, %v3434
  %v3436 = vrot.slane %v3428, %v3435
  %3437 = vrot.lane.b32.xlu0 %v3436, 96
  %v3438 = vpop.permute.xlu0 %3437
  %3440 = vst.msk [vmem:[#allocation5 + $0x2] sm:$0x1] %vm3398, %v3438
  %v3441 = vld [vmem:[#allocation4 + $0xa] sm:$0x1]
  %3442 = vst.msk [vmem:[#allocation5 + $0x4] sm:$0x1] %vm2457, %v3441
  %v3443 = vld [vmem:[#allocation4 + $0xb] sm:$0x1]
  %v3446 = vunpack.c.l.s4 1983009808
  %v3447 = vunpack.c.0.s8 %v3446
  %v3448 = vlaneseq
  %v3449 = vshrl.u32 %v3448, 7
  %v3450 = vsub.s32 %v3447, %v3449
  %v3451 = vrot.slane %v3443, %v3450
  %3452 = vrot.lane.b32.xlu0 %v3451, 32
  %v3453 = vpop.permute.xlu0 %3452
  %3455 = vst.msk [vmem:[#allocation5 + $0x4] sm:$0x1] %vm3370, %v3453
  %v3456 = vld [vmem:[#allocation4 + $0xc] sm:$0x1]
  %v3459 = vunpack.c.l.s4 1983009808
  %v3460 = vunpack.c.0.s8 %v3459
  %v3461 = vlaneseq
  %v3462 = vshrl.u32 %v3461, 7
  %v3463 = vsub.s32 %v3460, %v3462
  %v3464 = vrot.slane %v3456, %v3463
  %3465 = vrot.lane.b32.xlu0 %v3464, 64
  %v3466 = vpop.permute.xlu0 %3465
  %3468 = vst.msk [vmem:[#allocation5 + $0x4] sm:$0x1] %vm3384, %v3466
  %v3469 = vld [vmem:[#allocation4 + $0xd] sm:$0x1]
  %v3472 = vunpack.c.l.s4 1983009808
  %v3473 = vunpack.c.0.s8 %v3472
  %v3474 = vlaneseq
  %v3475 = vshrl.u32 %v3474, 7
  %v3476 = vsub.s32 %v3473, %v3475
  %v3477 = vrot.slane %v3469, %v3476
  %3478 = vrot.lane.b32.xlu0 %v3477, 96
  %v3479 = vpop.permute.xlu0 %3478
  %3481 = vst.msk [vmem:[#allocation5 + $0x4] sm:$0x1] %vm3398, %v3479
  %v3482 = vld [vmem:[#allocation4 + $0xf] sm:$0x1]
  %3483 = vst.msk [vmem:[#allocation5 + $0x6] sm:$0x1] %vm2457, %v3482
  %v3484 = vld [vmem:[#allocation4 + $0x10] sm:$0x1]
  %v3487 = vunpack.c.l.s4 1983009808
  %v3488 = vunpack.c.0.s8 %v3487
  %v3489 = vlaneseq
  %v3490 = vshrl.u32 %v3489, 7
  %v3491 = vsub.s32 %v3488, %v3490
  %v3492 = vrot.slane %v3484, %v3491
  %3493 = vrot.lane.b32.xlu0 %v3492, 32
  %v3494 = vpop.permute.xlu0 %3493
  %3496 = vst.msk [vmem:[#allocation5 + $0x6] sm:$0x1] %vm3370, %v3494
  %v3497 = vld [vmem:[#allocation4 + $0x11] sm:$0x1]
  %v3500 = vunpack.c.l.s4 1983009808
  %v3501 = vunpack.c.0.s8 %v3500
  %v3502 = vlaneseq
  %v3503 = vshrl.u32 %v3502, 7
  %v3504 = vsub.s32 %v3501, %v3503
  %v3505 = vrot.slane %v3497, %v3504
  %3506 = vrot.lane.b32.xlu0 %v3505, 64
  %v3507 = vpop.permute.xlu0 %3506
  %3509 = vst.msk [vmem:[#allocation5 + $0x6] sm:$0x1] %vm3384, %v3507
  %v3510 = vld [vmem:[#allocation4 + $0x12] sm:$0x1]
  %v3513 = vunpack.c.l.s4 1983009808
  %v3514 = vunpack.c.0.s8 %v3513
  %v3515 = vlaneseq
  %v3516 = vshrl.u32 %v3515, 7
  %v3517 = vsub.s32 %v3514, %v3516
  %v3518 = vrot.slane %v3510, %v3517
  %3519 = vrot.lane.b32.xlu0 %v3518, 96
  %v3520 = vpop.permute.xlu0 %3519
  %3522 = vst.msk [vmem:[#allocation5 + $0x6] sm:$0x1] %vm3398, %v3520
  %v3523 = vld [vmem:[#allocation4 + $0x19] sm:$0x1]
  %3524 = vst.msk [vmem:[#allocation5 + $0x1] sm:$0x1] %vm2457, %v3523
  %v3525 = vld [vmem:[#allocation4 + $0x1a] sm:$0x1]
  %v3528 = vunpack.c.l.s4 1983009808
  %v3529 = vunpack.c.0.s8 %v3528
  %v3530 = vlaneseq
  %v3531 = vshrl.u32 %v3530, 7
  %v3532 = vsub.s32 %v3529, %v3531
  %v3533 = vrot.slane %v3525, %v3532
  %3534 = vrot.lane.b32.xlu0 %v3533, 32
  %v3535 = vpop.permute.xlu0 %3534
  %3537 = vst.msk [vmem:[#allocation5 + $0x1] sm:$0x1] %vm3370, %v3535
  %v3538 = vld [vmem:[#allocation4 + $0x1b] sm:$0x1]
  %v3541 = vunpack.c.l.s4 1983009808
  %v3542 = vunpack.c.0.s8 %v3541
  %v3543 = vlaneseq
  %v3544 = vshrl.u32 %v3543, 7
  %v3545 = vsub.s32 %v3542, %v3544
  %v3546 = vrot.slane %v3538, %v3545
  %3547 = vrot.lane.b32.xlu0 %v3546, 64
  %v3548 = vpop.permute.xlu0 %3547
  %3550 = vst.msk [vmem:[#allocation5 + $0x1] sm:$0x1] %vm3384, %v3548
  %v3551 = vld [vmem:[#allocation4 + $0x1c] sm:$0x1]
  %v3554 = vunpack.c.l.s4 1983009808
  %v3555 = vunpack.c.0.s8 %v3554
  %v3556 = vlaneseq
  %v3557 = vshrl.u32 %v3556, 7
  %v3558 = vsub.s32 %v3555, %v3557
  %v3559 = vrot.slane %v3551, %v3558
  %3560 = vrot.lane.b32.xlu0 %v3559, 96
  %v3561 = vpop.permute.xlu0 %3560
  %3563 = vst.msk [vmem:[#allocation5 + $0x1] sm:$0x1] %vm3398, %v3561
  %v3564 = vld [vmem:[#allocation4 + $0x1e] sm:$0x1]
  %3565 = vst.msk [vmem:[#allocation5 + $0x3] sm:$0x1] %vm2457, %v3564
  %v3566 = vld [vmem:[#allocation4 + $0x1f] sm:$0x1]
  %v3569 = vunpack.c.l.s4 1983009808
  %v3570 = vunpack.c.0.s8 %v3569
  %v3571 = vlaneseq
  %v3572 = vshrl.u32 %v3571, 7
  %v3573 = vsub.s32 %v3570, %v3572
  %v3574 = vrot.slane %v3566, %v3573
  %3575 = vrot.lane.b32.xlu0 %v3574, 32
  %v3576 = vpop.permute.xlu0 %3575
  %3578 = vst.msk [vmem:[#allocation5 + $0x3] sm:$0x1] %vm3370, %v3576
  %v3579 = vld [vmem:[#allocation4 + $0x20] sm:$0x1]
  %v3582 = vunpack.c.l.s4 1983009808
  %v3583 = vunpack.c.0.s8 %v3582
  %v3584 = vlaneseq
  %v3585 = vshrl.u32 %v3584, 7
  %v3586 = vsub.s32 %v3583, %v3585
  %v3587 = vrot.slane %v3579, %v3586
  %3588 = vrot.lane.b32.xlu0 %v3587, 64
  %v3589 = vpop.permute.xlu0 %3588
  %3591 = vst.msk [vmem:[#allocation5 + $0x3] sm:$0x1] %vm3384, %v3589
  %v3592 = vld [vmem:[#allocation4 + $0x21] sm:$0x1]
  %v3595 = vunpack.c.l.s4 1983009808
  %v3596 = vunpack.c.0.s8 %v3595
  %v3597 = vlaneseq
  %v3598 = vshrl.u32 %v3597, 7
  %v3599 = vsub.s32 %v3596, %v3598
  %v3600 = vrot.slane %v3592, %v3599
  %3601 = vrot.lane.b32.xlu0 %v3600, 96
  %v3602 = vpop.permute.xlu0 %3601
  %3604 = vst.msk [vmem:[#allocation5 + $0x3] sm:$0x1] %vm3398, %v3602
  %v3605 = vld [vmem:[#allocation4 + $0x23] sm:$0x1]
  %3606 = vst.msk [vmem:[#allocation5 + $0x5] sm:$0x1] %vm2457, %v3605
  %v3607 = vld [vmem:[#allocation4 + $0x24] sm:$0x1]
  %v3610 = vunpack.c.l.s4 1983009808
  %v3611 = vunpack.c.0.s8 %v3610
  %v3612 = vlaneseq
  %v3613 = vshrl.u32 %v3612, 7
  %v3614 = vsub.s32 %v3611, %v3613
  %v3615 = vrot.slane %v3607, %v3614
  %3616 = vrot.lane.b32.xlu0 %v3615, 32
  %v3617 = vpop.permute.xlu0 %3616
  %3619 = vst.msk [vmem:[#allocation5 + $0x5] sm:$0x1] %vm3370, %v3617
  %v3620 = vld [vmem:[#allocation4 + $0x25] sm:$0x1]
  %v3623 = vunpack.c.l.s4 1983009808
  %v3624 = vunpack.c.0.s8 %v3623
  %v3625 = vlaneseq
  %v3626 = vshrl.u32 %v3625, 7
  %v3627 = vsub.s32 %v3624, %v3626
  %v3628 = vrot.slane %v3620, %v3627
  %3629 = vrot.lane.b32.xlu0 %v3628, 64
  %v3630 = vpop.permute.xlu0 %3629
  %3632 = vst.msk [vmem:[#allocation5 + $0x5] sm:$0x1] %vm3384, %v3630
  %v3633 = vld [vmem:[#allocation4 + $0x26] sm:$0x1]
  %v3636 = vunpack.c.l.s4 1983009808
  %v3637 = vunpack.c.0.s8 %v3636
  %v3638 = vlaneseq
  %v3639 = vshrl.u32 %v3638, 7
  %v3640 = vsub.s32 %v3637, %v3639
  %v3641 = vrot.slane %v3633, %v3640
  %3642 = vrot.lane.b32.xlu0 %v3641, 96
  %v3643 = vpop.permute.xlu0 %3642
  %3645 = vst.msk [vmem:[#allocation5 + $0x5] sm:$0x1] %vm3398, %v3643
  %v3646 = vld [vmem:[#allocation4 + $0x28] sm:$0x1]
  %3647 = vst.msk [vmem:[#allocation5 + $0x7] sm:$0x1] %vm2457, %v3646
  %v3648 = vld [vmem:[#allocation4 + $0x29] sm:$0x1]
  %v3651 = vunpack.c.l.s4 1983009808
  %v3652 = vunpack.c.0.s8 %v3651
  %v3653 = vlaneseq
  %v3654 = vshrl.u32 %v3653, 7
  %v3655 = vsub.s32 %v3652, %v3654
  %v3656 = vrot.slane %v3648, %v3655
  %3657 = vrot.lane.b32.xlu0 %v3656, 32
  %v3658 = vpop.permute.xlu0 %3657
  %3660 = vst.msk [vmem:[#allocation5 + $0x7] sm:$0x1] %vm3370, %v3658
  %v3661 = vld [vmem:[#allocation4 + $0x2a] sm:$0x1]
  %v3664 = vunpack.c.l.s4 1983009808
  %v3665 = vunpack.c.0.s8 %v3664
  %v3666 = vlaneseq
  %v3667 = vshrl.u32 %v3666, 7
  %v3668 = vsub.s32 %v3665, %v3667
  %v3669 = vrot.slane %v3661, %v3668
  %3670 = vrot.lane.b32.xlu0 %v3669, 64
  %v3671 = vpop.permute.xlu0 %3670
  %3673 = vst.msk [vmem:[#allocation5 + $0x7] sm:$0x1] %vm3384, %v3671
  %v3674 = vld [vmem:[#allocation4 + $0x2b] sm:$0x1]
  %v3677 = vunpack.c.l.s4 1983009808
  %v3678 = vunpack.c.0.s8 %v3677
  %v3679 = vlaneseq
  %v3680 = vshrl.u32 %v3679, 7
  %v3681 = vsub.s32 %v3678, %v3680
  %v3682 = vrot.slane %v3674, %v3681
  %3683 = vrot.lane.b32.xlu0 %v3682, 96
  %v3684 = vpop.permute.xlu0 %3683
  %3686 = vst.msk [vmem:[#allocation5 + $0x7] sm:$0x1] %vm3398, %v3684
  %v3687 = vld [vmem:[#allocation5] sm:$0xff]
  %v3688 = vld [vmem:[%s5] sm:$0xff]
  %v3689 = vld [vmem:[%s5 + $0x8] sm:$0xff]
  %v3690 = vld [vmem:[%s5 + $0x10] sm:$0xff]
  %v3691 = vld [vmem:[%s5 + $0x18] sm:$0xff]
  %v3692 = vld [vmem:[%s5 + $0x20] sm:$0xff]
  %v3693 = vld [vmem:[%s5 + $0x28] sm:$0xff]
  %v3694 = vld [vmem:[%s5 + $0x30] sm:$0xff]
  %v3695 = vld [vmem:[%s5 + $0x38] sm:$0xff]
  %v3696 = vld [vmem:[%s5 + $0x40] sm:$0xff]
  %v3697 = vld [vmem:[%s5 + $0x48] sm:$0xff]
  %v3698 = vld [vmem:[%s5 + $0x50] sm:$0xff]
  %v3699 = vld [vmem:[%s5 + $0x58] sm:$0xff]
  %v3700 = vld [vmem:[%s5 + $0x60] sm:$0xff]
  %v3701 = vld [vmem:[%s5 + $0x68] sm:$0xff]
  %v3702 = vld [vmem:[%s5 + $0x70] sm:$0xff]
  %v3703 = vld [vmem:[%s5 + $0x78] sm:$0xff]
  %v3704 = vld [vmem:[%s5 + $0x80] sm:$0xff]
  %v3705 = vld [vmem:[%s5 + $0x88] sm:$0xff]
  %v3706 = vld [vmem:[%s5 + $0x90] sm:$0xff]
  %v3707 = vld [vmem:[%s5 + $0x98] sm:$0xff]
  %v3708 = vld [vmem:[%s5 + $0xa0] sm:$0xff]
  %v3709 = vld [vmem:[%s5 + $0xa8] sm:$0xff]
  %v3710 = vld [vmem:[%s5 + $0xb0] sm:$0xff]
  %v3711 = vld [vmem:[%s5 + $0xb8] sm:$0xff]
  %v3712 = vld [vmem:[%s5 + $0xc0] sm:$0xff]
  %v3713 = vld [vmem:[%s5 + $0xc8] sm:$0xff]
  %v3714 = vld [vmem:[%s5 + $0xd0] sm:$0xff]
  %v3715 = vld [vmem:[%s5 + $0xd8] sm:$0xff]
  %v3716 = vld [vmem:[%s5 + $0xe0] sm:$0xff]
  %v3717 = vld [vmem:[%s5 + $0xe8] sm:$0xff]
  %v3718 = vld [vmem:[%s5 + $0xf0] sm:$0xff]
  %v3719 = vld [vmem:[%s5 + $0xf8] sm:$0xff]
  %v3720 = vld [vmem:[%s5 + $0x100] sm:$0xff]
  %v3721 = vld [vmem:[%s5 + $0x108] sm:$0xff]
  %v3722 = vld [vmem:[%s5 + $0x110] sm:$0xff]
  %v3723 = vld [vmem:[%s5 + $0x118] sm:$0xff]
  %v3724 = vld [vmem:[%s5 + $0x120] sm:$0xff]
  %v3725 = vld [vmem:[%s5 + $0x128] sm:$0xff]
  %v3726 = vld [vmem:[%s5 + $0x130] sm:$0xff]
  %v3727 = vld [vmem:[%s5 + $0x138] sm:$0xff]
  %v3728 = vld [vmem:[%s5 + $0x140] sm:$0xff]
  %v3729 = vld [vmem:[%s5 + $0x148] sm:$0xff]
  %v3730 = vld [vmem:[%s5 + $0x150] sm:$0xff]
  %v3731 = vld [vmem:[%s5 + $0x158] sm:$0xff]
  %v3732 = vld [vmem:[%s5 + $0x160] sm:$0xff]
  %v3733 = vld [vmem:[%s5 + $0x168] sm:$0xff]
  %v3734 = vld [vmem:[%s5 + $0x170] sm:$0xff]
  %v3735 = vld [vmem:[%s5 + $0x178] sm:$0xff]
  %v3736 = vld [vmem:[%s5 + $0x180] sm:$0xff]
  %v3737 = vld [vmem:[%s5 + $0x188] sm:$0xff]
  %v3738 = vld [vmem:[%s5 + $0x190] sm:$0xff]
  %v3739 = vld [vmem:[%s5 + $0x198] sm:$0xff]
  %v3740 = vld [vmem:[%s5 + $0x1a0] sm:$0xff]
  %v3741 = vld [vmem:[%s5 + $0x1a8] sm:$0xff]
  %v3742 = vld [vmem:[%s5 + $0x1b0] sm:$0xff]
  %v3743 = vld [vmem:[%s5 + $0x1b8] sm:$0xff]
  %v3744 = vld [vmem:[%s5 + $0x1c0] sm:$0xff]
  %v3745 = vld [vmem:[%s5 + $0x1c8] sm:$0xff]
  %v3746 = vld [vmem:[%s5 + $0x1d0] sm:$0xff]
  %v3747 = vld [vmem:[%s5 + $0x1d8] sm:$0xff]
  %v3748 = vld [vmem:[%s5 + $0x1e0] sm:$0xff]
  %v3749 = vld [vmem:[%s5 + $0x1e8] sm:$0xff]
  %v3750 = vld [vmem:[%s5 + $0x1f0] sm:$0xff]
  %v3751 = vld [vmem:[%s5 + $0x1f8] sm:$0xff]
  %v3752 = vld [vmem:[#allocation6] sm:$0x1]
  %v3754 = vlaneseq
  %v3755 = vshrl.u32 %v3754, 7
  %v3756 = vsub.s32 0, %v3755
  %v3757 = vrot.slane %v3752, %v3756
  %v3760 = vcombine.high %v3687, %v3687
  %v3762 = vunpack.c.l.s4 1983009808
  %v3763 = vunpack.c.0.s8 %v3762
  %v3764 = vlaneseq
  %v3765 = vshrl.u32 %v3764, 7
  %v3766 = vsub.s32 %v3763, %v3765
  %v3767 = vrot.slane %v3687, %v3766
  %v3769 = vunpack.c.l.s4 1983009808
  %v3770 = vunpack.c.0.s8 %v3769
  %v3771 = vlaneseq
  %v3772 = vshrl.u32 %v3771, 7
  %v3773 = vsub.s32 %v3770, %v3772
  %v3774 = vrot.slane %v3760, %v3773
  %v3775 = vcombine.high %v3767, %v3767
  %v3776 = vcombine.high %v3774, %v3774
  %3781 = vmatprep.subr.mxu0 0.0
  %3782 = vmatpush1.msra.mxu0 %v3688
  %3783 = vmatprep.subr.mxu0 0.0
  %3784 = vmatpush1.msra.mxu0 %v3689
  %3785 = vmatprep.subr.mxu0 0.0
  %3786 = vmatpush1.msra.mxu0 %v3690
  %3787 = vmatprep.subr.mxu0 0.0
  %3788 = vmatpush1.msra.mxu0 %v3691
  %3789 = vmatprep.subr.mxu0 0.0
  %3790 = vmatpush1.msra.mxu0 %v3692
  %3791 = vmatprep.subr.mxu0 0.0
  %3792 = vmatpush1.msra.mxu0 %v3693
  %3793 = vmatprep.subr.mxu0 0.0
  %3794 = vmatpush1.msra.mxu0 %v3694
  %3795 = vmatprep.subr.mxu0 0.0
  %3796 = vmatpush1.msra.mxu0 %v3695
  %3797 = vmatprep.subr.mxu0 0.0
  %3798 = vmatpush1.msra.mxu0 %v3696
  %3799 = vmatprep.subr.mxu0 0.0
  %3800 = vmatpush1.msra.mxu0 %v3697
  %3801 = vmatprep.subr.mxu0 0.0
  %3802 = vmatpush1.msra.mxu0 %v3698
  %3803 = vmatprep.subr.mxu0 0.0
  %3804 = vmatpush1.msra.mxu0 %v3699
  %3805 = vmatprep.subr.mxu0 0.0
  %3806 = vmatpush1.msra.mxu0 %v3700
  %3807 = vmatprep.subr.mxu0 0.0
  %3808 = vmatpush1.msra.mxu0 %v3701
  %3809 = vmatprep.subr.mxu0 0.0
  %3810 = vmatpush1.msra.mxu0 %v3702
  %3811 = vmatprep.subr.mxu0 0.0
  %3812 = vmatpush1.msra.mxu0 %v3703
  %3813 = vmatprep.subr.mxu0 0.0
  %3814 = vmatpush1.msra.mxu0 %v3704
  %3815 = vmatprep.subr.mxu0 0.0
  %3816 = vmatpush1.msra.mxu0 %v3705
  %3817 = vmatprep.subr.mxu0 0.0
  %3818 = vmatpush1.msra.mxu0 %v3706
  %3819 = vmatprep.subr.mxu0 0.0
  %3820 = vmatpush1.msra.mxu0 %v3707
  %3821 = vmatprep.subr.mxu0 0.0
  %3822 = vmatpush1.msra.mxu0 %v3708
  %3823 = vmatprep.subr.mxu0 0.0
  %3824 = vmatpush1.msra.mxu0 %v3709
  %3825 = vmatprep.subr.mxu0 0.0
  %3826 = vmatpush1.msra.mxu0 %v3710
  %3827 = vmatprep.subr.mxu0 0.0
  %3828 = vmatpush1.msra.mxu0 %v3711
  %3829 = vmatprep.subr.mxu0 0.0
  %3830 = vmatpush1.msra.mxu0 %v3712
  %3831 = vmatprep.subr.mxu0 0.0
  %3832 = vmatpush1.msra.mxu0 %v3713
  %3833 = vmatprep.subr.mxu0 0.0
  %3834 = vmatpush1.msra.mxu0 %v3714
  %3835 = vmatprep.subr.mxu0 0.0
  %3836 = vmatpush1.msra.mxu0 %v3715
  %3837 = vmatprep.subr.mxu0 0.0
  %3838 = vmatpush1.msra.mxu0 %v3716
  %3839 = vmatprep.subr.mxu0 0.0
  %3840 = vmatpush1.msra.mxu0 %v3717
  %3841 = vmatprep.subr.mxu0 0.0
  %3842 = vmatpush1.msra.mxu0 %v3718
  %3843 = vmatprep.subr.mxu0 0.0
  %3844 = vmatpush1.msra.mxu0 %v3719
  %3845 = vmatprep.mubr.f32.mxu0 %v3775
  %3846 = vmatmul.mubr.f32.gmra.mrb[0].mxu0 %v3767
  %v3847 = vpop.f32.mrb[0].mxu0
  %v3848 = vadd.f32 %v3757, %v3847
  %v3849 = vpop.f32.mrb[0].mxu0
  %3850 = vdwg.mxu0
  %3851 = vmatprep.subr.mxu0 0.0
  %3852 = vmatpush1.msra.mxu0 %v3720
  %3853 = vmatprep.subr.mxu0 0.0
  %3854 = vmatpush1.msra.mxu0 %v3721
  %3855 = vmatprep.subr.mxu0 0.0
  %3856 = vmatpush1.msra.mxu0 %v3722
  %3857 = vmatprep.subr.mxu0 0.0
  %3858 = vmatpush1.msra.mxu0 %v3723
  %3859 = vmatprep.subr.mxu0 0.0
  %3860 = vmatpush1.msra.mxu0 %v3724
  %3861 = vmatprep.subr.mxu0 0.0
  %3862 = vmatpush1.msra.mxu0 %v3725
  %3863 = vmatprep.subr.mxu0 0.0
  %3864 = vmatpush1.msra.mxu0 %v3726
  %3865 = vmatprep.subr.mxu0 0.0
  %3866 = vmatpush1.msra.mxu0 %v3727
  %3867 = vmatprep.subr.mxu0 0.0
  %3868 = vmatpush1.msra.mxu0 %v3728
  %3869 = vmatprep.subr.mxu0 0.0
  %3870 = vmatpush1.msra.mxu0 %v3729
  %3871 = vmatprep.subr.mxu0 0.0
  %3872 = vmatpush1.msra.mxu0 %v3730
  %3873 = vmatprep.subr.mxu0 0.0
  %3874 = vmatpush1.msra.mxu0 %v3731
  %3875 = vmatprep.subr.mxu0 0.0
  %3876 = vmatpush1.msra.mxu0 %v3732
  %3877 = vmatprep.subr.mxu0 0.0
  %3878 = vmatpush1.msra.mxu0 %v3733
  %3879 = vmatprep.subr.mxu0 0.0
  %3880 = vmatpush1.msra.mxu0 %v3734
  %3881 = vmatprep.subr.mxu0 0.0
  %3882 = vmatpush1.msra.mxu0 %v3735
  %3883 = vmatprep.subr.mxu0 0.0
  %3884 = vmatpush1.msra.mxu0 %v3736
  %3885 = vmatprep.subr.mxu0 0.0
  %3886 = vmatpush1.msra.mxu0 %v3737
  %3887 = vmatprep.subr.mxu0 0.0
  %3888 = vmatpush1.msra.mxu0 %v3738
  %3889 = vmatprep.subr.mxu0 0.0
  %3890 = vmatpush1.msra.mxu0 %v3739
  %3891 = vmatprep.subr.mxu0 0.0
  %3892 = vmatpush1.msra.mxu0 %v3740
  %3893 = vmatprep.subr.mxu0 0.0
  %3894 = vmatpush1.msra.mxu0 %v3741
  %3895 = vmatprep.subr.mxu0 0.0
  %3896 = vmatpush1.msra.mxu0 %v3742
  %3897 = vmatprep.subr.mxu0 0.0
  %3898 = vmatpush1.msra.mxu0 %v3743
  %3899 = vmatprep.subr.mxu0 0.0
  %3900 = vmatpush1.msra.mxu0 %v3744
  %3901 = vmatprep.subr.mxu0 0.0
  %3902 = vmatpush1.msra.mxu0 %v3745
  %3903 = vmatprep.subr.mxu0 0.0
  %3904 = vmatpush1.msra.mxu0 %v3746
  %3905 = vmatprep.subr.mxu0 0.0
  %3906 = vmatpush1.msra.mxu0 %v3747
  %3907 = vmatprep.subr.mxu0 0.0
  %3908 = vmatpush1.msra.mxu0 %v3748
  %3909 = vmatprep.subr.mxu0 0.0
  %3910 = vmatpush1.msra.mxu0 %v3749
  %3911 = vmatprep.subr.mxu0 0.0
  %3912 = vmatpush1.msra.mxu0 %v3750
  %3913 = vmatprep.subr.mxu0 0.0
  %3914 = vmatpush1.msra.mxu0 %v3751
  %3915 = vmatprep.mubr.f32.mxu0 %v3776
  %3916 = vmatmul.mubr.f32.gmra.mrb[0].mxu0 %v3774
  %v3917 = vpop.f32.mrb[0].mxu0
  %v3918 = vadd.f32 %v3848, %v3917
  %v3919 = vpop.f32.mrb[0].mxu0
  %3920 = vdwg.mxu0
  %vm3921 = vcmask 1024
  %3922 = vst.msk [vmem:[%s7] sm:$0x3] %vm3921, %v3918
  // Predicated region
  $region30: #{discriminator_forward.1} parent=0 // pred_check
    _
  $region31: #{discriminator_forward.1} parent=0 // pred_check_branch
    %3924 = sbr.rel (0) target = $region33
  $region32: #{discriminator_forward.1} parent=0 // pred_region
    _
  $region33: #{discriminator_forward.1} parent=0 // pred_fallthru
    _
  // Predicated region
  $region34: #{discriminator_forward.1} parent=0 // pred_check
    _
  $region35: #{discriminator_forward.1} parent=0 // pred_check_branch
    %3926 = sbr.rel (0) target = $region37
  $region36: #{discriminator_forward.1} parent=0 // pred_region
    _
  $region37: #{discriminator_forward.1} parent=0 // pred_fallthru
    _

</llo_original>
